<compile_context>
chip_gen: v5e
topology: v5e:2x2
jax: 0.10.0
libtpu: 0.0.40
codegen_flags: <defaults>
</compile_context>

<pallas_src>
import math

import jax
import jax.numpy as jnp
from jax import lax
from jax.experimental import pallas as pl
from jax.experimental.pallas import tpu as pltpu

HIDDEN = 128          # args.projection_size
NUM_FEATURES = 128    # node feature dim (== num_dim in create_knn_edges)
NUM_CLASSES = 8
K_NEIGHBOR = 8        # args.k_neighbor
N_NODES = 64          # args.k_features (number of graph nodes)
POOL_RATIO = 0.5
DELTA = 0.01          # args.delta (perturbation magnitude)
LRELU_SLOPE = 0.1
LN_EPS = 1e-5
BIG = 1e30

# Static TopK sizes: 64 -> 32 -> 16 -> 8 nodes kept after pool1/2/3.
K1 = int(math.ceil(POOL_RATIO * N_NODES))
K2 = int(math.ceil(POOL_RATIO * K1))
K3 = int(math.ceil(POOL_RATIO * K2))

# MXU operand dtype: bf16 with f32 accumulation on real TPUs (native on v5e/v6e/v7x MXU),
# f32 elsewhere (the CPU interpret-mode executor has no bf16xbf16=f32 dot).
_MM_DTYPE = jnp.bfloat16 if jax.default_backend() == "tpu" else jnp.float32


def _lrelu(v):
    return jnp.where(v > 0, v, LRELU_SLOPE * v)


# ----------------------------------------------------------------------------- fused kernel
def fused_gnn_kernel(data_ref, pert_ref, wslab_ref, vslab_ref, hw_ref, hvec_ref, out_ref):
    n, h, c, k = N_NODES, HIDDEN, NUM_CLASSES, K_NEIGHBOR
    f32 = jnp.float32

    V = vslab_ref[...]          # (16, 128) f32: biases / LN params / pool weights
    HV = hvec_ref[...]          # (4, 256)  f32: ln4 gamma/beta, lin1/lin3 biases (padded)

    def vrow(r):                # static row slice -> (1, 128)
        return V[r:r + 1, :]

    def mm(a, b):
        # bf16 operands on TPU (f32 accumulation on the MXU); f32 on other backends.
        return jnp.dot(a.astype(_MM_DTYPE), b.astype(_MM_DTYPE),
                       preferred_element_type=f32)

    rowi = lax.broadcasted_iota(jnp.int32, (n, n), 0)
    coli = lax.broadcasted_iota(jnp.int32, (n, n), 1)

    # ---- fused kNN graph build: k nearest neighbours per node, self excluded ----
    xin = data_ref[...]                                                    # (n, f) f32
    gram = jnp.dot(xin, jnp.transpose(xin), preferred_element_type=f32)    # f32: exact nbr ranks
    sq = jnp.sum(xin * xin, axis=-1, keepdims=True)                        # (n, 1)
    dist = sq + jnp.transpose(sq) - 2.0 * gram                             # (n, n)
    dist = jnp.where(rowi == coli, BIG, dist)                              # exclude self (j = 0)
    nbr = jnp.zeros((n, n), f32)                         # nbr[i, j] = 1 iff j in kNN(i)
    for _ in range(k):                                   # 8 iterated row-min passes
        dmin = jnp.min(dist, axis=-1, keepdims=True)
        cand = jnp.where(dist <= dmin, coli, n)          # lowest-index minimum (stable)
        jmin = jnp.min(cand, axis=-1, keepdims=True)
        pick = (coli == jmin).astype(f32)                # exactly one pick per row
        nbr = nbr + pick
        dist = dist + pick * BIG
    # Edge (i -> nbr): aggregation at dst sums x[src]  =>  agg = nbr^T @ x.
    A = jnp.transpose(nbr).astype(_MM_DTYPE)             # cast once; reused by all 3 blocks

    def layer_norm(v, gamma, beta):
        mu = jnp.mean(v, axis=-1, keepdims=True)
        var = jnp.mean((v - mu) ** 2, axis=-1, keepdims=True)
        return (v - mu) * lax.rsqrt(var + LN_EPS) * gamma + beta

    def gin_block(x, w1, w2, b1, b2, g, be, pert):
        # GINConv(eps=0): z = x + A @ x ; MLP([H,H,H]) in eval (inner BatchNorm = identity)
        agg = x + mm(A, x)
        v = mm(agg, w1) + b1
        v = jnp.maximum(v, 0.0)
        v = mm(v, w2) + b2
        v = layer_norm(v, g, be)          # bn_i == nn.LayerNorm(H)
        if pert is not None:              # perturb only feeds block 1 ('H' position)
            v = v + pert
        return _lrelu(v)                  # dropout = identity in eval mode

    def topk_and_pool(x, act, w, kkeep):
        # PyG TopKPooling (tanh): score = tanh((x . w) / ||w||); keep the kkeep best ACTIVE nodes.
        # Mask-based: shapes stay (n, .), a 0/1 keep mask is carried instead of a gather.
        inv_norm = lax.rsqrt(jnp.sum(w * w, axis=-1, keepdims=True))            # (1, 1)
        score = jnp.tanh(jnp.sum(x * w, axis=-1, keepdims=True) * inv_norm)     # (n, 1)
        s_eff = jnp.where(act > 0.5, score, -BIG)            # inactive nodes never win
        col_s = jnp.transpose(s_eff)                          # (1, n) via XLU transpose
        gt = (col_s > s_eff).astype(f32)                      # (n, n) pairwise compares
        tie = jnp.logical_and(col_s == s_eff, coli < rowi).astype(f32)
        rank = jnp.sum(gt + tie, axis=-1, keepdims=True)      # (n, 1) stable descending rank
        sel = act * (rank < float(kkeep)).astype(f32)         # (n, 1) 0/1 keep mask
        xp = x * (sel * score)                                # kept rows scaled by score
        # A stays unmasked: dropped-source rows of xp are zero, dropped-destination junk rows
        # are killed downstream by act/sel, so outputs are identical without A re-masking.
        gmax = jnp.max(jnp.where(sel > 0.5, xp, -BIG), axis=0, keepdims=True)
        gmean = jnp.sum(xp, axis=0, keepdims=True) * (1.0 / kkeep)
        return xp, sel, jnp.concatenate([gmax, gmean], axis=-1)   # (1, 2h)

    # ---- embedding ----
    x = mm(xin, wslab_ref[0]) + vrow(0)
    act = jnp.ones((n, 1), f32)

    # ---- block 1 (bn1(conv1(x)) + perturb -> lrelu -> pool1 -> global pools) ----
    x = gin_block(x, wslab_ref[1], wslab_ref[2], vrow(1), vrow(2), vrow(3), vrow(4),
                  pert_ref[...])
    x, act, x1 = topk_and_pool(x, act, vrow(5), K1)

    # ---- block 2 ----
    x = gin_block(x, wslab_ref[3], wslab_ref[4], vrow(6), vrow(7), vrow(8), vrow(9), None)
    x, act, x2 = topk_and_pool(x, act, vrow(10), K2)

    # ---- block 3 ----
    x = gin_block(x, wslab_ref[5], wslab_ref[6], vrow(11), vrow(12), vrow(13), vrow(14), None)
    x, act, x3 = topk_and_pool(x, act, vrow(15), K3)

    # ---- head ----
    x3n = layer_norm(x3, HV[0:1, :], HV[1:2, :])                    # bn4 = LayerNorm(2h)
    xg = _lrelu(x1) + _lrelu(x2) + _lrelu(x3n)                      # (1, 2h)
    w1 = hw_ref[pl.ds(0, 2 * h), :]                                 # (2h, h)
    w3 = hw_ref[pl.ds(2 * h, h), :]                                 # (h, h) cols >= c are zero
    feature = mm(xg, w1) + HV[2:3, 0:h]                             # (1, h)
    logits = mm(feature, w3)[:, 0:c] + HV[3:4, 0:c]                 # (1, c)

    m = jnp.max(logits, axis=-1, keepdims=True)
    e = jnp.exp(logits - m)
    p = e / jnp.sum(e, axis=-1, keepdims=True)                      # softmax

    # S = cumprod(1 - p): unrolled running product on the VPU (c == 8).
    omp = 1.0 - p
    lane_c = lax.broadcasted_iota(jnp.int32, (1, c), 1)
    s = jnp.ones((1, c), f32)
    for j in range(c):
        fj = jnp.broadcast_to(omp[:, j:j + 1], (1, c))
        s = s * jnp.where(lane_c >= j, fj, 1.0)

    # ---- single lane-dense 256-wide store: [feature(128) | predict(8) | S(8) | pad(112)] ----
    pad = jnp.zeros((1, 2 * h - h - 2 * c), f32)
    out_ref[...] = jnp.concatenate([feature, p, s, pad], axis=-1)


# ----------------------------------------------------------------------------- JAX glue
def _full_spec(shape):
    nd = len(shape)
    return pl.BlockSpec(shape, lambda i, _nd=nd: (0,) * _nd)


def gnn_forward(params, data, perturb):
    args = (data, perturb, params["wslab"], params["vslab"], params["hw"], params["hvec"])
    out = pl.pallas_call(
        fused_gnn_kernel,
        grid=(1,),
        in_specs=[_full_spec(a.shape) for a in args],
        out_specs=_full_spec((1, 2 * HIDDEN)),
        out_shape=jax.ShapeDtypeStruct((1, 2 * HIDDEN), jnp.float32),
        compiler_params=pltpu.CompilerParams(dimension_semantics=("arbitrary",)),
    )(*args)
    # TODO(synk): for a batch of graphs, add a leading "parallel" grid axis (and stack graphs
    # along sublanes) to use both v7x TensorCores / fill the 256-wide MXU; batch here is 1.
    feature = out[:, :HIDDEN]
    predict = out[:, HIDDEN:HIDDEN + NUM_CLASSES]
    S = out[:, HIDDEN + NUM_CLASSES:HIDDEN + 2 * NUM_CLASSES]
    return feature, predict, S


def init_params(key):
    """Initialize the module's weights and pack them into a few DMA-friendly slabs."""
    ks = jax.random.split(key, 16)

    def lin(k, fan_in, fan_out):
        kw, kb = jax.random.split(k)
        lim = 1.0 / math.sqrt(fan_in)
        w = jax.random.uniform(kw, (fan_in, fan_out), jnp.float32, -lim, lim)
        b = jax.random.uniform(kb, (fan_out,), jnp.float32, -lim, lim)
        return w, b

    emb_w, emb_b = lin(ks[0], NUM_FEATURES, HIDDEN)
    conv = []
    for i in range(3):
        w1, b1 = lin(ks[1 + 2 * i], HIDDEN, HIDDEN)
        w2, b2 = lin(ks[2 + 2 * i], HIDDEN, HIDDEN)
        conv.append((w1, b1, w2, b2))
    pool_w = [jax.random.normal(ks[7 + i], (HIDDEN,), jnp.float32) for i in range(3)]
    l1w, l1b = lin(ks[10], 2 * HIDDEN, HIDDEN)
    l3w, l3b = lin(ks[11], HIDDEN, NUM_CLASSES)
    # NOTE: linear2 of the PyTorch module is unused in forward(); not instantiated.

    # -- weight slab (MXU operands): [emb_w, c1w1, c1w2, c2w1, c2w2, c3w1, c3w2] --
    wslab = jnp.stack([emb_w] + [w for (w1, _, w2, _) in conv for w in (w1, w2)]
                      ).astype(_MM_DTYPE)                                    # (7, 128, 128)

    # -- vector slab: row 0 = emb_b; per block i: [b1, b2, ln_g, ln_b, pool_w] --
    vrows = [emb_b]
    for i in range(3):
        _, b1, _, b2 = conv[i]
        vrows += [b1, b2, jnp.ones((HIDDEN,), jnp.float32),
                  jnp.zeros((HIDDEN,), jnp.float32), pool_w[i]]
    vslab = jnp.stack(vrows).astype(jnp.float32)                             # (16, 128)

    # -- head weight slab: [lin1_w (256,128) ; lin3_w padded to (128,128)] --
    l3w_pad = jnp.zeros((HIDDEN, HIDDEN), jnp.float32).at[:, :NUM_CLASSES].set(l3w)
    hw = jnp.concatenate([l1w, l3w_pad], axis=0).astype(_MM_DTYPE)           # (384, 128)

    # -- head vector slab: [ln4_g, ln4_b, lin1_b (padded), lin3_b (padded)] --
    hvec = jnp.stack([
        jnp.ones((2 * HIDDEN,), jnp.float32),
        jnp.zeros((2 * HIDDEN,), jnp.float32),
        jnp.concatenate([l1b, jnp.zeros((HIDDEN,), jnp.float32)]),
        jnp.concatenate([l3b, jnp.zeros((2 * HIDDEN - NUM_CLASSES,), jnp.float32)]),
    ]).astype(jnp.float32)                                                   # (4, 256)

    return {"wslab": wslab, "vslab": vslab, "hw": hw, "hvec": hvec}


# ----------------------------------------------------------------------------- main
if __name__ == "__main__":
    key = jax.random.PRNGKey(0)
    k_data, k_pert, k_params = jax.random.split(key, 3)

    data = jax.random.normal(k_data, (N_NODES, NUM_FEATURES), jnp.float32)
    perturb = jax.random.uniform(k_pert, (N_NODES, HIDDEN), jnp.float32, -DELTA, DELTA)
    params = init_params(k_params)

    fwd = jax.jit(gnn_forward)
    feature, predict, S = fwd(params, data, perturb)
    jax.block_until_ready((feature, predict, S))

    assert feature.shape == (1, HIDDEN)
    assert predict.shape == (1, NUM_CLASSES)
    assert S.shape == (1, NUM_CLASSES)
    assert bool(jnp.isfinite(feature).all())
    assert bool(jnp.isfinite(predict).all())
    assert bool(jnp.isfinite(S).all())
    print("KERNEL_OK")
</pallas_src>

<mosaic_0001>
module attributes {stable_mosaic.version = 11 : i64} {
  func.func @fused_gnn_kernel(%arg0: i32, %arg1: memref<64x128xf32, #tpu.memory_space<vmem>>, %arg2: memref<64x128xf32, #tpu.memory_space<vmem>>, %arg3: memref<7x128x128xf32, #tpu.memory_space<vmem>>, %arg4: memref<16x128xf32, #tpu.memory_space<vmem>>, %arg5: memref<384x128xf32, #tpu.memory_space<vmem>>, %arg6: memref<4x256xf32, #tpu.memory_space<vmem>>, %arg7: memref<1x256xf32, #tpu.memory_space<vmem>>) attributes {dimension_semantics = [#tpu.dimension_semantics<arbitrary>], iteration_bounds = array<i64: 1>, scalar_prefetch = 0 : i64, scratch_operands = 0 : i64, tpu.core_type = #tpu.core_type<tc>, window_params = [{pipeline_mode = #tpu.pipeline_mode<synchronous>, transform_indices = @transform_0, window_bounds = array<i64: 64, 128>}, {pipeline_mode = #tpu.pipeline_mode<synchronous>, transform_indices = @transform_1, window_bounds = array<i64: 64, 128>}, {pipeline_mode = #tpu.pipeline_mode<synchronous>, transform_indices = @transform_2, window_bounds = array<i64: 7, 128, 128>}, {pipeline_mode = #tpu.pipeline_mode<synchronous>, transform_indices = @transform_3, window_bounds = array<i64: 16, 128>}, {pipeline_mode = #tpu.pipeline_mode<synchronous>, transform_indices = @transform_4, window_bounds = array<i64: 384, 128>}, {pipeline_mode = #tpu.pipeline_mode<synchronous>, transform_indices = @transform_5, window_bounds = array<i64: 4, 256>}, {pipeline_mode = #tpu.pipeline_mode<synchronous>, transform_indices = @transform_6, window_bounds = array<i64: 1, 256>}]} {
    %c0 = arith.constant 0 : index
    %c0_0 = arith.constant 0 : index
    %0 = vector.load %arg4[%c0, %c0_0] : memref<16x128xf32, #tpu.memory_space<vmem>>, vector<16x128xf32>
    %c0_1 = arith.constant 0 : index
    %c0_2 = arith.constant 0 : index
    %1 = vector.load %arg6[%c0_1, %c0_2] : memref<4x256xf32, #tpu.memory_space<vmem>>, vector<4x256xf32>
    %2 = tpu.iota {dimensions = array<i32: 0>} : vector<64x64xi32>
    %3 = tpu.iota {dimensions = array<i32: 1>} : vector<64x64xi32>
    %c0_3 = arith.constant 0 : index
    %c0_4 = arith.constant 0 : index
    %4 = vector.load %arg1[%c0_3, %c0_4] : memref<64x128xf32, #tpu.memory_space<vmem>>, vector<64x128xf32>
    %5 = tpu.transpose %4, [1, 0] : vector<64x128xf32> -> vector<128x64xf32>
    %cst = arith.constant dense<0.000000e+00> : vector<64x64xf32>
    %6 = tpu.matmul %4, %5, %cst {dimension_numbers = #tpu.dot_dimension_numbers<[1], [0], [0], [1], [0, 0, 1, 1], [], []>} : vector<64x128xf32>, vector<128x64xf32>, vector<64x64xf32> -> vector<64x64xf32>
    %7 = arith.mulf %4, %4 : vector<64x128xf32>
    %cst_5 = arith.constant dense<0.000000e+00> : vector<64xf32>
    %8 = vector.multi_reduction <add>, %7, %cst_5 [1] : vector<64x128xf32> to vector<64xf32>
    %9 = vector.shape_cast %8 : vector<64xf32> to vector<64x1xf32>
    %10 = tpu.transpose %9, [1, 0] : vector<64x1xf32> -> vector<1x64xf32>
    %11 = vector.broadcast %9 : vector<64x1xf32> to vector<64x64xf32>
    %12 = vector.broadcast %10 : vector<1x64xf32> to vector<64x64xf32>
    %13 = arith.addf %11, %12 : vector<64x64xf32>
    %cst_6 = arith.constant 2.000000e+00 : f32
    %14 = vector.broadcast %cst_6 : f32 to vector<64x64xf32>
    %15 = arith.mulf %14, %6 : vector<64x64xf32>
    %16 = arith.subf %13, %15 : vector<64x64xf32>
    %17 = arith.cmpi eq, %2, %3 : vector<64x64xi32>
    %cst_7 = arith.constant 1.000000e+30 : f32
    %18 = vector.broadcast %cst_7 : f32 to vector<64x64xf32>
    %19 = arith.select %17, %18, %16 : vector<64x64xi1>, vector<64x64xf32>
    %cst_8 = arith.constant 0.000000e+00 : f32
    %20 = vector.broadcast %cst_8 : f32 to vector<64x64xf32>
    %cst_9 = arith.constant dense<0x7F800000> : vector<64xf32>
    %21 = vector.multi_reduction <minimumf>, %19, %cst_9 [1] : vector<64x64xf32> to vector<64xf32>
    %22 = vector.shape_cast %21 : vector<64xf32> to vector<64x1xf32>
    %23 = vector.broadcast %22 : vector<64x1xf32> to vector<64x64xf32>
    %24 = arith.cmpf ole, %19, %23 : vector<64x64xf32>
    %c64_i32 = arith.constant 64 : i32
    %25 = vector.broadcast %c64_i32 : i32 to vector<64x64xi32>
    %26 = arith.select %24, %3, %25 : vector<64x64xi1>, vector<64x64xi32>
    %cst_10 = arith.constant dense<2147483647> : vector<64xi32>
    %27 = vector.multi_reduction <minsi>, %26, %cst_10 [1] : vector<64x64xi32> to vector<64xi32>
    %28 = vector.shape_cast %27 : vector<64xi32> to vector<64x1xi32>
    %29 = vector.broadcast %28 : vector<64x1xi32> to vector<64x64xi32>
    %30 = arith.cmpi eq, %3, %29 : vector<64x64xi32>
    %31 = arith.extui %30 : vector<64x64xi1> to vector<64x64xi32>
    %32 = arith.sitofp %31 : vector<64x64xi32> to vector<64x64xf32>
    %33 = arith.addf %20, %32 : vector<64x64xf32>
    %cst_11 = arith.constant 1.000000e+30 : f32
    %34 = vector.broadcast %cst_11 : f32 to vector<64x64xf32>
    %35 = arith.mulf %32, %34 : vector<64x64xf32>
    %36 = arith.addf %19, %35 : vector<64x64xf32>
    %cst_12 = arith.constant dense<0x7F800000> : vector<64xf32>
    %37 = vector.multi_reduction <minimumf>, %36, %cst_12 [1] : vector<64x64xf32> to vector<64xf32>
    %38 = vector.shape_cast %37 : vector<64xf32> to vector<64x1xf32>
    %39 = vector.broadcast %38 : vector<64x1xf32> to vector<64x64xf32>
    %40 = arith.cmpf ole, %36, %39 : vector<64x64xf32>
    %c64_i32_13 = arith.constant 64 : i32
    %41 = vector.broadcast %c64_i32_13 : i32 to vector<64x64xi32>
    %42 = arith.select %40, %3, %41 : vector<64x64xi1>, vector<64x64xi32>
    %cst_14 = arith.constant dense<2147483647> : vector<64xi32>
    %43 = vector.multi_reduction <minsi>, %42, %cst_14 [1] : vector<64x64xi32> to vector<64xi32>
    %44 = vector.shape_cast %43 : vector<64xi32> to vector<64x1xi32>
    %45 = vector.broadcast %44 : vector<64x1xi32> to vector<64x64xi32>
    %46 = arith.cmpi eq, %3, %45 : vector<64x64xi32>
    %47 = arith.extui %46 : vector<64x64xi1> to vector<64x64xi32>
    %48 = arith.sitofp %47 : vector<64x64xi32> to vector<64x64xf32>
    %49 = arith.addf %33, %48 : vector<64x64xf32>
    %cst_15 = arith.constant 1.000000e+30 : f32
    %50 = vector.broadcast %cst_15 : f32 to vector<64x64xf32>
    %51 = arith.mulf %48, %50 : vector<64x64xf32>
    %52 = arith.addf %36, %51 : vector<64x64xf32>
    %cst_16 = arith.constant dense<0x7F800000> : vector<64xf32>
    %53 = vector.multi_reduction <minimumf>, %52, %cst_16 [1] : vector<64x64xf32> to vector<64xf32>
    %54 = vector.shape_cast %53 : vector<64xf32> to vector<64x1xf32>
    %55 = vector.broadcast %54 : vector<64x1xf32> to vector<64x64xf32>
    %56 = arith.cmpf ole, %52, %55 : vector<64x64xf32>
    %c64_i32_17 = arith.constant 64 : i32
    %57 = vector.broadcast %c64_i32_17 : i32 to vector<64x64xi32>
    %58 = arith.select %56, %3, %57 : vector<64x64xi1>, vector<64x64xi32>
    %cst_18 = arith.constant dense<2147483647> : vector<64xi32>
    %59 = vector.multi_reduction <minsi>, %58, %cst_18 [1] : vector<64x64xi32> to vector<64xi32>
    %60 = vector.shape_cast %59 : vector<64xi32> to vector<64x1xi32>
    %61 = vector.broadcast %60 : vector<64x1xi32> to vector<64x64xi32>
    %62 = arith.cmpi eq, %3, %61 : vector<64x64xi32>
    %63 = arith.extui %62 : vector<64x64xi1> to vector<64x64xi32>
    %64 = arith.sitofp %63 : vector<64x64xi32> to vector<64x64xf32>
    %65 = arith.addf %49, %64 : vector<64x64xf32>
    %cst_19 = arith.constant 1.000000e+30 : f32
    %66 = vector.broadcast %cst_19 : f32 to vector<64x64xf32>
    %67 = arith.mulf %64, %66 : vector<64x64xf32>
    %68 = arith.addf %52, %67 : vector<64x64xf32>
    %cst_20 = arith.constant dense<0x7F800000> : vector<64xf32>
    %69 = vector.multi_reduction <minimumf>, %68, %cst_20 [1] : vector<64x64xf32> to vector<64xf32>
    %70 = vector.shape_cast %69 : vector<64xf32> to vector<64x1xf32>
    %71 = vector.broadcast %70 : vector<64x1xf32> to vector<64x64xf32>
    %72 = arith.cmpf ole, %68, %71 : vector<64x64xf32>
    %c64_i32_21 = arith.constant 64 : i32
    %73 = vector.broadcast %c64_i32_21 : i32 to vector<64x64xi32>
    %74 = arith.select %72, %3, %73 : vector<64x64xi1>, vector<64x64xi32>
    %cst_22 = arith.constant dense<2147483647> : vector<64xi32>
    %75 = vector.multi_reduction <minsi>, %74, %cst_22 [1] : vector<64x64xi32> to vector<64xi32>
    %76 = vector.shape_cast %75 : vector<64xi32> to vector<64x1xi32>
    %77 = vector.broadcast %76 : vector<64x1xi32> to vector<64x64xi32>
    %78 = arith.cmpi eq, %3, %77 : vector<64x64xi32>
    %79 = arith.extui %78 : vector<64x64xi1> to vector<64x64xi32>
    %80 = arith.sitofp %79 : vector<64x64xi32> to vector<64x64xf32>
    %81 = arith.addf %65, %80 : vector<64x64xf32>
    %cst_23 = arith.constant 1.000000e+30 : f32
    %82 = vector.broadcast %cst_23 : f32 to vector<64x64xf32>
    %83 = arith.mulf %80, %82 : vector<64x64xf32>
    %84 = arith.addf %68, %83 : vector<64x64xf32>
    %cst_24 = arith.constant dense<0x7F800000> : vector<64xf32>
    %85 = vector.multi_reduction <minimumf>, %84, %cst_24 [1] : vector<64x64xf32> to vector<64xf32>
    %86 = vector.shape_cast %85 : vector<64xf32> to vector<64x1xf32>
    %87 = vector.broadcast %86 : vector<64x1xf32> to vector<64x64xf32>
    %88 = arith.cmpf ole, %84, %87 : vector<64x64xf32>
    %c64_i32_25 = arith.constant 64 : i32
    %89 = vector.broadcast %c64_i32_25 : i32 to vector<64x64xi32>
    %90 = arith.select %88, %3, %89 : vector<64x64xi1>, vector<64x64xi32>
    %cst_26 = arith.constant dense<2147483647> : vector<64xi32>
    %91 = vector.multi_reduction <minsi>, %90, %cst_26 [1] : vector<64x64xi32> to vector<64xi32>
    %92 = vector.shape_cast %91 : vector<64xi32> to vector<64x1xi32>
    %93 = vector.broadcast %92 : vector<64x1xi32> to vector<64x64xi32>
    %94 = arith.cmpi eq, %3, %93 : vector<64x64xi32>
    %95 = arith.extui %94 : vector<64x64xi1> to vector<64x64xi32>
    %96 = arith.sitofp %95 : vector<64x64xi32> to vector<64x64xf32>
    %97 = arith.addf %81, %96 : vector<64x64xf32>
    %cst_27 = arith.constant 1.000000e+30 : f32
    %98 = vector.broadcast %cst_27 : f32 to vector<64x64xf32>
    %99 = arith.mulf %96, %98 : vector<64x64xf32>
    %100 = arith.addf %84, %99 : vector<64x64xf32>
    %cst_28 = arith.constant dense<0x7F800000> : vector<64xf32>
    %101 = vector.multi_reduction <minimumf>, %100, %cst_28 [1] : vector<64x64xf32> to vector<64xf32>
    %102 = vector.shape_cast %101 : vector<64xf32> to vector<64x1xf32>
    %103 = vector.broadcast %102 : vector<64x1xf32> to vector<64x64xf32>
    %104 = arith.cmpf ole, %100, %103 : vector<64x64xf32>
    %c64_i32_29 = arith.constant 64 : i32
    %105 = vector.broadcast %c64_i32_29 : i32 to vector<64x64xi32>
    %106 = arith.select %104, %3, %105 : vector<64x64xi1>, vector<64x64xi32>
    %cst_30 = arith.constant dense<2147483647> : vector<64xi32>
    %107 = vector.multi_reduction <minsi>, %106, %cst_30 [1] : vector<64x64xi32> to vector<64xi32>
    %108 = vector.shape_cast %107 : vector<64xi32> to vector<64x1xi32>
    %109 = vector.broadcast %108 : vector<64x1xi32> to vector<64x64xi32>
    %110 = arith.cmpi eq, %3, %109 : vector<64x64xi32>
    %111 = arith.extui %110 : vector<64x64xi1> to vector<64x64xi32>
    %112 = arith.sitofp %111 : vector<64x64xi32> to vector<64x64xf32>
    %113 = arith.addf %97, %112 : vector<64x64xf32>
    %cst_31 = arith.constant 1.000000e+30 : f32
    %114 = vector.broadcast %cst_31 : f32 to vector<64x64xf32>
    %115 = arith.mulf %112, %114 : vector<64x64xf32>
    %116 = arith.addf %100, %115 : vector<64x64xf32>
    %cst_32 = arith.constant dense<0x7F800000> : vector<64xf32>
    %117 = vector.multi_reduction <minimumf>, %116, %cst_32 [1] : vector<64x64xf32> to vector<64xf32>
    %118 = vector.shape_cast %117 : vector<64xf32> to vector<64x1xf32>
    %119 = vector.broadcast %118 : vector<64x1xf32> to vector<64x64xf32>
    %120 = arith.cmpf ole, %116, %119 : vector<64x64xf32>
    %c64_i32_33 = arith.constant 64 : i32
    %121 = vector.broadcast %c64_i32_33 : i32 to vector<64x64xi32>
    %122 = arith.select %120, %3, %121 : vector<64x64xi1>, vector<64x64xi32>
    %cst_34 = arith.constant dense<2147483647> : vector<64xi32>
    %123 = vector.multi_reduction <minsi>, %122, %cst_34 [1] : vector<64x64xi32> to vector<64xi32>
    %124 = vector.shape_cast %123 : vector<64xi32> to vector<64x1xi32>
    %125 = vector.broadcast %124 : vector<64x1xi32> to vector<64x64xi32>
    %126 = arith.cmpi eq, %3, %125 : vector<64x64xi32>
    %127 = arith.extui %126 : vector<64x64xi1> to vector<64x64xi32>
    %128 = arith.sitofp %127 : vector<64x64xi32> to vector<64x64xf32>
    %129 = arith.addf %113, %128 : vector<64x64xf32>
    %cst_35 = arith.constant 1.000000e+30 : f32
    %130 = vector.broadcast %cst_35 : f32 to vector<64x64xf32>
    %131 = arith.mulf %128, %130 : vector<64x64xf32>
    %132 = arith.addf %116, %131 : vector<64x64xf32>
    %cst_36 = arith.constant dense<0x7F800000> : vector<64xf32>
    %133 = vector.multi_reduction <minimumf>, %132, %cst_36 [1] : vector<64x64xf32> to vector<64xf32>
    %134 = vector.shape_cast %133 : vector<64xf32> to vector<64x1xf32>
    %135 = vector.broadcast %134 : vector<64x1xf32> to vector<64x64xf32>
    %136 = arith.cmpf ole, %132, %135 : vector<64x64xf32>
    %c64_i32_37 = arith.constant 64 : i32
    %137 = vector.broadcast %c64_i32_37 : i32 to vector<64x64xi32>
    %138 = arith.select %136, %3, %137 : vector<64x64xi1>, vector<64x64xi32>
    %cst_38 = arith.constant dense<2147483647> : vector<64xi32>
    %139 = vector.multi_reduction <minsi>, %138, %cst_38 [1] : vector<64x64xi32> to vector<64xi32>
    %140 = vector.shape_cast %139 : vector<64xi32> to vector<64x1xi32>
    %141 = vector.broadcast %140 : vector<64x1xi32> to vector<64x64xi32>
    %142 = arith.cmpi eq, %3, %141 : vector<64x64xi32>
    %143 = arith.extui %142 : vector<64x64xi1> to vector<64x64xi32>
    %144 = arith.sitofp %143 : vector<64x64xi32> to vector<64x64xf32>
    %145 = arith.addf %129, %144 : vector<64x64xf32>
    %146 = tpu.transpose %145, [1, 0] : vector<64x64xf32> -> vector<64x64xf32>
    %c0_39 = arith.constant 0 : index
    %c0_40 = arith.constant 0 : index
    %c0_41 = arith.constant 0 : index
    %147 = vector.load %arg3[%c0_39, %c0_40, %c0_41] : memref<7x128x128xf32, #tpu.memory_space<vmem>>, vector<1x128x128xf32>
    %148 = vector.shape_cast %147 : vector<1x128x128xf32> to vector<128x128xf32>
    %cst_42 = arith.constant dense<0.000000e+00> : vector<64x128xf32>
    %149 = tpu.matmul %4, %148, %cst_42 {dimension_numbers = #tpu.dot_dimension_numbers<[1], [0], [0], [1], [0, 0, 1, 1], [], []>} : vector<64x128xf32>, vector<128x128xf32>, vector<64x128xf32> -> vector<64x128xf32>
    %150 = vector.extract_strided_slice %0 {offsets = [0, 0], sizes = [1, 128], strides = [1, 1]} : vector<16x128xf32> to vector<1x128xf32>
    %151 = vector.broadcast %150 : vector<1x128xf32> to vector<64x128xf32>
    %152 = arith.addf %149, %151 : vector<64x128xf32>
    %cst_43 = arith.constant 1.000000e+00 : f32
    %153 = vector.broadcast %cst_43 : f32 to vector<64x1xf32>
    %c1 = arith.constant 1 : index
    %c0_44 = arith.constant 0 : index
    %c0_45 = arith.constant 0 : index
    %154 = vector.load %arg3[%c1, %c0_44, %c0_45] : memref<7x128x128xf32, #tpu.memory_space<vmem>>, vector<1x128x128xf32>
    %155 = vector.shape_cast %154 : vector<1x128x128xf32> to vector<128x128xf32>
    %c2 = arith.constant 2 : index
    %c0_46 = arith.constant 0 : index
    %c0_47 = arith.constant 0 : index
    %156 = vector.load %arg3[%c2, %c0_46, %c0_47] : memref<7x128x128xf32, #tpu.memory_space<vmem>>, vector<1x128x128xf32>
    %157 = vector.shape_cast %156 : vector<1x128x128xf32> to vector<128x128xf32>
    %158 = vector.extract_strided_slice %0 {offsets = [1, 0], sizes = [1, 128], strides = [1, 1]} : vector<16x128xf32> to vector<1x128xf32>
    %159 = vector.extract_strided_slice %0 {offsets = [2, 0], sizes = [1, 128], strides = [1, 1]} : vector<16x128xf32> to vector<1x128xf32>
    %160 = vector.extract_strided_slice %0 {offsets = [3, 0], sizes = [1, 128], strides = [1, 1]} : vector<16x128xf32> to vector<1x128xf32>
    %161 = vector.extract_strided_slice %0 {offsets = [4, 0], sizes = [1, 128], strides = [1, 1]} : vector<16x128xf32> to vector<1x128xf32>
    %c0_48 = arith.constant 0 : index
    %c0_49 = arith.constant 0 : index
    %162 = vector.load %arg2[%c0_48, %c0_49] : memref<64x128xf32, #tpu.memory_space<vmem>>, vector<64x128xf32>
    %cst_50 = arith.constant dense<0.000000e+00> : vector<64x128xf32>
    %163 = tpu.matmul %146, %152, %cst_50 {dimension_numbers = #tpu.dot_dimension_numbers<[1], [0], [0], [1], [0, 0, 1, 1], [], []>} : vector<64x64xf32>, vector<64x128xf32>, vector<64x128xf32> -> vector<64x128xf32>
    %164 = arith.addf %152, %163 : vector<64x128xf32>
    %cst_51 = arith.constant dense<0.000000e+00> : vector<64x128xf32>
    %165 = tpu.matmul %164, %155, %cst_51 {dimension_numbers = #tpu.dot_dimension_numbers<[1], [0], [0], [1], [0, 0, 1, 1], [], []>} : vector<64x128xf32>, vector<128x128xf32>, vector<64x128xf32> -> vector<64x128xf32>
    %166 = vector.broadcast %158 : vector<1x128xf32> to vector<64x128xf32>
    %167 = arith.addf %165, %166 : vector<64x128xf32>
    %cst_52 = arith.constant 0.000000e+00 : f32
    %168 = vector.broadcast %cst_52 : f32 to vector<64x128xf32>
    %169 = arith.maximumf %167, %168 : vector<64x128xf32>
    %cst_53 = arith.constant dense<0.000000e+00> : vector<64x128xf32>
    %170 = tpu.matmul %169, %157, %cst_53 {dimension_numbers = #tpu.dot_dimension_numbers<[1], [0], [0], [1], [0, 0, 1, 1], [], []>} : vector<64x128xf32>, vector<128x128xf32>, vector<64x128xf32> -> vector<64x128xf32>
    %171 = vector.broadcast %159 : vector<1x128xf32> to vector<64x128xf32>
    %172 = arith.addf %170, %171 : vector<64x128xf32>
    %cst_54 = arith.constant dense<0.000000e+00> : vector<64xf32>
    %173 = vector.multi_reduction <add>, %172, %cst_54 [1] : vector<64x128xf32> to vector<64xf32>
    %174 = vector.shape_cast %173 : vector<64xf32> to vector<64x1xf32>
    %cst_55 = arith.constant 1.280000e+02 : f32
    %175 = vector.broadcast %cst_55 : f32 to vector<64x1xf32>
    %176 = arith.divf %174, %175 : vector<64x1xf32>
    %177 = vector.broadcast %176 : vector<64x1xf32> to vector<64x128xf32>
    %178 = arith.subf %172, %177 : vector<64x128xf32>
    %179 = arith.mulf %178, %178 : vector<64x128xf32>
    %cst_56 = arith.constant dense<0.000000e+00> : vector<64xf32>
    %180 = vector.multi_reduction <add>, %179, %cst_56 [1] : vector<64x128xf32> to vector<64xf32>
    %181 = vector.shape_cast %180 : vector<64xf32> to vector<64x1xf32>
    %cst_57 = arith.constant 1.280000e+02 : f32
    %182 = vector.broadcast %cst_57 : f32 to vector<64x1xf32>
    %183 = arith.divf %181, %182 : vector<64x1xf32>
    %184 = vector.broadcast %176 : vector<64x1xf32> to vector<64x128xf32>
    %185 = arith.subf %172, %184 : vector<64x128xf32>
    %cst_58 = arith.constant 9.99999974E-6 : f32
    %186 = vector.broadcast %cst_58 : f32 to vector<64x1xf32>
    %187 = arith.addf %183, %186 : vector<64x1xf32>
    %188 = math.rsqrt %187 : vector<64x1xf32>
    %189 = vector.broadcast %188 : vector<64x1xf32> to vector<64x128xf32>
    %190 = arith.mulf %185, %189 : vector<64x128xf32>
    %191 = vector.broadcast %160 : vector<1x128xf32> to vector<64x128xf32>
    %192 = arith.mulf %190, %191 : vector<64x128xf32>
    %193 = vector.broadcast %161 : vector<1x128xf32> to vector<64x128xf32>
    %194 = arith.addf %192, %193 : vector<64x128xf32>
    %195 = arith.addf %194, %162 : vector<64x128xf32>
    %cst_59 = arith.constant 0.000000e+00 : f32
    %196 = vector.broadcast %cst_59 : f32 to vector<64x128xf32>
    %197 = arith.cmpf ogt, %195, %196 : vector<64x128xf32>
    %cst_60 = arith.constant 1.000000e-01 : f32
    %198 = vector.broadcast %cst_60 : f32 to vector<64x128xf32>
    %199 = arith.mulf %198, %195 : vector<64x128xf32>
    %200 = arith.select %197, %195, %199 : vector<64x128xi1>, vector<64x128xf32>
    %201 = vector.extract_strided_slice %0 {offsets = [5, 0], sizes = [1, 128], strides = [1, 1]} : vector<16x128xf32> to vector<1x128xf32>
    %202 = arith.mulf %201, %201 : vector<1x128xf32>
    %cst_61 = arith.constant dense<0.000000e+00> : vector<1xf32>
    %203 = vector.multi_reduction <add>, %202, %cst_61 [1] : vector<1x128xf32> to vector<1xf32>
    %204 = vector.shape_cast %203 : vector<1xf32> to vector<1x1xf32>
    %205 = math.rsqrt %204 : vector<1x1xf32>
    %206 = vector.broadcast %201 : vector<1x128xf32> to vector<64x128xf32>
    %207 = arith.mulf %200, %206 : vector<64x128xf32>
    %cst_62 = arith.constant dense<0.000000e+00> : vector<64xf32>
    %208 = vector.multi_reduction <add>, %207, %cst_62 [1] : vector<64x128xf32> to vector<64xf32>
    %209 = vector.shape_cast %208 : vector<64xf32> to vector<64x1xf32>
    %210 = vector.broadcast %205 : vector<1x1xf32> to vector<64x1xf32>
    %211 = arith.mulf %209, %210 : vector<64x1xf32>
    %212 = math.tanh %211 : vector<64x1xf32>
    %cst_63 = arith.constant 5.000000e-01 : f32
    %213 = vector.broadcast %cst_63 : f32 to vector<64x1xf32>
    %214 = arith.cmpf ogt, %153, %213 : vector<64x1xf32>
    %cst_64 = arith.constant -1.000000e+30 : f32
    %215 = vector.broadcast %cst_64 : f32 to vector<64x1xf32>
    %216 = arith.select %214, %212, %215 : vector<64x1xi1>, vector<64x1xf32>
    %217 = tpu.transpose %216, [1, 0] : vector<64x1xf32> -> vector<1x64xf32>
    %218 = vector.broadcast %217 : vector<1x64xf32> to vector<64x64xf32>
    %219 = vector.broadcast %216 : vector<64x1xf32> to vector<64x64xf32>
    %220 = arith.cmpf ogt, %218, %219 : vector<64x64xf32>
    %221 = arith.extui %220 : vector<64x64xi1> to vector<64x64xi32>
    %222 = arith.sitofp %221 : vector<64x64xi32> to vector<64x64xf32>
    %223 = vector.broadcast %217 : vector<1x64xf32> to vector<64x64xf32>
    %224 = vector.broadcast %216 : vector<64x1xf32> to vector<64x64xf32>
    %225 = arith.cmpf oeq, %223, %224 : vector<64x64xf32>
    %226 = arith.cmpi slt, %3, %2 : vector<64x64xi32>
    %227 = arith.andi %225, %226 : vector<64x64xi1>
    %228 = arith.extui %227 : vector<64x64xi1> to vector<64x64xi32>
    %229 = arith.sitofp %228 : vector<64x64xi32> to vector<64x64xf32>
    %230 = arith.addf %222, %229 : vector<64x64xf32>
    %cst_65 = arith.constant dense<0.000000e+00> : vector<64xf32>
    %231 = vector.multi_reduction <add>, %230, %cst_65 [1] : vector<64x64xf32> to vector<64xf32>
    %232 = vector.shape_cast %231 : vector<64xf32> to vector<64x1xf32>
    %cst_66 = arith.constant 3.200000e+01 : f32
    %233 = vector.broadcast %cst_66 : f32 to vector<64x1xf32>
    %234 = arith.cmpf olt, %232, %233 : vector<64x1xf32>
    %235 = arith.extui %234 : vector<64x1xi1> to vector<64x1xi32>
    %236 = arith.sitofp %235 : vector<64x1xi32> to vector<64x1xf32>
    %237 = arith.mulf %153, %236 : vector<64x1xf32>
    %238 = arith.mulf %237, %212 : vector<64x1xf32>
    %239 = vector.broadcast %238 : vector<64x1xf32> to vector<64x128xf32>
    %240 = arith.mulf %200, %239 : vector<64x128xf32>
    %cst_67 = arith.constant 5.000000e-01 : f32
    %241 = vector.broadcast %cst_67 : f32 to vector<64x1xf32>
    %242 = arith.cmpf ogt, %237, %241 : vector<64x1xf32>
    %cst_68 = arith.constant -1.000000e+30 : f32
    %243 = vector.shape_cast %242 : vector<64x1xi1> to vector<64x1xi1>
    %244 = vector.broadcast %243 : vector<64x1xi1> to vector<64x128xi1>
    %245 = vector.broadcast %cst_68 : f32 to vector<64x128xf32>
    %246 = arith.select %244, %240, %245 : vector<64x128xi1>, vector<64x128xf32>
    %cst_69 = arith.constant dense<0xFF800000> : vector<128xf32>
    %247 = vector.multi_reduction <maximumf>, %246, %cst_69 [0] : vector<64x128xf32> to vector<128xf32>
    %248 = vector.shape_cast %247 : vector<128xf32> to vector<1x128xf32>
    %cst_70 = arith.constant dense<0.000000e+00> : vector<128xf32>
    %249 = vector.multi_reduction <add>, %240, %cst_70 [0] : vector<64x128xf32> to vector<128xf32>
    %250 = vector.shape_cast %249 : vector<128xf32> to vector<1x128xf32>
    %cst_71 = arith.constant 3.125000e-02 : f32
    %251 = vector.broadcast %cst_71 : f32 to vector<1x128xf32>
    %252 = arith.mulf %250, %251 : vector<1x128xf32>
    %253 = tpu.concatenate %248, %252 in 1 : vector<1x128xf32>, vector<1x128xf32> -> vector<1x256xf32>
    %c3 = arith.constant 3 : index
    %c0_72 = arith.constant 0 : index
    %c0_73 = arith.constant 0 : index
    %254 = vector.load %arg3[%c3, %c0_72, %c0_73] : memref<7x128x128xf32, #tpu.memory_space<vmem>>, vector<1x128x128xf32>
    %255 = vector.shape_cast %254 : vector<1x128x128xf32> to vector<128x128xf32>
    %c4 = arith.constant 4 : index
    %c0_74 = arith.constant 0 : index
    %c0_75 = arith.constant 0 : index
    %256 = vector.load %arg3[%c4, %c0_74, %c0_75] : memref<7x128x128xf32, #tpu.memory_space<vmem>>, vector<1x128x128xf32>
    %257 = vector.shape_cast %256 : vector<1x128x128xf32> to vector<128x128xf32>
    %258 = vector.extract_strided_slice %0 {offsets = [6, 0], sizes = [1, 128], strides = [1, 1]} : vector<16x128xf32> to vector<1x128xf32>
    %259 = vector.extract_strided_slice %0 {offsets = [7, 0], sizes = [1, 128], strides = [1, 1]} : vector<16x128xf32> to vector<1x128xf32>
    %260 = vector.extract_strided_slice %0 {offsets = [8, 0], sizes = [1, 128], strides = [1, 1]} : vector<16x128xf32> to vector<1x128xf32>
    %261 = vector.extract_strided_slice %0 {offsets = [9, 0], sizes = [1, 128], strides = [1, 1]} : vector<16x128xf32> to vector<1x128xf32>
    %cst_76 = arith.constant dense<0.000000e+00> : vector<64x128xf32>
    %262 = tpu.matmul %146, %240, %cst_76 {dimension_numbers = #tpu.dot_dimension_numbers<[1], [0], [0], [1], [0, 0, 1, 1], [], []>} : vector<64x64xf32>, vector<64x128xf32>, vector<64x128xf32> -> vector<64x128xf32>
    %263 = arith.addf %240, %262 : vector<64x128xf32>
    %cst_77 = arith.constant dense<0.000000e+00> : vector<64x128xf32>
    %264 = tpu.matmul %263, %255, %cst_77 {dimension_numbers = #tpu.dot_dimension_numbers<[1], [0], [0], [1], [0, 0, 1, 1], [], []>} : vector<64x128xf32>, vector<128x128xf32>, vector<64x128xf32> -> vector<64x128xf32>
    %265 = vector.broadcast %258 : vector<1x128xf32> to vector<64x128xf32>
    %266 = arith.addf %264, %265 : vector<64x128xf32>
    %cst_78 = arith.constant 0.000000e+00 : f32
    %267 = vector.broadcast %cst_78 : f32 to vector<64x128xf32>
    %268 = arith.maximumf %266, %267 : vector<64x128xf32>
    %cst_79 = arith.constant dense<0.000000e+00> : vector<64x128xf32>
    %269 = tpu.matmul %268, %257, %cst_79 {dimension_numbers = #tpu.dot_dimension_numbers<[1], [0], [0], [1], [0, 0, 1, 1], [], []>} : vector<64x128xf32>, vector<128x128xf32>, vector<64x128xf32> -> vector<64x128xf32>
    %270 = vector.broadcast %259 : vector<1x128xf32> to vector<64x128xf32>
    %271 = arith.addf %269, %270 : vector<64x128xf32>
    %cst_80 = arith.constant dense<0.000000e+00> : vector<64xf32>
    %272 = vector.multi_reduction <add>, %271, %cst_80 [1] : vector<64x128xf32> to vector<64xf32>
    %273 = vector.shape_cast %272 : vector<64xf32> to vector<64x1xf32>
    %cst_81 = arith.constant 1.280000e+02 : f32
    %274 = vector.broadcast %cst_81 : f32 to vector<64x1xf32>
    %275 = arith.divf %273, %274 : vector<64x1xf32>
    %276 = vector.broadcast %275 : vector<64x1xf32> to vector<64x128xf32>
    %277 = arith.subf %271, %276 : vector<64x128xf32>
    %278 = arith.mulf %277, %277 : vector<64x128xf32>
    %cst_82 = arith.constant dense<0.000000e+00> : vector<64xf32>
    %279 = vector.multi_reduction <add>, %278, %cst_82 [1] : vector<64x128xf32> to vector<64xf32>
    %280 = vector.shape_cast %279 : vector<64xf32> to vector<64x1xf32>
    %cst_83 = arith.constant 1.280000e+02 : f32
    %281 = vector.broadcast %cst_83 : f32 to vector<64x1xf32>
    %282 = arith.divf %280, %281 : vector<64x1xf32>
    %283 = vector.broadcast %275 : vector<64x1xf32> to vector<64x128xf32>
    %284 = arith.subf %271, %283 : vector<64x128xf32>
    %cst_84 = arith.constant 9.99999974E-6 : f32
    %285 = vector.broadcast %cst_84 : f32 to vector<64x1xf32>
    %286 = arith.addf %282, %285 : vector<64x1xf32>
    %287 = math.rsqrt %286 : vector<64x1xf32>
    %288 = vector.broadcast %287 : vector<64x1xf32> to vector<64x128xf32>
    %289 = arith.mulf %284, %288 : vector<64x128xf32>
    %290 = vector.broadcast %260 : vector<1x128xf32> to vector<64x128xf32>
    %291 = arith.mulf %289, %290 : vector<64x128xf32>
    %292 = vector.broadcast %261 : vector<1x128xf32> to vector<64x128xf32>
    %293 = arith.addf %291, %292 : vector<64x128xf32>
    %cst_85 = arith.constant 0.000000e+00 : f32
    %294 = vector.broadcast %cst_85 : f32 to vector<64x128xf32>
    %295 = arith.cmpf ogt, %293, %294 : vector<64x128xf32>
    %cst_86 = arith.constant 1.000000e-01 : f32
    %296 = vector.broadcast %cst_86 : f32 to vector<64x128xf32>
    %297 = arith.mulf %296, %293 : vector<64x128xf32>
    %298 = arith.select %295, %293, %297 : vector<64x128xi1>, vector<64x128xf32>
    %299 = vector.extract_strided_slice %0 {offsets = [10, 0], sizes = [1, 128], strides = [1, 1]} : vector<16x128xf32> to vector<1x128xf32>
    %300 = arith.mulf %299, %299 : vector<1x128xf32>
    %cst_87 = arith.constant dense<0.000000e+00> : vector<1xf32>
    %301 = vector.multi_reduction <add>, %300, %cst_87 [1] : vector<1x128xf32> to vector<1xf32>
    %302 = vector.shape_cast %301 : vector<1xf32> to vector<1x1xf32>
    %303 = math.rsqrt %302 : vector<1x1xf32>
    %304 = vector.broadcast %299 : vector<1x128xf32> to vector<64x128xf32>
    %305 = arith.mulf %298, %304 : vector<64x128xf32>
    %cst_88 = arith.constant dense<0.000000e+00> : vector<64xf32>
    %306 = vector.multi_reduction <add>, %305, %cst_88 [1] : vector<64x128xf32> to vector<64xf32>
    %307 = vector.shape_cast %306 : vector<64xf32> to vector<64x1xf32>
    %308 = vector.broadcast %303 : vector<1x1xf32> to vector<64x1xf32>
    %309 = arith.mulf %307, %308 : vector<64x1xf32>
    %310 = math.tanh %309 : vector<64x1xf32>
    %cst_89 = arith.constant 5.000000e-01 : f32
    %311 = vector.broadcast %cst_89 : f32 to vector<64x1xf32>
    %312 = arith.cmpf ogt, %237, %311 : vector<64x1xf32>
    %cst_90 = arith.constant -1.000000e+30 : f32
    %313 = vector.broadcast %cst_90 : f32 to vector<64x1xf32>
    %314 = arith.select %312, %310, %313 : vector<64x1xi1>, vector<64x1xf32>
    %315 = tpu.transpose %314, [1, 0] : vector<64x1xf32> -> vector<1x64xf32>
    %316 = vector.broadcast %315 : vector<1x64xf32> to vector<64x64xf32>
    %317 = vector.broadcast %314 : vector<64x1xf32> to vector<64x64xf32>
    %318 = arith.cmpf ogt, %316, %317 : vector<64x64xf32>
    %319 = arith.extui %318 : vector<64x64xi1> to vector<64x64xi32>
    %320 = arith.sitofp %319 : vector<64x64xi32> to vector<64x64xf32>
    %321 = vector.broadcast %315 : vector<1x64xf32> to vector<64x64xf32>
    %322 = vector.broadcast %314 : vector<64x1xf32> to vector<64x64xf32>
    %323 = arith.cmpf oeq, %321, %322 : vector<64x64xf32>
    %324 = arith.cmpi slt, %3, %2 : vector<64x64xi32>
    %325 = arith.andi %323, %324 : vector<64x64xi1>
    %326 = arith.extui %325 : vector<64x64xi1> to vector<64x64xi32>
    %327 = arith.sitofp %326 : vector<64x64xi32> to vector<64x64xf32>
    %328 = arith.addf %320, %327 : vector<64x64xf32>
    %cst_91 = arith.constant dense<0.000000e+00> : vector<64xf32>
    %329 = vector.multi_reduction <add>, %328, %cst_91 [1] : vector<64x64xf32> to vector<64xf32>
    %330 = vector.shape_cast %329 : vector<64xf32> to vector<64x1xf32>
    %cst_92 = arith.constant 1.600000e+01 : f32
    %331 = vector.broadcast %cst_92 : f32 to vector<64x1xf32>
    %332 = arith.cmpf olt, %330, %331 : vector<64x1xf32>
    %333 = arith.extui %332 : vector<64x1xi1> to vector<64x1xi32>
    %334 = arith.sitofp %333 : vector<64x1xi32> to vector<64x1xf32>
    %335 = arith.mulf %237, %334 : vector<64x1xf32>
    %336 = arith.mulf %335, %310 : vector<64x1xf32>
    %337 = vector.broadcast %336 : vector<64x1xf32> to vector<64x128xf32>
    %338 = arith.mulf %298, %337 : vector<64x128xf32>
    %cst_93 = arith.constant 5.000000e-01 : f32
    %339 = vector.broadcast %cst_93 : f32 to vector<64x1xf32>
    %340 = arith.cmpf ogt, %335, %339 : vector<64x1xf32>
    %cst_94 = arith.constant -1.000000e+30 : f32
    %341 = vector.shape_cast %340 : vector<64x1xi1> to vector<64x1xi1>
    %342 = vector.broadcast %341 : vector<64x1xi1> to vector<64x128xi1>
    %343 = vector.broadcast %cst_94 : f32 to vector<64x128xf32>
    %344 = arith.select %342, %338, %343 : vector<64x128xi1>, vector<64x128xf32>
    %cst_95 = arith.constant dense<0xFF800000> : vector<128xf32>
    %345 = vector.multi_reduction <maximumf>, %344, %cst_95 [0] : vector<64x128xf32> to vector<128xf32>
    %346 = vector.shape_cast %345 : vector<128xf32> to vector<1x128xf32>
    %cst_96 = arith.constant dense<0.000000e+00> : vector<128xf32>
    %347 = vector.multi_reduction <add>, %338, %cst_96 [0] : vector<64x128xf32> to vector<128xf32>
    %348 = vector.shape_cast %347 : vector<128xf32> to vector<1x128xf32>
    %cst_97 = arith.constant 6.250000e-02 : f32
    %349 = vector.broadcast %cst_97 : f32 to vector<1x128xf32>
    %350 = arith.mulf %348, %349 : vector<1x128xf32>
    %351 = tpu.concatenate %346, %350 in 1 : vector<1x128xf32>, vector<1x128xf32> -> vector<1x256xf32>
    %c5 = arith.constant 5 : index
    %c0_98 = arith.constant 0 : index
    %c0_99 = arith.constant 0 : index
    %352 = vector.load %arg3[%c5, %c0_98, %c0_99] : memref<7x128x128xf32, #tpu.memory_space<vmem>>, vector<1x128x128xf32>
    %353 = vector.shape_cast %352 : vector<1x128x128xf32> to vector<128x128xf32>
    %c6 = arith.constant 6 : index
    %c0_100 = arith.constant 0 : index
    %c0_101 = arith.constant 0 : index
    %354 = vector.load %arg3[%c6, %c0_100, %c0_101] : memref<7x128x128xf32, #tpu.memory_space<vmem>>, vector<1x128x128xf32>
    %355 = vector.shape_cast %354 : vector<1x128x128xf32> to vector<128x128xf32>
    %356 = vector.extract_strided_slice %0 {offsets = [11, 0], sizes = [1, 128], strides = [1, 1]} : vector<16x128xf32> to vector<1x128xf32>
    %357 = vector.extract_strided_slice %0 {offsets = [12, 0], sizes = [1, 128], strides = [1, 1]} : vector<16x128xf32> to vector<1x128xf32>
    %358 = vector.extract_strided_slice %0 {offsets = [13, 0], sizes = [1, 128], strides = [1, 1]} : vector<16x128xf32> to vector<1x128xf32>
    %359 = vector.extract_strided_slice %0 {offsets = [14, 0], sizes = [1, 128], strides = [1, 1]} : vector<16x128xf32> to vector<1x128xf32>
    %cst_102 = arith.constant dense<0.000000e+00> : vector<64x128xf32>
    %360 = tpu.matmul %146, %338, %cst_102 {dimension_numbers = #tpu.dot_dimension_numbers<[1], [0], [0], [1], [0, 0, 1, 1], [], []>} : vector<64x64xf32>, vector<64x128xf32>, vector<64x128xf32> -> vector<64x128xf32>
    %361 = arith.addf %338, %360 : vector<64x128xf32>
    %cst_103 = arith.constant dense<0.000000e+00> : vector<64x128xf32>
    %362 = tpu.matmul %361, %353, %cst_103 {dimension_numbers = #tpu.dot_dimension_numbers<[1], [0], [0], [1], [0, 0, 1, 1], [], []>} : vector<64x128xf32>, vector<128x128xf32>, vector<64x128xf32> -> vector<64x128xf32>
    %363 = vector.broadcast %356 : vector<1x128xf32> to vector<64x128xf32>
    %364 = arith.addf %362, %363 : vector<64x128xf32>
    %cst_104 = arith.constant 0.000000e+00 : f32
    %365 = vector.broadcast %cst_104 : f32 to vector<64x128xf32>
    %366 = arith.maximumf %364, %365 : vector<64x128xf32>
    %cst_105 = arith.constant dense<0.000000e+00> : vector<64x128xf32>
    %367 = tpu.matmul %366, %355, %cst_105 {dimension_numbers = #tpu.dot_dimension_numbers<[1], [0], [0], [1], [0, 0, 1, 1], [], []>} : vector<64x128xf32>, vector<128x128xf32>, vector<64x128xf32> -> vector<64x128xf32>
    %368 = vector.broadcast %357 : vector<1x128xf32> to vector<64x128xf32>
    %369 = arith.addf %367, %368 : vector<64x128xf32>
    %cst_106 = arith.constant dense<0.000000e+00> : vector<64xf32>
    %370 = vector.multi_reduction <add>, %369, %cst_106 [1] : vector<64x128xf32> to vector<64xf32>
    %371 = vector.shape_cast %370 : vector<64xf32> to vector<64x1xf32>
    %cst_107 = arith.constant 1.280000e+02 : f32
    %372 = vector.broadcast %cst_107 : f32 to vector<64x1xf32>
    %373 = arith.divf %371, %372 : vector<64x1xf32>
    %374 = vector.broadcast %373 : vector<64x1xf32> to vector<64x128xf32>
    %375 = arith.subf %369, %374 : vector<64x128xf32>
    %376 = arith.mulf %375, %375 : vector<64x128xf32>
    %cst_108 = arith.constant dense<0.000000e+00> : vector<64xf32>
    %377 = vector.multi_reduction <add>, %376, %cst_108 [1] : vector<64x128xf32> to vector<64xf32>
    %378 = vector.shape_cast %377 : vector<64xf32> to vector<64x1xf32>
    %cst_109 = arith.constant 1.280000e+02 : f32
    %379 = vector.broadcast %cst_109 : f32 to vector<64x1xf32>
    %380 = arith.divf %378, %379 : vector<64x1xf32>
    %381 = vector.broadcast %373 : vector<64x1xf32> to vector<64x128xf32>
    %382 = arith.subf %369, %381 : vector<64x128xf32>
    %cst_110 = arith.constant 9.99999974E-6 : f32
    %383 = vector.broadcast %cst_110 : f32 to vector<64x1xf32>
    %384 = arith.addf %380, %383 : vector<64x1xf32>
    %385 = math.rsqrt %384 : vector<64x1xf32>
    %386 = vector.broadcast %385 : vector<64x1xf32> to vector<64x128xf32>
    %387 = arith.mulf %382, %386 : vector<64x128xf32>
    %388 = vector.broadcast %358 : vector<1x128xf32> to vector<64x128xf32>
    %389 = arith.mulf %387, %388 : vector<64x128xf32>
    %390 = vector.broadcast %359 : vector<1x128xf32> to vector<64x128xf32>
    %391 = arith.addf %389, %390 : vector<64x128xf32>
    %cst_111 = arith.constant 0.000000e+00 : f32
    %392 = vector.broadcast %cst_111 : f32 to vector<64x128xf32>
    %393 = arith.cmpf ogt, %391, %392 : vector<64x128xf32>
    %cst_112 = arith.constant 1.000000e-01 : f32
    %394 = vector.broadcast %cst_112 : f32 to vector<64x128xf32>
    %395 = arith.mulf %394, %391 : vector<64x128xf32>
    %396 = arith.select %393, %391, %395 : vector<64x128xi1>, vector<64x128xf32>
    %397 = vector.extract_strided_slice %0 {offsets = [15, 0], sizes = [1, 128], strides = [1, 1]} : vector<16x128xf32> to vector<1x128xf32>
    %398 = arith.mulf %397, %397 : vector<1x128xf32>
    %cst_113 = arith.constant dense<0.000000e+00> : vector<1xf32>
    %399 = vector.multi_reduction <add>, %398, %cst_113 [1] : vector<1x128xf32> to vector<1xf32>
    %400 = vector.shape_cast %399 : vector<1xf32> to vector<1x1xf32>
    %401 = math.rsqrt %400 : vector<1x1xf32>
    %402 = vector.broadcast %397 : vector<1x128xf32> to vector<64x128xf32>
    %403 = arith.mulf %396, %402 : vector<64x128xf32>
    %cst_114 = arith.constant dense<0.000000e+00> : vector<64xf32>
    %404 = vector.multi_reduction <add>, %403, %cst_114 [1] : vector<64x128xf32> to vector<64xf32>
    %405 = vector.shape_cast %404 : vector<64xf32> to vector<64x1xf32>
    %406 = vector.broadcast %401 : vector<1x1xf32> to vector<64x1xf32>
    %407 = arith.mulf %405, %406 : vector<64x1xf32>
    %408 = math.tanh %407 : vector<64x1xf32>
    %cst_115 = arith.constant 5.000000e-01 : f32
    %409 = vector.broadcast %cst_115 : f32 to vector<64x1xf32>
    %410 = arith.cmpf ogt, %335, %409 : vector<64x1xf32>
    %cst_116 = arith.constant -1.000000e+30 : f32
    %411 = vector.broadcast %cst_116 : f32 to vector<64x1xf32>
    %412 = arith.select %410, %408, %411 : vector<64x1xi1>, vector<64x1xf32>
    %413 = tpu.transpose %412, [1, 0] : vector<64x1xf32> -> vector<1x64xf32>
    %414 = vector.broadcast %413 : vector<1x64xf32> to vector<64x64xf32>
    %415 = vector.broadcast %412 : vector<64x1xf32> to vector<64x64xf32>
    %416 = arith.cmpf ogt, %414, %415 : vector<64x64xf32>
    %417 = arith.extui %416 : vector<64x64xi1> to vector<64x64xi32>
    %418 = arith.sitofp %417 : vector<64x64xi32> to vector<64x64xf32>
    %419 = vector.broadcast %413 : vector<1x64xf32> to vector<64x64xf32>
    %420 = vector.broadcast %412 : vector<64x1xf32> to vector<64x64xf32>
    %421 = arith.cmpf oeq, %419, %420 : vector<64x64xf32>
    %422 = arith.cmpi slt, %3, %2 : vector<64x64xi32>
    %423 = arith.andi %421, %422 : vector<64x64xi1>
    %424 = arith.extui %423 : vector<64x64xi1> to vector<64x64xi32>
    %425 = arith.sitofp %424 : vector<64x64xi32> to vector<64x64xf32>
    %426 = arith.addf %418, %425 : vector<64x64xf32>
    %cst_117 = arith.constant dense<0.000000e+00> : vector<64xf32>
    %427 = vector.multi_reduction <add>, %426, %cst_117 [1] : vector<64x64xf32> to vector<64xf32>
    %428 = vector.shape_cast %427 : vector<64xf32> to vector<64x1xf32>
    %cst_118 = arith.constant 8.000000e+00 : f32
    %429 = vector.broadcast %cst_118 : f32 to vector<64x1xf32>
    %430 = arith.cmpf olt, %428, %429 : vector<64x1xf32>
    %431 = arith.extui %430 : vector<64x1xi1> to vector<64x1xi32>
    %432 = arith.sitofp %431 : vector<64x1xi32> to vector<64x1xf32>
    %433 = arith.mulf %335, %432 : vector<64x1xf32>
    %434 = arith.mulf %433, %408 : vector<64x1xf32>
    %435 = vector.broadcast %434 : vector<64x1xf32> to vector<64x128xf32>
    %436 = arith.mulf %396, %435 : vector<64x128xf32>
    %cst_119 = arith.constant 5.000000e-01 : f32
    %437 = vector.broadcast %cst_119 : f32 to vector<64x1xf32>
    %438 = arith.cmpf ogt, %433, %437 : vector<64x1xf32>
    %cst_120 = arith.constant -1.000000e+30 : f32
    %439 = vector.shape_cast %438 : vector<64x1xi1> to vector<64x1xi1>
    %440 = vector.broadcast %439 : vector<64x1xi1> to vector<64x128xi1>
    %441 = vector.broadcast %cst_120 : f32 to vector<64x128xf32>
    %442 = arith.select %440, %436, %441 : vector<64x128xi1>, vector<64x128xf32>
    %cst_121 = arith.constant dense<0xFF800000> : vector<128xf32>
    %443 = vector.multi_reduction <maximumf>, %442, %cst_121 [0] : vector<64x128xf32> to vector<128xf32>
    %444 = vector.shape_cast %443 : vector<128xf32> to vector<1x128xf32>
    %cst_122 = arith.constant dense<0.000000e+00> : vector<128xf32>
    %445 = vector.multi_reduction <add>, %436, %cst_122 [0] : vector<64x128xf32> to vector<128xf32>
    %446 = vector.shape_cast %445 : vector<128xf32> to vector<1x128xf32>
    %cst_123 = arith.constant 1.250000e-01 : f32
    %447 = vector.broadcast %cst_123 : f32 to vector<1x128xf32>
    %448 = arith.mulf %446, %447 : vector<1x128xf32>
    %449 = tpu.concatenate %444, %448 in 1 : vector<1x128xf32>, vector<1x128xf32> -> vector<1x256xf32>
    %450 = vector.extract_strided_slice %1 {offsets = [0, 0], sizes = [1, 256], strides = [1, 1]} : vector<4x256xf32> to vector<1x256xf32>
    %451 = vector.extract_strided_slice %1 {offsets = [1, 0], sizes = [1, 256], strides = [1, 1]} : vector<4x256xf32> to vector<1x256xf32>
    %cst_124 = arith.constant dense<0.000000e+00> : vector<1xf32>
    %452 = vector.multi_reduction <add>, %449, %cst_124 [1] : vector<1x256xf32> to vector<1xf32>
    %453 = vector.shape_cast %452 : vector<1xf32> to vector<1x1xf32>
    %cst_125 = arith.constant 2.560000e+02 : f32
    %454 = vector.broadcast %cst_125 : f32 to vector<1x1xf32>
    %455 = arith.divf %453, %454 : vector<1x1xf32>
    %456 = vector.broadcast %455 : vector<1x1xf32> to vector<1x256xf32>
    %457 = arith.subf %449, %456 : vector<1x256xf32>
    %458 = arith.mulf %457, %457 : vector<1x256xf32>
    %cst_126 = arith.constant dense<0.000000e+00> : vector<1xf32>
    %459 = vector.multi_reduction <add>, %458, %cst_126 [1] : vector<1x256xf32> to vector<1xf32>
    %460 = vector.shape_cast %459 : vector<1xf32> to vector<1x1xf32>
    %cst_127 = arith.constant 2.560000e+02 : f32
    %461 = vector.broadcast %cst_127 : f32 to vector<1x1xf32>
    %462 = arith.divf %460, %461 : vector<1x1xf32>
    %463 = vector.broadcast %455 : vector<1x1xf32> to vector<1x256xf32>
    %464 = arith.subf %449, %463 : vector<1x256xf32>
    %cst_128 = arith.constant 9.99999974E-6 : f32
    %465 = vector.broadcast %cst_128 : f32 to vector<1x1xf32>
    %466 = arith.addf %462, %465 : vector<1x1xf32>
    %467 = math.rsqrt %466 : vector<1x1xf32>
    %468 = vector.broadcast %467 : vector<1x1xf32> to vector<1x256xf32>
    %469 = arith.mulf %464, %468 : vector<1x256xf32>
    %470 = arith.mulf %469, %450 : vector<1x256xf32>
    %471 = arith.addf %470, %451 : vector<1x256xf32>
    %cst_129 = arith.constant 0.000000e+00 : f32
    %472 = vector.broadcast %cst_129 : f32 to vector<1x256xf32>
    %473 = arith.cmpf ogt, %253, %472 : vector<1x256xf32>
    %cst_130 = arith.constant 1.000000e-01 : f32
    %474 = vector.broadcast %cst_130 : f32 to vector<1x256xf32>
    %475 = arith.mulf %474, %253 : vector<1x256xf32>
    %476 = arith.select %473, %253, %475 : vector<1x256xi1>, vector<1x256xf32>
    %cst_131 = arith.constant 0.000000e+00 : f32
    %477 = vector.broadcast %cst_131 : f32 to vector<1x256xf32>
    %478 = arith.cmpf ogt, %351, %477 : vector<1x256xf32>
    %cst_132 = arith.constant 1.000000e-01 : f32
    %479 = vector.broadcast %cst_132 : f32 to vector<1x256xf32>
    %480 = arith.mulf %479, %351 : vector<1x256xf32>
    %481 = arith.select %478, %351, %480 : vector<1x256xi1>, vector<1x256xf32>
    %482 = arith.addf %476, %481 : vector<1x256xf32>
    %cst_133 = arith.constant 0.000000e+00 : f32
    %483 = vector.broadcast %cst_133 : f32 to vector<1x256xf32>
    %484 = arith.cmpf ogt, %471, %483 : vector<1x256xf32>
    %cst_134 = arith.constant 1.000000e-01 : f32
    %485 = vector.broadcast %cst_134 : f32 to vector<1x256xf32>
    %486 = arith.mulf %485, %471 : vector<1x256xf32>
    %487 = arith.select %484, %471, %486 : vector<1x256xi1>, vector<1x256xf32>
    %488 = arith.addf %482, %487 : vector<1x256xf32>
    %c0_135 = arith.constant 0 : index
    %c0_136 = arith.constant 0 : index
    %489 = vector.load %arg5[%c0_135, %c0_136] : memref<384x128xf32, #tpu.memory_space<vmem>>, vector<256x128xf32>
    %c256 = arith.constant 256 : index
    %c0_137 = arith.constant 0 : index
    %490 = vector.load %arg5[%c256, %c0_137] : memref<384x128xf32, #tpu.memory_space<vmem>>, vector<128x128xf32>
    %cst_138 = arith.constant dense<0.000000e+00> : vector<1x128xf32>
    %491 = tpu.matmul %488, %489, %cst_138 {dimension_numbers = #tpu.dot_dimension_numbers<[1], [0], [0], [1], [0, 0, 1, 1], [], []>} : vector<1x256xf32>, vector<256x128xf32>, vector<1x128xf32> -> vector<1x128xf32>
    %492 = vector.extract_strided_slice %1 {offsets = [2, 0], sizes = [1, 128], strides = [1, 1]} : vector<4x256xf32> to vector<1x128xf32>
    %493 = arith.addf %491, %492 : vector<1x128xf32>
    %cst_139 = arith.constant dense<0.000000e+00> : vector<1x128xf32>
    %494 = tpu.matmul %493, %490, %cst_139 {dimension_numbers = #tpu.dot_dimension_numbers<[1], [0], [0], [1], [0, 0, 1, 1], [], []>} : vector<1x128xf32>, vector<128x128xf32>, vector<1x128xf32> -> vector<1x128xf32>
    %495 = vector.extract_strided_slice %494 {offsets = [0, 0], sizes = [1, 8], strides = [1, 1]} : vector<1x128xf32> to vector<1x8xf32>
    %496 = vector.extract_strided_slice %1 {offsets = [3, 0], sizes = [1, 8], strides = [1, 1]} : vector<4x256xf32> to vector<1x8xf32>
    %497 = arith.addf %495, %496 : vector<1x8xf32>
    %cst_140 = arith.constant dense<0xFF800000> : vector<1xf32>
    %498 = vector.multi_reduction <maximumf>, %497, %cst_140 [1] : vector<1x8xf32> to vector<1xf32>
    %499 = vector.shape_cast %498 : vector<1xf32> to vector<1x1xf32>
    %500 = vector.broadcast %499 : vector<1x1xf32> to vector<1x8xf32>
    %501 = arith.subf %497, %500 : vector<1x8xf32>
    %502 = math.exp %501 : vector<1x8xf32>
    %cst_141 = arith.constant dense<0.000000e+00> : vector<1xf32>
    %503 = vector.multi_reduction <add>, %502, %cst_141 [1] : vector<1x8xf32> to vector<1xf32>
    %504 = vector.shape_cast %503 : vector<1xf32> to vector<1x1xf32>
    %505 = vector.broadcast %504 : vector<1x1xf32> to vector<1x8xf32>
    %506 = arith.divf %502, %505 : vector<1x8xf32>
    %cst_142 = arith.constant 1.000000e+00 : f32
    %507 = vector.broadcast %cst_142 : f32 to vector<1x8xf32>
    %508 = arith.subf %507, %506 : vector<1x8xf32>
    %509 = tpu.iota {dimensions = array<i32: 1>} : vector<1x8xi32>
    %cst_143 = arith.constant 1.000000e+00 : f32
    %510 = vector.broadcast %cst_143 : f32 to vector<1x8xf32>
    %511 = vector.extract_strided_slice %508 {offsets = [0, 0], sizes = [1, 1], strides = [1, 1]} : vector<1x8xf32> to vector<1x1xf32>
    %512 = vector.shape_cast %511 : vector<1x1xf32> to vector<1x1xf32>
    %513 = vector.broadcast %512 : vector<1x1xf32> to vector<1x8xf32>
    %c0_i32 = arith.constant 0 : i32
    %514 = vector.broadcast %c0_i32 : i32 to vector<1x8xi32>
    %515 = arith.cmpi sge, %509, %514 : vector<1x8xi32>
    %cst_144 = arith.constant 1.000000e+00 : f32
    %516 = vector.broadcast %cst_144 : f32 to vector<1x8xf32>
    %517 = arith.select %515, %513, %516 : vector<1x8xi1>, vector<1x8xf32>
    %518 = arith.mulf %510, %517 : vector<1x8xf32>
    %519 = vector.extract_strided_slice %508 {offsets = [0, 1], sizes = [1, 1], strides = [1, 1]} : vector<1x8xf32> to vector<1x1xf32>
    %520 = vector.shape_cast %519 : vector<1x1xf32> to vector<1x1xf32>
    %521 = vector.broadcast %520 : vector<1x1xf32> to vector<1x8xf32>
    %c1_i32 = arith.constant 1 : i32
    %522 = vector.broadcast %c1_i32 : i32 to vector<1x8xi32>
    %523 = arith.cmpi sge, %509, %522 : vector<1x8xi32>
    %cst_145 = arith.constant 1.000000e+00 : f32
    %524 = vector.broadcast %cst_145 : f32 to vector<1x8xf32>
    %525 = arith.select %523, %521, %524 : vector<1x8xi1>, vector<1x8xf32>
    %526 = arith.mulf %518, %525 : vector<1x8xf32>
    %527 = vector.extract_strided_slice %508 {offsets = [0, 2], sizes = [1, 1], strides = [1, 1]} : vector<1x8xf32> to vector<1x1xf32>
    %528 = vector.shape_cast %527 : vector<1x1xf32> to vector<1x1xf32>
    %529 = vector.broadcast %528 : vector<1x1xf32> to vector<1x8xf32>
    %c2_i32 = arith.constant 2 : i32
    %530 = vector.broadcast %c2_i32 : i32 to vector<1x8xi32>
    %531 = arith.cmpi sge, %509, %530 : vector<1x8xi32>
    %cst_146 = arith.constant 1.000000e+00 : f32
    %532 = vector.broadcast %cst_146 : f32 to vector<1x8xf32>
    %533 = arith.select %531, %529, %532 : vector<1x8xi1>, vector<1x8xf32>
    %534 = arith.mulf %526, %533 : vector<1x8xf32>
    %535 = vector.extract_strided_slice %508 {offsets = [0, 3], sizes = [1, 1], strides = [1, 1]} : vector<1x8xf32> to vector<1x1xf32>
    %536 = vector.shape_cast %535 : vector<1x1xf32> to vector<1x1xf32>
    %537 = vector.broadcast %536 : vector<1x1xf32> to vector<1x8xf32>
    %c3_i32 = arith.constant 3 : i32
    %538 = vector.broadcast %c3_i32 : i32 to vector<1x8xi32>
    %539 = arith.cmpi sge, %509, %538 : vector<1x8xi32>
    %cst_147 = arith.constant 1.000000e+00 : f32
    %540 = vector.broadcast %cst_147 : f32 to vector<1x8xf32>
    %541 = arith.select %539, %537, %540 : vector<1x8xi1>, vector<1x8xf32>
    %542 = arith.mulf %534, %541 : vector<1x8xf32>
    %543 = vector.extract_strided_slice %508 {offsets = [0, 4], sizes = [1, 1], strides = [1, 1]} : vector<1x8xf32> to vector<1x1xf32>
    %544 = vector.shape_cast %543 : vector<1x1xf32> to vector<1x1xf32>
    %545 = vector.broadcast %544 : vector<1x1xf32> to vector<1x8xf32>
    %c4_i32 = arith.constant 4 : i32
    %546 = vector.broadcast %c4_i32 : i32 to vector<1x8xi32>
    %547 = arith.cmpi sge, %509, %546 : vector<1x8xi32>
    %cst_148 = arith.constant 1.000000e+00 : f32
    %548 = vector.broadcast %cst_148 : f32 to vector<1x8xf32>
    %549 = arith.select %547, %545, %548 : vector<1x8xi1>, vector<1x8xf32>
    %550 = arith.mulf %542, %549 : vector<1x8xf32>
    %551 = vector.extract_strided_slice %508 {offsets = [0, 5], sizes = [1, 1], strides = [1, 1]} : vector<1x8xf32> to vector<1x1xf32>
    %552 = vector.shape_cast %551 : vector<1x1xf32> to vector<1x1xf32>
    %553 = vector.broadcast %552 : vector<1x1xf32> to vector<1x8xf32>
    %c5_i32 = arith.constant 5 : i32
    %554 = vector.broadcast %c5_i32 : i32 to vector<1x8xi32>
    %555 = arith.cmpi sge, %509, %554 : vector<1x8xi32>
    %cst_149 = arith.constant 1.000000e+00 : f32
    %556 = vector.broadcast %cst_149 : f32 to vector<1x8xf32>
    %557 = arith.select %555, %553, %556 : vector<1x8xi1>, vector<1x8xf32>
    %558 = arith.mulf %550, %557 : vector<1x8xf32>
    %559 = vector.extract_strided_slice %508 {offsets = [0, 6], sizes = [1, 1], strides = [1, 1]} : vector<1x8xf32> to vector<1x1xf32>
    %560 = vector.shape_cast %559 : vector<1x1xf32> to vector<1x1xf32>
    %561 = vector.broadcast %560 : vector<1x1xf32> to vector<1x8xf32>
    %c6_i32 = arith.constant 6 : i32
    %562 = vector.broadcast %c6_i32 : i32 to vector<1x8xi32>
    %563 = arith.cmpi sge, %509, %562 : vector<1x8xi32>
    %cst_150 = arith.constant 1.000000e+00 : f32
    %564 = vector.broadcast %cst_150 : f32 to vector<1x8xf32>
    %565 = arith.select %563, %561, %564 : vector<1x8xi1>, vector<1x8xf32>
    %566 = arith.mulf %558, %565 : vector<1x8xf32>
    %567 = vector.extract_strided_slice %508 {offsets = [0, 7], sizes = [1, 1], strides = [1, 1]} : vector<1x8xf32> to vector<1x1xf32>
    %568 = vector.shape_cast %567 : vector<1x1xf32> to vector<1x1xf32>
    %569 = vector.broadcast %568 : vector<1x1xf32> to vector<1x8xf32>
    %c7_i32 = arith.constant 7 : i32
    %570 = vector.broadcast %c7_i32 : i32 to vector<1x8xi32>
    %571 = arith.cmpi sge, %509, %570 : vector<1x8xi32>
    %cst_151 = arith.constant 1.000000e+00 : f32
    %572 = vector.broadcast %cst_151 : f32 to vector<1x8xf32>
    %573 = arith.select %571, %569, %572 : vector<1x8xi1>, vector<1x8xf32>
    %574 = arith.mulf %566, %573 : vector<1x8xf32>
    %cst_152 = arith.constant 0.000000e+00 : f32
    %575 = vector.broadcast %cst_152 : f32 to vector<1x112xf32>
    %576 = tpu.concatenate %493, %506, %574, %575 in 1 : vector<1x128xf32>, vector<1x8xf32>, vector<1x8xf32>, vector<1x112xf32> -> vector<1x256xf32>
    %c0_153 = arith.constant 0 : index
    %c0_154 = arith.constant 0 : index
    %577 = vector.load %arg7[%c0_153, %c0_154] : memref<1x256xf32, #tpu.memory_space<vmem>>, vector<1x256xf32>
    tpu.vector_store %arg7[%c0_153, %c0_154], %576 {strides = array<i32>} : memref<1x256xf32, #tpu.memory_space<vmem>>, vector<1x256xf32>,
    return
  }
  func.func @transform_0(%arg0: i32) -> (i32, i32) {
    %c0_i32 = arith.constant 0 : i32
    %c0_i32_0 = arith.constant 0 : i32
    %c0_i32_1 = arith.constant 0 : i32
    return %c0_i32, %c0_i32_0 : i32, i32
  }
  func.func @transform_1(%arg0: i32) -> (i32, i32) {
    %c0_i32 = arith.constant 0 : i32
    %c0_i32_0 = arith.constant 0 : i32
    %c0_i32_1 = arith.constant 0 : i32
    return %c0_i32, %c0_i32_0 : i32, i32
  }
  func.func @transform_2(%arg0: i32) -> (i32, i32, i32) {
    %c0_i32 = arith.constant 0 : i32
    %c0_i32_0 = arith.constant 0 : i32
    %c0_i32_1 = arith.constant 0 : i32
    %c0_i32_2 = arith.constant 0 : i32
    return %c0_i32, %c0_i32_0, %c0_i32_1 : i32, i32, i32
  }
  func.func @transform_3(%arg0: i32) -> (i32, i32) {
    %c0_i32 = arith.constant 0 : i32
    %c0_i32_0 = arith.constant 0 : i32
    %c0_i32_1 = arith.constant 0 : i32
    return %c0_i32, %c0_i32_0 : i32, i32
  }
  func.func @transform_4(%arg0: i32) -> (i32, i32) {
    %c0_i32 = arith.constant 0 : i32
    %c0_i32_0 = arith.constant 0 : i32
    %c0_i32_1 = arith.constant 0 : i32
    return %c0_i32, %c0_i32_0 : i32, i32
  }
  func.func @transform_5(%arg0: i32) -> (i32, i32) {
    %c0_i32 = arith.constant 0 : i32
    %c0_i32_0 = arith.constant 0 : i32
    %c0_i32_1 = arith.constant 0 : i32
    return %c0_i32, %c0_i32_0 : i32, i32
  }
  func.func @transform_6(%arg0: i32) -> (i32, i32) {
    %c0_i32 = arith.constant 0 : i32
    %c0_i32_0 = arith.constant 0 : i32
    %c0_i32_1 = arith.constant 0 : i32
    return %c0_i32, %c0_i32_0 : i32, i32
  }
}

</mosaic_0001>

<llo_original>
// kernel: gnn_forward.1
$region0: #{gnn_forward.1}
  #allocation0 [shape = 'u32[]', space=smem, size = 0x4, offset = 0x4, fixed_abs, tag = 'smem constant byte address 0x4 - core index']
  #allocation1 [shape = 'u32[72,128]{1,0:T(1,128)}', space=vmem, size = 0x9000, scoped, tag = 'internal scratch']
  %s0 = inlined_call_operand.hbm [shape: f32[64,128], index: 0, kind: input, shape index: {}]
  %s1 = inlined_call_operand.hbm [shape: f32[64,128], index: 1, kind: input, shape index: {}]
  %s2 = inlined_call_operand.hbm [shape: f32[7,128,128], index: 2, kind: input, shape index: {}]
  %s3 = inlined_call_operand.hbm [shape: f32[16,128], index: 3, kind: input, shape index: {}]
  %s4 = inlined_call_operand.hbm [shape: f32[384,128], index: 4, kind: input, shape index: {}]
  %s5 = inlined_call_operand.hbm [shape: f32[4,256], index: 5, kind: input, shape index: {}]
  %s6 = inlined_call_operand.vmem [shape: f32[1,256], index: 6, kind: output, shape index: {}]
  %s7 = sld [smem:[#allocation0]]
  $region58: #{gnn_forward.1} parent=0
    _
  %s9 = ssub.s32 1, %s7
  %s10 = scalar_select 0, %s9, %s7
  $region1: #{gnn_forward.1} parent=0
    #allocation2 [shape = 'u8[32768]{0}', space=vmem, size = 0x8000, scoped, tag = 'input window, operand 0, single buffered']
    #allocation3 [shape = 's32[1]{0}', space=sflag, size = 0x4, scoped, tag = 'scoped memory for gnn_forward.1']
    #allocation4 [shape = 'u8[32768]{0}', space=vmem, size = 0x8000, scoped, tag = 'input window, operand 1, single buffered']
    #allocation5 [shape = 's32[1]{0}', space=sflag, size = 0x4, scoped, tag = 'scoped memory for gnn_forward.1']
    #allocation6 [shape = 'u8[458752]{0}', space=vmem, size = 0x70000, scoped, tag = 'input window, operand 2, single buffered']
    #allocation7 [shape = 'u8[8192]{0}', space=vmem, size = 0x2000, scoped, tag = 'input window, operand 3, single buffered']
    #allocation8 [shape = 's32[1]{0}', space=sflag, size = 0x4, scoped, tag = 'scoped memory for gnn_forward.1']
    #allocation9 [shape = 'u8[196608]{0}', space=vmem, size = 0x30000, scoped, tag = 'input window, operand 4, single buffered']
    #allocation10 [shape = 'u8[4096]{0}', space=vmem, size = 0x1000, scoped, tag = 'input window, operand 5, single buffered']
    #allocation11 [shape = 's32[1]{0}', space=sflag, size = 0x4, scoped, tag = 'scoped memory for gnn_forward.1']
    %11 = vsyncpa [#allocation3], 0
    %12 = vsyncpa [#allocation5], 0
    %13 = vsyncpa [#allocation8], 0
    %14 = vsyncpa [#allocation11], 0
    // Predicated region
    $region2: #{gnn_forward.1} parent=1 // pred_check
      _
    $region3: #{gnn_forward.1} parent=1 // pred_check_branch
      %16 = sbr.rel (0) target = $region5
    $region4: #{gnn_forward.1} parent=1 // pred_region
      %18 = vsyncadd [#allocation3], 0
      %s19 = sshll.u32 %s0, 4
      %s20 = int_to_ptr.hbm [resolvable:$true] %s19
      %s21 = sshll.u32 [#allocation2], 4
      %s22 = int_to_ptr.vmem [resolvable:$true] %s21
      %27 = dma.hbm_to_vmem [thread:$0]  %s20, 1024, %s22, [#allocation3], 128, 128, 8
    $region5: #{gnn_forward.1} parent=1 // pred_fallthru
      _
    // Predicated region
    $region6: #{gnn_forward.1} parent=1 // pred_check
      _
    $region7: #{gnn_forward.1} parent=1 // pred_check_branch
      %29 = sbr.rel (0) target = $region9
    $region8: #{gnn_forward.1} parent=1 // pred_region
      %31 = vsyncadd [#allocation5], 0
      %s32 = sshll.u32 %s1, 4
      %s33 = int_to_ptr.hbm [resolvable:$true] %s32
      %s34 = sshll.u32 [#allocation4], 4
      %s35 = int_to_ptr.vmem [resolvable:$true] %s34
      %40 = dma.hbm_to_vmem [thread:$0]  %s33, 1024, %s35, [#allocation5], 128, 128, 8
    $region9: #{gnn_forward.1} parent=1 // pred_fallthru
      _
    // Predicated region
    $region10: #{gnn_forward.1} parent=1 // pred_check
      _
    $region11: #{gnn_forward.1} parent=1 // pred_check_branch
      %42 = sbr.rel (0) target = $region13
    $region12: #{gnn_forward.1} parent=1 // pred_region
      %44 = vsyncadd [#allocation5], 0
      %s45 = sshll.u32 %s2, 4
      %s46 = int_to_ptr.hbm [resolvable:$true] %s45
      %s47 = sshll.u32 [#allocation6], 4
      %s48 = int_to_ptr.vmem [resolvable:$true] %s47
      %53 = dma.hbm_to_vmem [thread:$0]  %s46, 14336, %s48, [#allocation5], 128, 128, 8
    $region13: #{gnn_forward.1} parent=1 // pred_fallthru
      _
    // Predicated region
    $region14: #{gnn_forward.1} parent=1 // pred_check
      _
    $region15: #{gnn_forward.1} parent=1 // pred_check_branch
      %55 = sbr.rel (0) target = $region17
    $region16: #{gnn_forward.1} parent=1 // pred_region
      %57 = vsyncadd [#allocation8], 0
      %s58 = sshll.u32 %s3, 4
      %s59 = int_to_ptr.hbm [resolvable:$true] %s58
      %s60 = sshll.u32 [#allocation7], 4
      %s61 = int_to_ptr.vmem [resolvable:$true] %s60
      %66 = dma.hbm_to_vmem [thread:$0]  %s59, 256, %s61, [#allocation8], 128, 128, 8
    $region17: #{gnn_forward.1} parent=1 // pred_fallthru
      _
    // Predicated region
    $region18: #{gnn_forward.1} parent=1 // pred_check
      _
    $region19: #{gnn_forward.1} parent=1 // pred_check_branch
      %68 = sbr.rel (0) target = $region21
    $region20: #{gnn_forward.1} parent=1 // pred_region
      %70 = vsyncadd [#allocation8], 0
      %s71 = sshll.u32 %s4, 4
      %s72 = int_to_ptr.hbm [resolvable:$true] %s71
      %s73 = sshll.u32 [#allocation9], 4
      %s74 = int_to_ptr.vmem [resolvable:$true] %s73
      %79 = dma.hbm_to_vmem [thread:$0]  %s72, 6144, %s74, [#allocation8], 128, 128, 8
    $region21: #{gnn_forward.1} parent=1 // pred_fallthru
      _
    // Predicated region
    $region22: #{gnn_forward.1} parent=1 // pred_check
      _
    $region23: #{gnn_forward.1} parent=1 // pred_check_branch
      %81 = sbr.rel (0) target = $region25
    $region24: #{gnn_forward.1} parent=1 // pred_region
      %83 = vsyncadd [#allocation11], 0
      %s85 = sshll.u32 %s5, 4
      %s86 = int_to_ptr.hbm [resolvable:$true] %s85
      %s87 = sshll.u32 [#allocation10], 4
      %s88 = int_to_ptr.vmem [resolvable:$true] %s87
      %90 = dma.hbm_to_vmem [thread:$0]  %s86, 128, %s88, [#allocation11]
    $region25: #{gnn_forward.1} parent=1 // pred_fallthru
      _
    // Predicated region
    $region26: #{gnn_forward.1} parent=1 // pred_check
      _
    $region27: #{gnn_forward.1} parent=1 // pred_check_branch
      %92 = sbr.rel (0) target = $region29
    $region28: #{gnn_forward.1} parent=1 // pred_region
      %94 = dma.done [#allocation3], 1024
    $region29: #{gnn_forward.1} parent=1 // pred_fallthru
      _
    // Predicated region
    $region30: #{gnn_forward.1} parent=1 // pred_check
      _
    $region31: #{gnn_forward.1} parent=1 // pred_check_branch
      %96 = sbr.rel (0) target = $region33
    $region32: #{gnn_forward.1} parent=1 // pred_region
      %98 = dma.done [#allocation5], 1024
    $region33: #{gnn_forward.1} parent=1 // pred_fallthru
      _
    // Predicated region
    $region34: #{gnn_forward.1} parent=1 // pred_check
      _
    $region35: #{gnn_forward.1} parent=1 // pred_check_branch
      %100 = sbr.rel (0) target = $region37
    $region36: #{gnn_forward.1} parent=1 // pred_region
      %102 = dma.done [#allocation5], 14336
    $region37: #{gnn_forward.1} parent=1 // pred_fallthru
      _
    // Predicated region
    $region38: #{gnn_forward.1} parent=1 // pred_check
      _
    $region39: #{gnn_forward.1} parent=1 // pred_check_branch
      %104 = sbr.rel (0) target = $region41
    $region40: #{gnn_forward.1} parent=1 // pred_region
      %106 = dma.done [#allocation8], 256
    $region41: #{gnn_forward.1} parent=1 // pred_fallthru
      _
    // Predicated region
    $region42: #{gnn_forward.1} parent=1 // pred_check
      _
    $region43: #{gnn_forward.1} parent=1 // pred_check_branch
      %108 = sbr.rel (0) target = $region45
    $region44: #{gnn_forward.1} parent=1 // pred_region
      %110 = dma.done [#allocation8], 6144
    $region45: #{gnn_forward.1} parent=1 // pred_fallthru
      _
    // Predicated region
    $region46: #{gnn_forward.1} parent=1 // pred_check
      _
    $region47: #{gnn_forward.1} parent=1 // pred_check_branch
      %112 = sbr.rel (0) target = $region49
    $region48: #{gnn_forward.1} parent=1 // pred_region
      %114 = dma.done [#allocation11], 128
    $region49: #{gnn_forward.1} parent=1 // pred_fallthru
      _
    %v115 = vld [vmem:[#allocation7] sm:$0xff]
    %v116 = vld [vmem:[#allocation7 + $0x8] sm:$0xff]
    %v117 = vld [vmem:[#allocation10] sm:$0xff]
    %v118 = vlaneseq
    %v119 = vshrl.u32 %v118, 7
    %v120 = vadd.s32 %v119, 8
    %v121 = vadd.s32 %v119, 16
    %v122 = vadd.s32 %v119, 24
    %v123 = vadd.s32 %v119, 32
    %v124 = vadd.s32 %v119, 40
    %v125 = vadd.s32 %v119, 48
    %v126 = vadd.s32 %v119, 56
    %v127 = vlaneseq
    %v128 = vand.u32 %v127, 127
    %v129 = vld [vmem:[#allocation2] sm:$0xff]
    %v130 = vld [vmem:[#allocation2 + $0x8] sm:$0xff]
    %v131 = vld [vmem:[#allocation2 + $0x10] sm:$0xff]
    %v132 = vld [vmem:[#allocation2 + $0x18] sm:$0xff]
    %v133 = vld [vmem:[#allocation2 + $0x20] sm:$0xff]
    %v134 = vld [vmem:[#allocation2 + $0x28] sm:$0xff]
    %v135 = vld [vmem:[#allocation2 + $0x30] sm:$0xff]
    %v136 = vld [vmem:[#allocation2 + $0x38] sm:$0xff]
    %137 = vmatpush.xpose.msra.mxu0 0.0
    %138 = vmatpush.xpose.msra.mxu0 0.0
    %139 = vmatpush.xpose.msra.mxu0 0.0
    %140 = vmatpush.xpose.msra.mxu0 0.0
    %141 = vmatpush.xpose.msra.mxu0 0.0
    %142 = vmatpush.xpose.msra.mxu0 0.0
    %143 = vmatpush.xpose.msra.mxu0 0.0
    %144 = vmatpush.xpose.msra.mxu0 0.0
    %145 = vmatpush.xpose.msra.mxu0 %v136
    %146 = vmatpush.xpose.msra.mxu0 %v135
    %147 = vmatpush.xpose.msra.mxu0 %v134
    %148 = vmatpush.xpose.msra.mxu0 %v133
    %149 = vmatpush.xpose.msra.mxu0 %v132
    %150 = vmatpush.xpose.msra.mxu0 %v131
    %151 = vmatpush.xpose.msra.mxu0 %v130
    %152 = vmatpush.xpose.msra.mxu0 %v129
    %153 = vmatmul.f32.gmra.mxu0 %v129
    %v154 = vpop.f32.mrf.mxu0
    %v155 = vadd.f32 0.0, %v154
    %156 = vmatmul.f32.gmra.mxu0 %v130
    %v157 = vpop.f32.mrf.mxu0
    %v158 = vadd.f32 0.0, %v157
    %159 = vmatmul.f32.gmra.mxu0 %v131
    %v160 = vpop.f32.mrf.mxu0
    %v161 = vadd.f32 0.0, %v160
    %162 = vmatmul.f32.gmra.mxu0 %v132
    %v163 = vpop.f32.mrf.mxu0
    %v164 = vadd.f32 0.0, %v163
    %165 = vmatmul.f32.gmra.mxu0 %v133
    %v166 = vpop.f32.mrf.mxu0
    %v167 = vadd.f32 0.0, %v166
    %168 = vmatmul.f32.gmra.mxu0 %v134
    %v169 = vpop.f32.mrf.mxu0
    %v170 = vadd.f32 0.0, %v169
    %171 = vmatmul.f32.gmra.mxu0 %v135
    %v172 = vpop.f32.mrf.mxu0
    %v173 = vadd.f32 0.0, %v172
    %174 = vmatmul.f32.gmra.mxu0 %v136
    %v175 = vpop.f32.mrf.mxu0
    %v176 = vadd.f32 0.0, %v175
    %177 = vdwg.mxu0
    %v178 = vmul.f32 %v129, %v129
    %v179 = vmul.f32 %v130, %v130
    %v180 = vmul.f32 %v131, %v131
    %v181 = vmul.f32 %v132, %v132
    %v182 = vmul.f32 %v133, %v133
    %v183 = vmul.f32 %v134, %v134
    %v184 = vmul.f32 %v135, %v135
    %v185 = vmul.f32 %v136, %v136
    %186 = vadd.xlane.f32.xlu0 %v178
    %v187 = vpop.xlane.xlu0 %186
    %188 = vadd.xlane.f32.xlu0 %v179
    %v189 = vpop.xlane.xlu0 %188
    %190 = vadd.xlane.f32.xlu0 %v180
    %v191 = vpop.xlane.xlu0 %190
    %192 = vadd.xlane.f32.xlu0 %v181
    %v193 = vpop.xlane.xlu0 %192
    %194 = vadd.xlane.f32.xlu0 %v182
    %v195 = vpop.xlane.xlu0 %194
    %196 = vadd.xlane.f32.xlu0 %v183
    %v197 = vpop.xlane.xlu0 %196
    %198 = vadd.xlane.f32.xlu0 %v184
    %v199 = vpop.xlane.xlu0 %198
    %200 = vadd.xlane.f32.xlu0 %v185
    %v201 = vpop.xlane.xlu0 %200
    %202 = vxpose.xlu0.b32.start [1/16] %v187, 128
    %203 = vxpose.xlu0.b32.cont [2/16] %v189, 128
    %204 = vxpose.xlu0.b32.cont [3/16] %v191, 128
    %205 = vxpose.xlu0.b32.cont [4/16] %v193, 128
    %206 = vxpose.xlu0.b32.cont [5/16] %v195, 128
    %207 = vxpose.xlu0.b32.cont [6/16] %v197, 128
    %208 = vxpose.xlu0.b32.cont [7/16] %v199, 128
    %209 = vxpose.xlu0.b32.cont [8/16] %v201, 128
    %210 = vxpose.xlu0.b32.cont [9/16] 0.0, 128
    %211 = vxpose.xlu0.b32.cont [10/16] 0.0, 128
    %212 = vxpose.xlu0.b32.cont [11/16] 0.0, 128
    %213 = vxpose.xlu0.b32.cont [12/16] 0.0, 128
    %214 = vxpose.xlu0.b32.cont [13/16] 0.0, 128
    %215 = vxpose.xlu0.b32.cont [14/16] 0.0, 128
    %216 = vxpose.xlu0.b32.cont [15/16] 0.0, 128
    %217 = vxpose.xlu0.b32.end [16/16] 0.0, 128
    %v218 = vpop.trf.xlu0
    %v219 = vpop.trf.xlu0
    %v220 = vpop.trf.xlu0
    %v221 = vpop.trf.xlu0
    %v222 = vpop.trf.xlu0
    %v223 = vpop.trf.xlu0
    %v224 = vpop.trf.xlu0
    %v225 = vpop.trf.xlu0
    %v226 = vpop.trf.xlu0
    %v227 = vpop.trf.xlu0
    %v228 = vpop.trf.xlu0
    %v229 = vpop.trf.xlu0
    %v230 = vpop.trf.xlu0
    %v231 = vpop.trf.xlu0
    %v232 = vpop.trf.xlu0
    %v233 = vpop.trf.xlu0
    %v234 = vperm.slane %v218, 0
    %v235 = vadd.f32 %v187, %v234
    %v236 = vadd.f32 %v189, %v234
    %v237 = vadd.f32 %v191, %v234
    %v238 = vadd.f32 %v193, %v234
    %v239 = vadd.f32 %v195, %v234
    %v240 = vadd.f32 %v197, %v234
    %v241 = vadd.f32 %v199, %v234
    %v242 = vadd.f32 %v201, %v234
    %v243 = vmul.f32 %v155, 2.0
    %v244 = vmul.f32 %v158, 2.0
    %v245 = vmul.f32 %v161, 2.0
    %v246 = vmul.f32 %v164, 2.0
    %v247 = vmul.f32 %v167, 2.0
    %v248 = vmul.f32 %v170, 2.0
    %v249 = vmul.f32 %v173, 2.0
    %v250 = vmul.f32 %v176, 2.0
    %v251 = vsub.f32 %v235, %v243
    %v252 = vsub.f32 %v236, %v244
    %v253 = vsub.f32 %v237, %v245
    %v254 = vsub.f32 %v238, %v246
    %v255 = vsub.f32 %v239, %v247
    %v256 = vsub.f32 %v240, %v248
    %v257 = vsub.f32 %v241, %v249
    %v258 = vsub.f32 %v242, %v250
    %vm259 = vcmp.eq.s32.totalorder %v119, %v128
    %vm260 = vcmp.eq.s32.totalorder %v120, %v128
    %vm261 = vcmp.eq.s32.totalorder %v121, %v128
    %vm262 = vcmp.eq.s32.totalorder %v122, %v128
    %vm263 = vcmp.eq.s32.totalorder %v123, %v128
    %vm264 = vcmp.eq.s32.totalorder %v124, %v128
    %vm265 = vcmp.eq.s32.totalorder %v125, %v128
    %vm266 = vcmp.eq.s32.totalorder %v126, %v128
    %v267 = vsel %vm259, 1e+30, %v251
    %v268 = vsel %vm260, 1e+30, %v252
    %v269 = vsel %vm261, 1e+30, %v253
    %v270 = vsel %vm262, 1e+30, %v254
    %v271 = vsel %vm263, 1e+30, %v255
    %v272 = vsel %vm264, 1e+30, %v256
    %v273 = vsel %vm265, 1e+30, %v257
    %v274 = vsel %vm266, 1e+30, %v258
    %vm275 = vcmask 523264
    %v276 = vsel %vm275, %v267, inf
    %277 = vmin.xlane.f32.xlu0 %v276
    %v278 = vpop.xlane.xlu0 %277
    %v279 = vsel %vm275, %v268, inf
    %280 = vmin.xlane.f32.xlu0 %v279
    %v281 = vpop.xlane.xlu0 %280
    %v282 = vsel %vm275, %v269, inf
    %283 = vmin.xlane.f32.xlu0 %v282
    %v284 = vpop.xlane.xlu0 %283
    %v285 = vsel %vm275, %v270, inf
    %286 = vmin.xlane.f32.xlu0 %v285
    %v287 = vpop.xlane.xlu0 %286
    %v288 = vsel %vm275, %v271, inf
    %289 = vmin.xlane.f32.xlu0 %v288
    %v290 = vpop.xlane.xlu0 %289
    %v291 = vsel %vm275, %v272, inf
    %292 = vmin.xlane.f32.xlu0 %v291
    %v293 = vpop.xlane.xlu0 %292
    %v294 = vsel %vm275, %v273, inf
    %295 = vmin.xlane.f32.xlu0 %v294
    %v296 = vpop.xlane.xlu0 %295
    %v297 = vsel %vm275, %v274, inf
    %298 = vmin.xlane.f32.xlu0 %v297
    %v299 = vpop.xlane.xlu0 %298
    %vm300 = vcmp.le.f32.partialorder %v267, %v278
    %vm301 = vcmp.le.f32.partialorder %v268, %v281
    %vm302 = vcmp.le.f32.partialorder %v269, %v284
    %vm303 = vcmp.le.f32.partialorder %v270, %v287
    %vm304 = vcmp.le.f32.partialorder %v271, %v290
    %vm305 = vcmp.le.f32.partialorder %v272, %v293
    %vm306 = vcmp.le.f32.partialorder %v273, %v296
    %vm307 = vcmp.le.f32.partialorder %v274, %v299
    %v308 = vsel %vm300, %v128, 64
    %v309 = vsel %vm301, %v128, 64
    %v310 = vsel %vm302, %v128, 64
    %v311 = vsel %vm303, %v128, 64
    %v312 = vsel %vm304, %v128, 64
    %v313 = vsel %vm305, %v128, 64
    %v314 = vsel %vm306, %v128, 64
    %v315 = vsel %vm307, %v128, 64
    %v316 = vsel %vm275, %v308, 2147483647
    %v317 = vand.u32 %v316, 65535
    %v318 = vshra.s32 %v316, 16
    %v319 = vcvt.s32.f32 %v317
    %v320 = vcvt.s32.f32 %v318
    %321 = vmin.xlane.f32.xlu0 %v320
    %v322 = vpop.xlane.xlu0 %321
    %vm323 = vcmp.eq.f32.partialorder %v320, %v322
    %v324 = vsel %vm323, %v319, inf
    %325 = vmin.xlane.f32.xlu0 %v324
    %v326 = vpop.xlane.xlu0 %325
    %v327 = vcvt.f32.s32 %v326
    %v328 = vcvt.f32.s32 %v322
    %v329 = vshll.u32 %v328, 16
    %v330 = vadd.s32 %v329, %v327
    %v331 = vsel %vm275, %v309, 2147483647
    %v332 = vand.u32 %v331, 65535
    %v333 = vshra.s32 %v331, 16
    %v334 = vcvt.s32.f32 %v332
    %v335 = vcvt.s32.f32 %v333
    %336 = vmin.xlane.f32.xlu0 %v335
    %v337 = vpop.xlane.xlu0 %336
    %vm338 = vcmp.eq.f32.partialorder %v335, %v337
    %v339 = vsel %vm338, %v334, inf
    %340 = vmin.xlane.f32.xlu0 %v339
    %v341 = vpop.xlane.xlu0 %340
    %v342 = vcvt.f32.s32 %v341
    %v343 = vcvt.f32.s32 %v337
    %v344 = vshll.u32 %v343, 16
    %v345 = vadd.s32 %v344, %v342
    %v346 = vsel %vm275, %v310, 2147483647
    %v347 = vand.u32 %v346, 65535
    %v348 = vshra.s32 %v346, 16
    %v349 = vcvt.s32.f32 %v347
    %v350 = vcvt.s32.f32 %v348
    %351 = vmin.xlane.f32.xlu0 %v350
    %v352 = vpop.xlane.xlu0 %351
    %vm353 = vcmp.eq.f32.partialorder %v350, %v352
    %v354 = vsel %vm353, %v349, inf
    %355 = vmin.xlane.f32.xlu0 %v354
    %v356 = vpop.xlane.xlu0 %355
    %v357 = vcvt.f32.s32 %v356
    %v358 = vcvt.f32.s32 %v352
    %v359 = vshll.u32 %v358, 16
    %v360 = vadd.s32 %v359, %v357
    %v361 = vsel %vm275, %v311, 2147483647
    %v362 = vand.u32 %v361, 65535
    %v363 = vshra.s32 %v361, 16
    %v364 = vcvt.s32.f32 %v362
    %v365 = vcvt.s32.f32 %v363
    %366 = vmin.xlane.f32.xlu0 %v365
    %v367 = vpop.xlane.xlu0 %366
    %vm368 = vcmp.eq.f32.partialorder %v365, %v367
    %v369 = vsel %vm368, %v364, inf
    %370 = vmin.xlane.f32.xlu0 %v369
    %v371 = vpop.xlane.xlu0 %370
    %v372 = vcvt.f32.s32 %v371
    %v373 = vcvt.f32.s32 %v367
    %v374 = vshll.u32 %v373, 16
    %v375 = vadd.s32 %v374, %v372
    %v376 = vsel %vm275, %v312, 2147483647
    %v377 = vand.u32 %v376, 65535
    %v378 = vshra.s32 %v376, 16
    %v379 = vcvt.s32.f32 %v377
    %v380 = vcvt.s32.f32 %v378
    %381 = vmin.xlane.f32.xlu0 %v380
    %v382 = vpop.xlane.xlu0 %381
    %vm383 = vcmp.eq.f32.partialorder %v380, %v382
    %v384 = vsel %vm383, %v379, inf
    %385 = vmin.xlane.f32.xlu0 %v384
    %v386 = vpop.xlane.xlu0 %385
    %v387 = vcvt.f32.s32 %v386
    %v388 = vcvt.f32.s32 %v382
    %v389 = vshll.u32 %v388, 16
    %v390 = vadd.s32 %v389, %v387
    %v391 = vsel %vm275, %v313, 2147483647
    %v392 = vand.u32 %v391, 65535
    %v393 = vshra.s32 %v391, 16
    %v394 = vcvt.s32.f32 %v392
    %v395 = vcvt.s32.f32 %v393
    %396 = vmin.xlane.f32.xlu0 %v395
    %v397 = vpop.xlane.xlu0 %396
    %vm398 = vcmp.eq.f32.partialorder %v395, %v397
    %v399 = vsel %vm398, %v394, inf
    %400 = vmin.xlane.f32.xlu0 %v399
    %v401 = vpop.xlane.xlu0 %400
    %v402 = vcvt.f32.s32 %v401
    %v403 = vcvt.f32.s32 %v397
    %v404 = vshll.u32 %v403, 16
    %v405 = vadd.s32 %v404, %v402
    %v406 = vsel %vm275, %v314, 2147483647
    %v407 = vand.u32 %v406, 65535
    %v408 = vshra.s32 %v406, 16
    %v409 = vcvt.s32.f32 %v407
    %v410 = vcvt.s32.f32 %v408
    %411 = vmin.xlane.f32.xlu0 %v410
    %v412 = vpop.xlane.xlu0 %411
    %vm413 = vcmp.eq.f32.partialorder %v410, %v412
    %v414 = vsel %vm413, %v409, inf
    %415 = vmin.xlane.f32.xlu0 %v414
    %v416 = vpop.xlane.xlu0 %415
    %v417 = vcvt.f32.s32 %v416
    %v418 = vcvt.f32.s32 %v412
    %v419 = vshll.u32 %v418, 16
    %v420 = vadd.s32 %v419, %v417
    %v421 = vsel %vm275, %v315, 2147483647
    %v422 = vand.u32 %v421, 65535
    %v423 = vshra.s32 %v421, 16
    %v424 = vcvt.s32.f32 %v422
    %v425 = vcvt.s32.f32 %v423
    %426 = vmin.xlane.f32.xlu0 %v425
    %v427 = vpop.xlane.xlu0 %426
    %vm428 = vcmp.eq.f32.partialorder %v425, %v427
    %v429 = vsel %vm428, %v424, inf
    %430 = vmin.xlane.f32.xlu0 %v429
    %v431 = vpop.xlane.xlu0 %430
    %v432 = vcvt.f32.s32 %v431
    %v433 = vcvt.f32.s32 %v427
    %v434 = vshll.u32 %v433, 16
    %v435 = vadd.s32 %v434, %v432
    %vm436 = vcmp.eq.s32.totalorder %v128, %v330
    %vm437 = vcmp.eq.s32.totalorder %v128, %v345
    %vm438 = vcmp.eq.s32.totalorder %v128, %v360
    %vm439 = vcmp.eq.s32.totalorder %v128, %v375
    %vm440 = vcmp.eq.s32.totalorder %v128, %v390
    %vm441 = vcmp.eq.s32.totalorder %v128, %v405
    %vm442 = vcmp.eq.s32.totalorder %v128, %v420
    %vm443 = vcmp.eq.s32.totalorder %v128, %v435
    %v444 = vsel %vm436, 1, 0
    %v445 = vsel %vm437, 1, 0
    %v446 = vsel %vm438, 1, 0
    %v447 = vsel %vm439, 1, 0
    %v448 = vsel %vm440, 1, 0
    %v449 = vsel %vm441, 1, 0
    %v450 = vsel %vm442, 1, 0
    %v451 = vsel %vm443, 1, 0
    %v452 = vcvt.s32.f32 %v444
    %v453 = vcvt.s32.f32 %v445
    %v454 = vcvt.s32.f32 %v446
    %v455 = vcvt.s32.f32 %v447
    %v456 = vcvt.s32.f32 %v448
    %v457 = vcvt.s32.f32 %v449
    %v458 = vcvt.s32.f32 %v450
    %v459 = vcvt.s32.f32 %v451
    %v460 = vadd.f32 %v452, 0.0
    %v461 = vadd.f32 %v453, 0.0
    %v462 = vadd.f32 %v454, 0.0
    %v463 = vadd.f32 %v455, 0.0
    %v464 = vadd.f32 %v456, 0.0
    %v465 = vadd.f32 %v457, 0.0
    %v466 = vadd.f32 %v458, 0.0
    %v467 = vadd.f32 %v459, 0.0
    %v468 = vmul.f32 %v452, 1e+30
    %v469 = vmul.f32 %v453, 1e+30
    %v470 = vmul.f32 %v454, 1e+30
    %v471 = vmul.f32 %v455, 1e+30
    %v472 = vmul.f32 %v456, 1e+30
    %v473 = vmul.f32 %v457, 1e+30
    %v474 = vmul.f32 %v458, 1e+30
    %v475 = vmul.f32 %v459, 1e+30
    %v476 = vadd.f32 %v267, %v468
    %v477 = vadd.f32 %v268, %v469
    %v478 = vadd.f32 %v269, %v470
    %v479 = vadd.f32 %v270, %v471
    %v480 = vadd.f32 %v271, %v472
    %v481 = vadd.f32 %v272, %v473
    %v482 = vadd.f32 %v273, %v474
    %v483 = vadd.f32 %v274, %v475
    %v484 = vsel %vm275, %v476, inf
    %485 = vmin.xlane.f32.xlu0 %v484
    %v486 = vpop.xlane.xlu0 %485
    %v487 = vsel %vm275, %v477, inf
    %488 = vmin.xlane.f32.xlu0 %v487
    %v489 = vpop.xlane.xlu0 %488
    %v490 = vsel %vm275, %v478, inf
    %491 = vmin.xlane.f32.xlu0 %v490
    %v492 = vpop.xlane.xlu0 %491
    %v493 = vsel %vm275, %v479, inf
    %494 = vmin.xlane.f32.xlu0 %v493
    %v495 = vpop.xlane.xlu0 %494
    %v496 = vsel %vm275, %v480, inf
    %497 = vmin.xlane.f32.xlu0 %v496
    %v498 = vpop.xlane.xlu0 %497
    %v499 = vsel %vm275, %v481, inf
    %500 = vmin.xlane.f32.xlu0 %v499
    %v501 = vpop.xlane.xlu0 %500
    %v502 = vsel %vm275, %v482, inf
    %503 = vmin.xlane.f32.xlu0 %v502
    %v504 = vpop.xlane.xlu0 %503
    %v505 = vsel %vm275, %v483, inf
    %506 = vmin.xlane.f32.xlu0 %v505
    %v507 = vpop.xlane.xlu0 %506
    %vm508 = vcmp.le.f32.partialorder %v476, %v486
    %vm509 = vcmp.le.f32.partialorder %v477, %v489
    %vm510 = vcmp.le.f32.partialorder %v478, %v492
    %vm511 = vcmp.le.f32.partialorder %v479, %v495
    %vm512 = vcmp.le.f32.partialorder %v480, %v498
    %vm513 = vcmp.le.f32.partialorder %v481, %v501
    %vm514 = vcmp.le.f32.partialorder %v482, %v504
    %vm515 = vcmp.le.f32.partialorder %v483, %v507
    %v516 = vsel %vm508, %v128, 64
    %v517 = vsel %vm509, %v128, 64
    %v518 = vsel %vm510, %v128, 64
    %v519 = vsel %vm511, %v128, 64
    %v520 = vsel %vm512, %v128, 64
    %v521 = vsel %vm513, %v128, 64
    %v522 = vsel %vm514, %v128, 64
    %v523 = vsel %vm515, %v128, 64
    %v524 = vsel %vm275, %v516, 2147483647
    %v525 = vand.u32 %v524, 65535
    %v526 = vshra.s32 %v524, 16
    %v527 = vcvt.s32.f32 %v525
    %v528 = vcvt.s32.f32 %v526
    %529 = vmin.xlane.f32.xlu0 %v528
    %v530 = vpop.xlane.xlu0 %529
    %vm531 = vcmp.eq.f32.partialorder %v528, %v530
    %v532 = vsel %vm531, %v527, inf
    %533 = vmin.xlane.f32.xlu0 %v532
    %v534 = vpop.xlane.xlu0 %533
    %v535 = vcvt.f32.s32 %v534
    %v536 = vcvt.f32.s32 %v530
    %v537 = vshll.u32 %v536, 16
    %v538 = vadd.s32 %v537, %v535
    %v539 = vsel %vm275, %v517, 2147483647
    %v540 = vand.u32 %v539, 65535
    %v541 = vshra.s32 %v539, 16
    %v542 = vcvt.s32.f32 %v540
    %v543 = vcvt.s32.f32 %v541
    %544 = vmin.xlane.f32.xlu0 %v543
    %v545 = vpop.xlane.xlu0 %544
    %vm546 = vcmp.eq.f32.partialorder %v543, %v545
    %v547 = vsel %vm546, %v542, inf
    %548 = vmin.xlane.f32.xlu0 %v547
    %v549 = vpop.xlane.xlu0 %548
    %v550 = vcvt.f32.s32 %v549
    %v551 = vcvt.f32.s32 %v545
    %v552 = vshll.u32 %v551, 16
    %v553 = vadd.s32 %v552, %v550
    %v554 = vsel %vm275, %v518, 2147483647
    %v555 = vand.u32 %v554, 65535
    %v556 = vshra.s32 %v554, 16
    %v557 = vcvt.s32.f32 %v555
    %v558 = vcvt.s32.f32 %v556
    %559 = vmin.xlane.f32.xlu0 %v558
    %v560 = vpop.xlane.xlu0 %559
    %vm561 = vcmp.eq.f32.partialorder %v558, %v560
    %v562 = vsel %vm561, %v557, inf
    %563 = vmin.xlane.f32.xlu0 %v562
    %v564 = vpop.xlane.xlu0 %563
    %v565 = vcvt.f32.s32 %v564
    %v566 = vcvt.f32.s32 %v560
    %v567 = vshll.u32 %v566, 16
    %v568 = vadd.s32 %v567, %v565
    %v569 = vsel %vm275, %v519, 2147483647
    %v570 = vand.u32 %v569, 65535
    %v571 = vshra.s32 %v569, 16
    %v572 = vcvt.s32.f32 %v570
    %v573 = vcvt.s32.f32 %v571
    %574 = vmin.xlane.f32.xlu0 %v573
    %v575 = vpop.xlane.xlu0 %574
    %vm576 = vcmp.eq.f32.partialorder %v573, %v575
    %v577 = vsel %vm576, %v572, inf
    %578 = vmin.xlane.f32.xlu0 %v577
    %v579 = vpop.xlane.xlu0 %578
    %v580 = vcvt.f32.s32 %v579
    %v581 = vcvt.f32.s32 %v575
    %v582 = vshll.u32 %v581, 16
    %v583 = vadd.s32 %v582, %v580
    %v584 = vsel %vm275, %v520, 2147483647
    %v585 = vand.u32 %v584, 65535
    %v586 = vshra.s32 %v584, 16
    %v587 = vcvt.s32.f32 %v585
    %v588 = vcvt.s32.f32 %v586
    %589 = vmin.xlane.f32.xlu0 %v588
    %v590 = vpop.xlane.xlu0 %589
    %vm591 = vcmp.eq.f32.partialorder %v588, %v590
    %v592 = vsel %vm591, %v587, inf
    %593 = vmin.xlane.f32.xlu0 %v592
    %v594 = vpop.xlane.xlu0 %593
    %v595 = vcvt.f32.s32 %v594
    %v596 = vcvt.f32.s32 %v590
    %v597 = vshll.u32 %v596, 16
    %v598 = vadd.s32 %v597, %v595
    %v599 = vsel %vm275, %v521, 2147483647
    %v600 = vand.u32 %v599, 65535
    %v601 = vshra.s32 %v599, 16
    %v602 = vcvt.s32.f32 %v600
    %v603 = vcvt.s32.f32 %v601
    %604 = vmin.xlane.f32.xlu0 %v603
    %v605 = vpop.xlane.xlu0 %604
    %vm606 = vcmp.eq.f32.partialorder %v603, %v605
    %v607 = vsel %vm606, %v602, inf
    %608 = vmin.xlane.f32.xlu0 %v607
    %v609 = vpop.xlane.xlu0 %608
    %v610 = vcvt.f32.s32 %v609
    %v611 = vcvt.f32.s32 %v605
    %v612 = vshll.u32 %v611, 16
    %v613 = vadd.s32 %v612, %v610
    %v614 = vsel %vm275, %v522, 2147483647
    %v615 = vand.u32 %v614, 65535
    %v616 = vshra.s32 %v614, 16
    %v617 = vcvt.s32.f32 %v615
    %v618 = vcvt.s32.f32 %v616
    %619 = vmin.xlane.f32.xlu0 %v618
    %v620 = vpop.xlane.xlu0 %619
    %vm621 = vcmp.eq.f32.partialorder %v618, %v620
    %v622 = vsel %vm621, %v617, inf
    %623 = vmin.xlane.f32.xlu0 %v622
    %v624 = vpop.xlane.xlu0 %623
    %v625 = vcvt.f32.s32 %v624
    %v626 = vcvt.f32.s32 %v620
    %v627 = vshll.u32 %v626, 16
    %v628 = vadd.s32 %v627, %v625
    %v629 = vsel %vm275, %v523, 2147483647
    %v630 = vand.u32 %v629, 65535
    %v631 = vshra.s32 %v629, 16
    %v632 = vcvt.s32.f32 %v630
    %v633 = vcvt.s32.f32 %v631
    %634 = vmin.xlane.f32.xlu0 %v633
    %v635 = vpop.xlane.xlu0 %634
    %vm636 = vcmp.eq.f32.partialorder %v633, %v635
    %v637 = vsel %vm636, %v632, inf
    %638 = vmin.xlane.f32.xlu0 %v637
    %v639 = vpop.xlane.xlu0 %638
    %v640 = vcvt.f32.s32 %v639
    %v641 = vcvt.f32.s32 %v635
    %v642 = vshll.u32 %v641, 16
    %v643 = vadd.s32 %v642, %v640
    %vm644 = vcmp.eq.s32.totalorder %v128, %v538
    %vm645 = vcmp.eq.s32.totalorder %v128, %v553
    %vm646 = vcmp.eq.s32.totalorder %v128, %v568
    %vm647 = vcmp.eq.s32.totalorder %v128, %v583
    %vm648 = vcmp.eq.s32.totalorder %v128, %v598
    %vm649 = vcmp.eq.s32.totalorder %v128, %v613
    %vm650 = vcmp.eq.s32.totalorder %v128, %v628
    %vm651 = vcmp.eq.s32.totalorder %v128, %v643
    %v652 = vsel %vm644, 1, 0
    %v653 = vsel %vm645, 1, 0
    %v654 = vsel %vm646, 1, 0
    %v655 = vsel %vm647, 1, 0
    %v656 = vsel %vm648, 1, 0
    %v657 = vsel %vm649, 1, 0
    %v658 = vsel %vm650, 1, 0
    %v659 = vsel %vm651, 1, 0
    %v660 = vcvt.s32.f32 %v652
    %v661 = vcvt.s32.f32 %v653
    %v662 = vcvt.s32.f32 %v654
    %v663 = vcvt.s32.f32 %v655
    %v664 = vcvt.s32.f32 %v656
    %v665 = vcvt.s32.f32 %v657
    %v666 = vcvt.s32.f32 %v658
    %v667 = vcvt.s32.f32 %v659
    %v668 = vadd.f32 %v460, %v660
    %v669 = vadd.f32 %v461, %v661
    %v670 = vadd.f32 %v462, %v662
    %v671 = vadd.f32 %v463, %v663
    %v672 = vadd.f32 %v464, %v664
    %v673 = vadd.f32 %v465, %v665
    %v674 = vadd.f32 %v466, %v666
    %v675 = vadd.f32 %v467, %v667
    %v676 = vmul.f32 %v660, 1e+30
    %v677 = vmul.f32 %v661, 1e+30
    %v678 = vmul.f32 %v662, 1e+30
    %v679 = vmul.f32 %v663, 1e+30
    %v680 = vmul.f32 %v664, 1e+30
    %v681 = vmul.f32 %v665, 1e+30
    %v682 = vmul.f32 %v666, 1e+30
    %v683 = vmul.f32 %v667, 1e+30
    %v684 = vadd.f32 %v476, %v676
    %v685 = vadd.f32 %v477, %v677
    %v686 = vadd.f32 %v478, %v678
    %v687 = vadd.f32 %v479, %v679
    %v688 = vadd.f32 %v480, %v680
    %v689 = vadd.f32 %v481, %v681
    %v690 = vadd.f32 %v482, %v682
    %v691 = vadd.f32 %v483, %v683
    %v692 = vsel %vm275, %v684, inf
    %693 = vmin.xlane.f32.xlu0 %v692
    %v694 = vpop.xlane.xlu0 %693
    %v695 = vsel %vm275, %v685, inf
    %696 = vmin.xlane.f32.xlu0 %v695
    %v697 = vpop.xlane.xlu0 %696
    %v698 = vsel %vm275, %v686, inf
    %699 = vmin.xlane.f32.xlu0 %v698
    %v700 = vpop.xlane.xlu0 %699
    %v701 = vsel %vm275, %v687, inf
    %702 = vmin.xlane.f32.xlu0 %v701
    %v703 = vpop.xlane.xlu0 %702
    %v704 = vsel %vm275, %v688, inf
    %705 = vmin.xlane.f32.xlu0 %v704
    %v706 = vpop.xlane.xlu0 %705
    %v707 = vsel %vm275, %v689, inf
    %708 = vmin.xlane.f32.xlu0 %v707
    %v709 = vpop.xlane.xlu0 %708
    %v710 = vsel %vm275, %v690, inf
    %711 = vmin.xlane.f32.xlu0 %v710
    %v712 = vpop.xlane.xlu0 %711
    %v713 = vsel %vm275, %v691, inf
    %714 = vmin.xlane.f32.xlu0 %v713
    %v715 = vpop.xlane.xlu0 %714
    %vm716 = vcmp.le.f32.partialorder %v684, %v694
    %vm717 = vcmp.le.f32.partialorder %v685, %v697
    %vm718 = vcmp.le.f32.partialorder %v686, %v700
    %vm719 = vcmp.le.f32.partialorder %v687, %v703
    %vm720 = vcmp.le.f32.partialorder %v688, %v706
    %vm721 = vcmp.le.f32.partialorder %v689, %v709
    %vm722 = vcmp.le.f32.partialorder %v690, %v712
    %vm723 = vcmp.le.f32.partialorder %v691, %v715
    %v724 = vsel %vm716, %v128, 64
    %v725 = vsel %vm717, %v128, 64
    %v726 = vsel %vm718, %v128, 64
    %v727 = vsel %vm719, %v128, 64
    %v728 = vsel %vm720, %v128, 64
    %v729 = vsel %vm721, %v128, 64
    %v730 = vsel %vm722, %v128, 64
    %v731 = vsel %vm723, %v128, 64
    %v732 = vsel %vm275, %v724, 2147483647
    %v733 = vand.u32 %v732, 65535
    %v734 = vshra.s32 %v732, 16
    %v735 = vcvt.s32.f32 %v733
    %v736 = vcvt.s32.f32 %v734
    %737 = vmin.xlane.f32.xlu0 %v736
    %v738 = vpop.xlane.xlu0 %737
    %vm739 = vcmp.eq.f32.partialorder %v736, %v738
    %v740 = vsel %vm739, %v735, inf
    %741 = vmin.xlane.f32.xlu0 %v740
    %v742 = vpop.xlane.xlu0 %741
    %v743 = vcvt.f32.s32 %v742
    %v744 = vcvt.f32.s32 %v738
    %v745 = vshll.u32 %v744, 16
    %v746 = vadd.s32 %v745, %v743
    %v747 = vsel %vm275, %v725, 2147483647
    %v748 = vand.u32 %v747, 65535
    %v749 = vshra.s32 %v747, 16
    %v750 = vcvt.s32.f32 %v748
    %v751 = vcvt.s32.f32 %v749
    %752 = vmin.xlane.f32.xlu0 %v751
    %v753 = vpop.xlane.xlu0 %752
    %vm754 = vcmp.eq.f32.partialorder %v751, %v753
    %v755 = vsel %vm754, %v750, inf
    %756 = vmin.xlane.f32.xlu0 %v755
    %v757 = vpop.xlane.xlu0 %756
    %v758 = vcvt.f32.s32 %v757
    %v759 = vcvt.f32.s32 %v753
    %v760 = vshll.u32 %v759, 16
    %v761 = vadd.s32 %v760, %v758
    %v762 = vsel %vm275, %v726, 2147483647
    %v763 = vand.u32 %v762, 65535
    %v764 = vshra.s32 %v762, 16
    %v765 = vcvt.s32.f32 %v763
    %v766 = vcvt.s32.f32 %v764
    %767 = vmin.xlane.f32.xlu0 %v766
    %v768 = vpop.xlane.xlu0 %767
    %vm769 = vcmp.eq.f32.partialorder %v766, %v768
    %v770 = vsel %vm769, %v765, inf
    %771 = vmin.xlane.f32.xlu0 %v770
    %v772 = vpop.xlane.xlu0 %771
    %v773 = vcvt.f32.s32 %v772
    %v774 = vcvt.f32.s32 %v768
    %v775 = vshll.u32 %v774, 16
    %v776 = vadd.s32 %v775, %v773
    %v777 = vsel %vm275, %v727, 2147483647
    %v778 = vand.u32 %v777, 65535
    %v779 = vshra.s32 %v777, 16
    %v780 = vcvt.s32.f32 %v778
    %v781 = vcvt.s32.f32 %v779
    %782 = vmin.xlane.f32.xlu0 %v781
    %v783 = vpop.xlane.xlu0 %782
    %vm784 = vcmp.eq.f32.partialorder %v781, %v783
    %v785 = vsel %vm784, %v780, inf
    %786 = vmin.xlane.f32.xlu0 %v785
    %v787 = vpop.xlane.xlu0 %786
    %v788 = vcvt.f32.s32 %v787
    %v789 = vcvt.f32.s32 %v783
    %v790 = vshll.u32 %v789, 16
    %v791 = vadd.s32 %v790, %v788
    %v792 = vsel %vm275, %v728, 2147483647
    %v793 = vand.u32 %v792, 65535
    %v794 = vshra.s32 %v792, 16
    %v795 = vcvt.s32.f32 %v793
    %v796 = vcvt.s32.f32 %v794
    %797 = vmin.xlane.f32.xlu0 %v796
    %v798 = vpop.xlane.xlu0 %797
    %vm799 = vcmp.eq.f32.partialorder %v796, %v798
    %v800 = vsel %vm799, %v795, inf
    %801 = vmin.xlane.f32.xlu0 %v800
    %v802 = vpop.xlane.xlu0 %801
    %v803 = vcvt.f32.s32 %v802
    %v804 = vcvt.f32.s32 %v798
    %v805 = vshll.u32 %v804, 16
    %v806 = vadd.s32 %v805, %v803
    %v807 = vsel %vm275, %v729, 2147483647
    %v808 = vand.u32 %v807, 65535
    %v809 = vshra.s32 %v807, 16
    %v810 = vcvt.s32.f32 %v808
    %v811 = vcvt.s32.f32 %v809
    %812 = vmin.xlane.f32.xlu0 %v811
    %v813 = vpop.xlane.xlu0 %812
    %vm814 = vcmp.eq.f32.partialorder %v811, %v813
    %v815 = vsel %vm814, %v810, inf
    %816 = vmin.xlane.f32.xlu0 %v815
    %v817 = vpop.xlane.xlu0 %816
    %v818 = vcvt.f32.s32 %v817
    %v819 = vcvt.f32.s32 %v813
    %v820 = vshll.u32 %v819, 16
    %v821 = vadd.s32 %v820, %v818
    %v822 = vsel %vm275, %v730, 2147483647
    %v823 = vand.u32 %v822, 65535
    %v824 = vshra.s32 %v822, 16
    %v825 = vcvt.s32.f32 %v823
    %v826 = vcvt.s32.f32 %v824
    %827 = vmin.xlane.f32.xlu0 %v826
    %v828 = vpop.xlane.xlu0 %827
    %vm829 = vcmp.eq.f32.partialorder %v826, %v828
    %v830 = vsel %vm829, %v825, inf
    %831 = vmin.xlane.f32.xlu0 %v830
    %v832 = vpop.xlane.xlu0 %831
    %v833 = vcvt.f32.s32 %v832
    %v834 = vcvt.f32.s32 %v828
    %v835 = vshll.u32 %v834, 16
    %v836 = vadd.s32 %v835, %v833
    %v837 = vsel %vm275, %v731, 2147483647
    %v838 = vand.u32 %v837, 65535
    %v839 = vshra.s32 %v837, 16
    %v840 = vcvt.s32.f32 %v838
    %v841 = vcvt.s32.f32 %v839
    %842 = vmin.xlane.f32.xlu0 %v841
    %v843 = vpop.xlane.xlu0 %842
    %vm844 = vcmp.eq.f32.partialorder %v841, %v843
    %v845 = vsel %vm844, %v840, inf
    %846 = vmin.xlane.f32.xlu0 %v845
    %v847 = vpop.xlane.xlu0 %846
    %v848 = vcvt.f32.s32 %v847
    %v849 = vcvt.f32.s32 %v843
    %v850 = vshll.u32 %v849, 16
    %v851 = vadd.s32 %v850, %v848
    %vm852 = vcmp.eq.s32.totalorder %v128, %v746
    %vm853 = vcmp.eq.s32.totalorder %v128, %v761
    %vm854 = vcmp.eq.s32.totalorder %v128, %v776
    %vm855 = vcmp.eq.s32.totalorder %v128, %v791
    %vm856 = vcmp.eq.s32.totalorder %v128, %v806
    %vm857 = vcmp.eq.s32.totalorder %v128, %v821
    %vm858 = vcmp.eq.s32.totalorder %v128, %v836
    %vm859 = vcmp.eq.s32.totalorder %v128, %v851
    %v860 = vsel %vm852, 1, 0
    %v861 = vsel %vm853, 1, 0
    %v862 = vsel %vm854, 1, 0
    %v863 = vsel %vm855, 1, 0
    %v864 = vsel %vm856, 1, 0
    %v865 = vsel %vm857, 1, 0
    %v866 = vsel %vm858, 1, 0
    %v867 = vsel %vm859, 1, 0
    %v868 = vcvt.s32.f32 %v860
    %v869 = vcvt.s32.f32 %v861
    %v870 = vcvt.s32.f32 %v862
    %v871 = vcvt.s32.f32 %v863
    %v872 = vcvt.s32.f32 %v864
    %v873 = vcvt.s32.f32 %v865
    %v874 = vcvt.s32.f32 %v866
    %v875 = vcvt.s32.f32 %v867
    %v876 = vadd.f32 %v668, %v868
    %v877 = vadd.f32 %v669, %v869
    %v878 = vadd.f32 %v670, %v870
    %v879 = vadd.f32 %v671, %v871
    %v880 = vadd.f32 %v672, %v872
    %v881 = vadd.f32 %v673, %v873
    %v882 = vadd.f32 %v674, %v874
    %v883 = vadd.f32 %v675, %v875
    %v884 = vmul.f32 %v868, 1e+30
    %v885 = vmul.f32 %v869, 1e+30
    %v886 = vmul.f32 %v870, 1e+30
    %v887 = vmul.f32 %v871, 1e+30
    %v888 = vmul.f32 %v872, 1e+30
    %v889 = vmul.f32 %v873, 1e+30
    %v890 = vmul.f32 %v874, 1e+30
    %v891 = vmul.f32 %v875, 1e+30
    %v892 = vadd.f32 %v684, %v884
    %v893 = vadd.f32 %v685, %v885
    %v894 = vadd.f32 %v686, %v886
    %v895 = vadd.f32 %v687, %v887
    %v896 = vadd.f32 %v688, %v888
    %v897 = vadd.f32 %v689, %v889
    %v898 = vadd.f32 %v690, %v890
    %v899 = vadd.f32 %v691, %v891
    %v900 = vsel %vm275, %v892, inf
    %901 = vmin.xlane.f32.xlu0 %v900
    %v902 = vpop.xlane.xlu0 %901
    %v903 = vsel %vm275, %v893, inf
    %904 = vmin.xlane.f32.xlu0 %v903
    %v905 = vpop.xlane.xlu0 %904
    %v906 = vsel %vm275, %v894, inf
    %907 = vmin.xlane.f32.xlu0 %v906
    %v908 = vpop.xlane.xlu0 %907
    %v909 = vsel %vm275, %v895, inf
    %910 = vmin.xlane.f32.xlu0 %v909
    %v911 = vpop.xlane.xlu0 %910
    %v912 = vsel %vm275, %v896, inf
    %913 = vmin.xlane.f32.xlu0 %v912
    %v914 = vpop.xlane.xlu0 %913
    %v915 = vsel %vm275, %v897, inf
    %916 = vmin.xlane.f32.xlu0 %v915
    %v917 = vpop.xlane.xlu0 %916
    %v918 = vsel %vm275, %v898, inf
    %919 = vmin.xlane.f32.xlu0 %v918
    %v920 = vpop.xlane.xlu0 %919
    %v921 = vsel %vm275, %v899, inf
    %922 = vmin.xlane.f32.xlu0 %v921
    %v923 = vpop.xlane.xlu0 %922
    %vm924 = vcmp.le.f32.partialorder %v892, %v902
    %vm925 = vcmp.le.f32.partialorder %v893, %v905
    %vm926 = vcmp.le.f32.partialorder %v894, %v908
    %vm927 = vcmp.le.f32.partialorder %v895, %v911
    %vm928 = vcmp.le.f32.partialorder %v896, %v914
    %vm929 = vcmp.le.f32.partialorder %v897, %v917
    %vm930 = vcmp.le.f32.partialorder %v898, %v920
    %vm931 = vcmp.le.f32.partialorder %v899, %v923
    %v932 = vsel %vm924, %v128, 64
    %v933 = vsel %vm925, %v128, 64
    %v934 = vsel %vm926, %v128, 64
    %v935 = vsel %vm927, %v128, 64
    %v936 = vsel %vm928, %v128, 64
    %v937 = vsel %vm929, %v128, 64
    %v938 = vsel %vm930, %v128, 64
    %v939 = vsel %vm931, %v128, 64
    %v940 = vsel %vm275, %v932, 2147483647
    %v941 = vand.u32 %v940, 65535
    %v942 = vshra.s32 %v940, 16
    %v943 = vcvt.s32.f32 %v941
    %v944 = vcvt.s32.f32 %v942
    %945 = vmin.xlane.f32.xlu0 %v944
    %v946 = vpop.xlane.xlu0 %945
    %vm947 = vcmp.eq.f32.partialorder %v944, %v946
    %v948 = vsel %vm947, %v943, inf
    %949 = vmin.xlane.f32.xlu0 %v948
    %v950 = vpop.xlane.xlu0 %949
    %v951 = vcvt.f32.s32 %v950
    %v952 = vcvt.f32.s32 %v946
    %v953 = vshll.u32 %v952, 16
    %v954 = vadd.s32 %v953, %v951
    %v955 = vsel %vm275, %v933, 2147483647
    %v956 = vand.u32 %v955, 65535
    %v957 = vshra.s32 %v955, 16
    %v958 = vcvt.s32.f32 %v956
    %v959 = vcvt.s32.f32 %v957
    %960 = vmin.xlane.f32.xlu0 %v959
    %v961 = vpop.xlane.xlu0 %960
    %vm962 = vcmp.eq.f32.partialorder %v959, %v961
    %v963 = vsel %vm962, %v958, inf
    %964 = vmin.xlane.f32.xlu0 %v963
    %v965 = vpop.xlane.xlu0 %964
    %v966 = vcvt.f32.s32 %v965
    %v967 = vcvt.f32.s32 %v961
    %v968 = vshll.u32 %v967, 16
    %v969 = vadd.s32 %v968, %v966
    %v970 = vsel %vm275, %v934, 2147483647
    %v971 = vand.u32 %v970, 65535
    %v972 = vshra.s32 %v970, 16
    %v973 = vcvt.s32.f32 %v971
    %v974 = vcvt.s32.f32 %v972
    %975 = vmin.xlane.f32.xlu0 %v974
    %v976 = vpop.xlane.xlu0 %975
    %vm977 = vcmp.eq.f32.partialorder %v974, %v976
    %v978 = vsel %vm977, %v973, inf
    %979 = vmin.xlane.f32.xlu0 %v978
    %v980 = vpop.xlane.xlu0 %979
    %v981 = vcvt.f32.s32 %v980
    %v982 = vcvt.f32.s32 %v976
    %v983 = vshll.u32 %v982, 16
    %v984 = vadd.s32 %v983, %v981
    %v985 = vsel %vm275, %v935, 2147483647
    %v986 = vand.u32 %v985, 65535
    %v987 = vshra.s32 %v985, 16
    %v988 = vcvt.s32.f32 %v986
    %v989 = vcvt.s32.f32 %v987
    %990 = vmin.xlane.f32.xlu0 %v989
    %v991 = vpop.xlane.xlu0 %990
    %vm992 = vcmp.eq.f32.partialorder %v989, %v991
    %v993 = vsel %vm992, %v988, inf
    %994 = vmin.xlane.f32.xlu0 %v993
    %v995 = vpop.xlane.xlu0 %994
    %v996 = vcvt.f32.s32 %v995
    %v997 = vcvt.f32.s32 %v991
    %v998 = vshll.u32 %v997, 16
    %v999 = vadd.s32 %v998, %v996
    %v1000 = vsel %vm275, %v936, 2147483647
    %v1001 = vand.u32 %v1000, 65535
    %v1002 = vshra.s32 %v1000, 16
    %v1003 = vcvt.s32.f32 %v1001
    %v1004 = vcvt.s32.f32 %v1002
    %1005 = vmin.xlane.f32.xlu0 %v1004
    %v1006 = vpop.xlane.xlu0 %1005
    %vm1007 = vcmp.eq.f32.partialorder %v1004, %v1006
    %v1008 = vsel %vm1007, %v1003, inf
    %1009 = vmin.xlane.f32.xlu0 %v1008
    %v1010 = vpop.xlane.xlu0 %1009
    %v1011 = vcvt.f32.s32 %v1010
    %v1012 = vcvt.f32.s32 %v1006
    %v1013 = vshll.u32 %v1012, 16
    %v1014 = vadd.s32 %v1013, %v1011
    %v1015 = vsel %vm275, %v937, 2147483647
    %v1016 = vand.u32 %v1015, 65535
    %v1017 = vshra.s32 %v1015, 16
    %v1018 = vcvt.s32.f32 %v1016
    %v1019 = vcvt.s32.f32 %v1017
    %1020 = vmin.xlane.f32.xlu0 %v1019
    %v1021 = vpop.xlane.xlu0 %1020
    %vm1022 = vcmp.eq.f32.partialorder %v1019, %v1021
    %v1023 = vsel %vm1022, %v1018, inf
    %1024 = vmin.xlane.f32.xlu0 %v1023
    %v1025 = vpop.xlane.xlu0 %1024
    %v1026 = vcvt.f32.s32 %v1025
    %v1027 = vcvt.f32.s32 %v1021
    %v1028 = vshll.u32 %v1027, 16
    %v1029 = vadd.s32 %v1028, %v1026
    %v1030 = vsel %vm275, %v938, 2147483647
    %v1031 = vand.u32 %v1030, 65535
    %v1032 = vshra.s32 %v1030, 16
    %v1033 = vcvt.s32.f32 %v1031
    %v1034 = vcvt.s32.f32 %v1032
    %1035 = vmin.xlane.f32.xlu0 %v1034
    %v1036 = vpop.xlane.xlu0 %1035
    %vm1037 = vcmp.eq.f32.partialorder %v1034, %v1036
    %v1038 = vsel %vm1037, %v1033, inf
    %1039 = vmin.xlane.f32.xlu0 %v1038
    %v1040 = vpop.xlane.xlu0 %1039
    %v1041 = vcvt.f32.s32 %v1040
    %v1042 = vcvt.f32.s32 %v1036
    %v1043 = vshll.u32 %v1042, 16
    %v1044 = vadd.s32 %v1043, %v1041
    %v1045 = vsel %vm275, %v939, 2147483647
    %v1046 = vand.u32 %v1045, 65535
    %v1047 = vshra.s32 %v1045, 16
    %v1048 = vcvt.s32.f32 %v1046
    %v1049 = vcvt.s32.f32 %v1047
    %1050 = vmin.xlane.f32.xlu0 %v1049
    %v1051 = vpop.xlane.xlu0 %1050
    %vm1052 = vcmp.eq.f32.partialorder %v1049, %v1051
    %v1053 = vsel %vm1052, %v1048, inf
    %1054 = vmin.xlane.f32.xlu0 %v1053
    %v1055 = vpop.xlane.xlu0 %1054
    %v1056 = vcvt.f32.s32 %v1055
    %v1057 = vcvt.f32.s32 %v1051
    %v1058 = vshll.u32 %v1057, 16
    %v1059 = vadd.s32 %v1058, %v1056
    %vm1060 = vcmp.eq.s32.totalorder %v128, %v954
    %vm1061 = vcmp.eq.s32.totalorder %v128, %v969
    %vm1062 = vcmp.eq.s32.totalorder %v128, %v984
    %vm1063 = vcmp.eq.s32.totalorder %v128, %v999
    %vm1064 = vcmp.eq.s32.totalorder %v128, %v1014
    %vm1065 = vcmp.eq.s32.totalorder %v128, %v1029
    %vm1066 = vcmp.eq.s32.totalorder %v128, %v1044
    %vm1067 = vcmp.eq.s32.totalorder %v128, %v1059
    %v1068 = vsel %vm1060, 1, 0
    %v1069 = vsel %vm1061, 1, 0
    %v1070 = vsel %vm1062, 1, 0
    %v1071 = vsel %vm1063, 1, 0
    %v1072 = vsel %vm1064, 1, 0
    %v1073 = vsel %vm1065, 1, 0
    %v1074 = vsel %vm1066, 1, 0
    %v1075 = vsel %vm1067, 1, 0
    %v1076 = vcvt.s32.f32 %v1068
    %v1077 = vcvt.s32.f32 %v1069
    %v1078 = vcvt.s32.f32 %v1070
    %v1079 = vcvt.s32.f32 %v1071
    %v1080 = vcvt.s32.f32 %v1072
    %v1081 = vcvt.s32.f32 %v1073
    %v1082 = vcvt.s32.f32 %v1074
    %v1083 = vcvt.s32.f32 %v1075
    %v1084 = vadd.f32 %v876, %v1076
    %v1085 = vadd.f32 %v877, %v1077
    %v1086 = vadd.f32 %v878, %v1078
    %v1087 = vadd.f32 %v879, %v1079
    %v1088 = vadd.f32 %v880, %v1080
    %v1089 = vadd.f32 %v881, %v1081
    %v1090 = vadd.f32 %v882, %v1082
    %v1091 = vadd.f32 %v883, %v1083
    %v1092 = vmul.f32 %v1076, 1e+30
    %v1093 = vmul.f32 %v1077, 1e+30
    %v1094 = vmul.f32 %v1078, 1e+30
    %v1095 = vmul.f32 %v1079, 1e+30
    %v1096 = vmul.f32 %v1080, 1e+30
    %v1097 = vmul.f32 %v1081, 1e+30
    %v1098 = vmul.f32 %v1082, 1e+30
    %v1099 = vmul.f32 %v1083, 1e+30
    %v1100 = vadd.f32 %v892, %v1092
    %v1101 = vadd.f32 %v893, %v1093
    %v1102 = vadd.f32 %v894, %v1094
    %v1103 = vadd.f32 %v895, %v1095
    %v1104 = vadd.f32 %v896, %v1096
    %v1105 = vadd.f32 %v897, %v1097
    %v1106 = vadd.f32 %v898, %v1098
    %v1107 = vadd.f32 %v899, %v1099
    %v1108 = vsel %vm275, %v1100, inf
    %1109 = vmin.xlane.f32.xlu0 %v1108
    %v1110 = vpop.xlane.xlu0 %1109
    %v1111 = vsel %vm275, %v1101, inf
    %1112 = vmin.xlane.f32.xlu0 %v1111
    %v1113 = vpop.xlane.xlu0 %1112
    %v1114 = vsel %vm275, %v1102, inf
    %1115 = vmin.xlane.f32.xlu0 %v1114
    %v1116 = vpop.xlane.xlu0 %1115
    %v1117 = vsel %vm275, %v1103, inf
    %1118 = vmin.xlane.f32.xlu0 %v1117
    %v1119 = vpop.xlane.xlu0 %1118
    %v1120 = vsel %vm275, %v1104, inf
    %1121 = vmin.xlane.f32.xlu0 %v1120
    %v1122 = vpop.xlane.xlu0 %1121
    %v1123 = vsel %vm275, %v1105, inf
    %1124 = vmin.xlane.f32.xlu0 %v1123
    %v1125 = vpop.xlane.xlu0 %1124
    %v1126 = vsel %vm275, %v1106, inf
    %1127 = vmin.xlane.f32.xlu0 %v1126
    %v1128 = vpop.xlane.xlu0 %1127
    %v1129 = vsel %vm275, %v1107, inf
    %1130 = vmin.xlane.f32.xlu0 %v1129
    %v1131 = vpop.xlane.xlu0 %1130
    %vm1132 = vcmp.le.f32.partialorder %v1100, %v1110
    %vm1133 = vcmp.le.f32.partialorder %v1101, %v1113
    %vm1134 = vcmp.le.f32.partialorder %v1102, %v1116
    %vm1135 = vcmp.le.f32.partialorder %v1103, %v1119
    %vm1136 = vcmp.le.f32.partialorder %v1104, %v1122
    %vm1137 = vcmp.le.f32.partialorder %v1105, %v1125
    %vm1138 = vcmp.le.f32.partialorder %v1106, %v1128
    %vm1139 = vcmp.le.f32.partialorder %v1107, %v1131
    %v1140 = vsel %vm1132, %v128, 64
    %v1141 = vsel %vm1133, %v128, 64
    %v1142 = vsel %vm1134, %v128, 64
    %v1143 = vsel %vm1135, %v128, 64
    %v1144 = vsel %vm1136, %v128, 64
    %v1145 = vsel %vm1137, %v128, 64
    %v1146 = vsel %vm1138, %v128, 64
    %v1147 = vsel %vm1139, %v128, 64
    %v1148 = vsel %vm275, %v1140, 2147483647
    %v1149 = vand.u32 %v1148, 65535
    %v1150 = vshra.s32 %v1148, 16
    %v1151 = vcvt.s32.f32 %v1149
    %v1152 = vcvt.s32.f32 %v1150
    %1153 = vmin.xlane.f32.xlu0 %v1152
    %v1154 = vpop.xlane.xlu0 %1153
    %vm1155 = vcmp.eq.f32.partialorder %v1152, %v1154
    %v1156 = vsel %vm1155, %v1151, inf
    %1157 = vmin.xlane.f32.xlu0 %v1156
    %v1158 = vpop.xlane.xlu0 %1157
    %v1159 = vcvt.f32.s32 %v1158
    %v1160 = vcvt.f32.s32 %v1154
    %v1161 = vshll.u32 %v1160, 16
    %v1162 = vadd.s32 %v1161, %v1159
    %v1163 = vsel %vm275, %v1141, 2147483647
    %v1164 = vand.u32 %v1163, 65535
    %v1165 = vshra.s32 %v1163, 16
    %v1166 = vcvt.s32.f32 %v1164
    %v1167 = vcvt.s32.f32 %v1165
    %1168 = vmin.xlane.f32.xlu0 %v1167
    %v1169 = vpop.xlane.xlu0 %1168
    %vm1170 = vcmp.eq.f32.partialorder %v1167, %v1169
    %v1171 = vsel %vm1170, %v1166, inf
    %1172 = vmin.xlane.f32.xlu0 %v1171
    %v1173 = vpop.xlane.xlu0 %1172
    %v1174 = vcvt.f32.s32 %v1173
    %v1175 = vcvt.f32.s32 %v1169
    %v1176 = vshll.u32 %v1175, 16
    %v1177 = vadd.s32 %v1176, %v1174
    %v1178 = vsel %vm275, %v1142, 2147483647
    %v1179 = vand.u32 %v1178, 65535
    %v1180 = vshra.s32 %v1178, 16
    %v1181 = vcvt.s32.f32 %v1179
    %v1182 = vcvt.s32.f32 %v1180
    %1183 = vmin.xlane.f32.xlu0 %v1182
    %v1184 = vpop.xlane.xlu0 %1183
    %vm1185 = vcmp.eq.f32.partialorder %v1182, %v1184
    %v1186 = vsel %vm1185, %v1181, inf
    %1187 = vmin.xlane.f32.xlu0 %v1186
    %v1188 = vpop.xlane.xlu0 %1187
    %v1189 = vcvt.f32.s32 %v1188
    %v1190 = vcvt.f32.s32 %v1184
    %v1191 = vshll.u32 %v1190, 16
    %v1192 = vadd.s32 %v1191, %v1189
    %v1193 = vsel %vm275, %v1143, 2147483647
    %v1194 = vand.u32 %v1193, 65535
    %v1195 = vshra.s32 %v1193, 16
    %v1196 = vcvt.s32.f32 %v1194
    %v1197 = vcvt.s32.f32 %v1195
    %1198 = vmin.xlane.f32.xlu0 %v1197
    %v1199 = vpop.xlane.xlu0 %1198
    %vm1200 = vcmp.eq.f32.partialorder %v1197, %v1199
    %v1201 = vsel %vm1200, %v1196, inf
    %1202 = vmin.xlane.f32.xlu0 %v1201
    %v1203 = vpop.xlane.xlu0 %1202
    %v1204 = vcvt.f32.s32 %v1203
    %v1205 = vcvt.f32.s32 %v1199
    %v1206 = vshll.u32 %v1205, 16
    %v1207 = vadd.s32 %v1206, %v1204
    %v1208 = vsel %vm275, %v1144, 2147483647
    %v1209 = vand.u32 %v1208, 65535
    %v1210 = vshra.s32 %v1208, 16
    %v1211 = vcvt.s32.f32 %v1209
    %v1212 = vcvt.s32.f32 %v1210
    %1213 = vmin.xlane.f32.xlu0 %v1212
    %v1214 = vpop.xlane.xlu0 %1213
    %vm1215 = vcmp.eq.f32.partialorder %v1212, %v1214
    %v1216 = vsel %vm1215, %v1211, inf
    %1217 = vmin.xlane.f32.xlu0 %v1216
    %v1218 = vpop.xlane.xlu0 %1217
    %v1219 = vcvt.f32.s32 %v1218
    %v1220 = vcvt.f32.s32 %v1214
    %v1221 = vshll.u32 %v1220, 16
    %v1222 = vadd.s32 %v1221, %v1219
    %v1223 = vsel %vm275, %v1145, 2147483647
    %v1224 = vand.u32 %v1223, 65535
    %v1225 = vshra.s32 %v1223, 16
    %v1226 = vcvt.s32.f32 %v1224
    %v1227 = vcvt.s32.f32 %v1225
    %1228 = vmin.xlane.f32.xlu0 %v1227
    %v1229 = vpop.xlane.xlu0 %1228
    %vm1230 = vcmp.eq.f32.partialorder %v1227, %v1229
    %v1231 = vsel %vm1230, %v1226, inf
    %1232 = vmin.xlane.f32.xlu0 %v1231
    %v1233 = vpop.xlane.xlu0 %1232
    %v1234 = vcvt.f32.s32 %v1233
    %v1235 = vcvt.f32.s32 %v1229
    %v1236 = vshll.u32 %v1235, 16
    %v1237 = vadd.s32 %v1236, %v1234
    %v1238 = vsel %vm275, %v1146, 2147483647
    %v1239 = vand.u32 %v1238, 65535
    %v1240 = vshra.s32 %v1238, 16
    %v1241 = vcvt.s32.f32 %v1239
    %v1242 = vcvt.s32.f32 %v1240
    %1243 = vmin.xlane.f32.xlu0 %v1242
    %v1244 = vpop.xlane.xlu0 %1243
    %vm1245 = vcmp.eq.f32.partialorder %v1242, %v1244
    %v1246 = vsel %vm1245, %v1241, inf
    %1247 = vmin.xlane.f32.xlu0 %v1246
    %v1248 = vpop.xlane.xlu0 %1247
    %v1249 = vcvt.f32.s32 %v1248
    %v1250 = vcvt.f32.s32 %v1244
    %v1251 = vshll.u32 %v1250, 16
    %v1252 = vadd.s32 %v1251, %v1249
    %v1253 = vsel %vm275, %v1147, 2147483647
    %v1254 = vand.u32 %v1253, 65535
    %v1255 = vshra.s32 %v1253, 16
    %v1256 = vcvt.s32.f32 %v1254
    %v1257 = vcvt.s32.f32 %v1255
    %1258 = vmin.xlane.f32.xlu0 %v1257
    %v1259 = vpop.xlane.xlu0 %1258
    %vm1260 = vcmp.eq.f32.partialorder %v1257, %v1259
    %v1261 = vsel %vm1260, %v1256, inf
    %1262 = vmin.xlane.f32.xlu0 %v1261
    %v1263 = vpop.xlane.xlu0 %1262
    %v1264 = vcvt.f32.s32 %v1263
    %v1265 = vcvt.f32.s32 %v1259
    %v1266 = vshll.u32 %v1265, 16
    %v1267 = vadd.s32 %v1266, %v1264
    %vm1268 = vcmp.eq.s32.totalorder %v128, %v1162
    %vm1269 = vcmp.eq.s32.totalorder %v128, %v1177
    %vm1270 = vcmp.eq.s32.totalorder %v128, %v1192
    %vm1271 = vcmp.eq.s32.totalorder %v128, %v1207
    %vm1272 = vcmp.eq.s32.totalorder %v128, %v1222
    %vm1273 = vcmp.eq.s32.totalorder %v128, %v1237
    %vm1274 = vcmp.eq.s32.totalorder %v128, %v1252
    %vm1275 = vcmp.eq.s32.totalorder %v128, %v1267
    %v1276 = vsel %vm1268, 1, 0
    %v1277 = vsel %vm1269, 1, 0
    %v1278 = vsel %vm1270, 1, 0
    %v1279 = vsel %vm1271, 1, 0
    %v1280 = vsel %vm1272, 1, 0
    %v1281 = vsel %vm1273, 1, 0
    %v1282 = vsel %vm1274, 1, 0
    %v1283 = vsel %vm1275, 1, 0
    %v1284 = vcvt.s32.f32 %v1276
    %v1285 = vcvt.s32.f32 %v1277
    %v1286 = vcvt.s32.f32 %v1278
    %v1287 = vcvt.s32.f32 %v1279
    %v1288 = vcvt.s32.f32 %v1280
    %v1289 = vcvt.s32.f32 %v1281
    %v1290 = vcvt.s32.f32 %v1282
    %v1291 = vcvt.s32.f32 %v1283
    %v1292 = vadd.f32 %v1084, %v1284
    %v1293 = vadd.f32 %v1085, %v1285
    %v1294 = vadd.f32 %v1086, %v1286
    %v1295 = vadd.f32 %v1087, %v1287
    %v1296 = vadd.f32 %v1088, %v1288
    %v1297 = vadd.f32 %v1089, %v1289
    %v1298 = vadd.f32 %v1090, %v1290
    %v1299 = vadd.f32 %v1091, %v1291
    %v1300 = vmul.f32 %v1284, 1e+30
    %v1301 = vmul.f32 %v1285, 1e+30
    %v1302 = vmul.f32 %v1286, 1e+30
    %v1303 = vmul.f32 %v1287, 1e+30
    %v1304 = vmul.f32 %v1288, 1e+30
    %v1305 = vmul.f32 %v1289, 1e+30
    %v1306 = vmul.f32 %v1290, 1e+30
    %v1307 = vmul.f32 %v1291, 1e+30
    %v1308 = vadd.f32 %v1100, %v1300
    %v1309 = vadd.f32 %v1101, %v1301
    %v1310 = vadd.f32 %v1102, %v1302
    %v1311 = vadd.f32 %v1103, %v1303
    %v1312 = vadd.f32 %v1104, %v1304
    %v1313 = vadd.f32 %v1105, %v1305
    %v1314 = vadd.f32 %v1106, %v1306
    %v1315 = vadd.f32 %v1107, %v1307
    %v1316 = vsel %vm275, %v1308, inf
    %1317 = vmin.xlane.f32.xlu0 %v1316
    %v1318 = vpop.xlane.xlu0 %1317
    %v1319 = vsel %vm275, %v1309, inf
    %1320 = vmin.xlane.f32.xlu0 %v1319
    %v1321 = vpop.xlane.xlu0 %1320
    %v1322 = vsel %vm275, %v1310, inf
    %1323 = vmin.xlane.f32.xlu0 %v1322
    %v1324 = vpop.xlane.xlu0 %1323
    %v1325 = vsel %vm275, %v1311, inf
    %1326 = vmin.xlane.f32.xlu0 %v1325
    %v1327 = vpop.xlane.xlu0 %1326
    %v1328 = vsel %vm275, %v1312, inf
    %1329 = vmin.xlane.f32.xlu0 %v1328
    %v1330 = vpop.xlane.xlu0 %1329
    %v1331 = vsel %vm275, %v1313, inf
    %1332 = vmin.xlane.f32.xlu0 %v1331
    %v1333 = vpop.xlane.xlu0 %1332
    %v1334 = vsel %vm275, %v1314, inf
    %1335 = vmin.xlane.f32.xlu0 %v1334
    %v1336 = vpop.xlane.xlu0 %1335
    %v1337 = vsel %vm275, %v1315, inf
    %1338 = vmin.xlane.f32.xlu0 %v1337
    %v1339 = vpop.xlane.xlu0 %1338
    %vm1340 = vcmp.le.f32.partialorder %v1308, %v1318
    %vm1341 = vcmp.le.f32.partialorder %v1309, %v1321
    %vm1342 = vcmp.le.f32.partialorder %v1310, %v1324
    %vm1343 = vcmp.le.f32.partialorder %v1311, %v1327
    %vm1344 = vcmp.le.f32.partialorder %v1312, %v1330
    %vm1345 = vcmp.le.f32.partialorder %v1313, %v1333
    %vm1346 = vcmp.le.f32.partialorder %v1314, %v1336
    %vm1347 = vcmp.le.f32.partialorder %v1315, %v1339
    %v1348 = vsel %vm1340, %v128, 64
    %v1349 = vsel %vm1341, %v128, 64
    %v1350 = vsel %vm1342, %v128, 64
    %v1351 = vsel %vm1343, %v128, 64
    %v1352 = vsel %vm1344, %v128, 64
    %v1353 = vsel %vm1345, %v128, 64
    %v1354 = vsel %vm1346, %v128, 64
    %v1355 = vsel %vm1347, %v128, 64
    %v1356 = vsel %vm275, %v1348, 2147483647
    %v1357 = vand.u32 %v1356, 65535
    %v1358 = vshra.s32 %v1356, 16
    %v1359 = vcvt.s32.f32 %v1357
    %v1360 = vcvt.s32.f32 %v1358
    %1361 = vmin.xlane.f32.xlu0 %v1360
    %v1362 = vpop.xlane.xlu0 %1361
    %vm1363 = vcmp.eq.f32.partialorder %v1360, %v1362
    %v1364 = vsel %vm1363, %v1359, inf
    %1365 = vmin.xlane.f32.xlu0 %v1364
    %v1366 = vpop.xlane.xlu0 %1365
    %v1367 = vcvt.f32.s32 %v1366
    %v1368 = vcvt.f32.s32 %v1362
    %v1369 = vshll.u32 %v1368, 16
    %v1370 = vadd.s32 %v1369, %v1367
    %v1371 = vsel %vm275, %v1349, 2147483647
    %v1372 = vand.u32 %v1371, 65535
    %v1373 = vshra.s32 %v1371, 16
    %v1374 = vcvt.s32.f32 %v1372
    %v1375 = vcvt.s32.f32 %v1373
    %1376 = vmin.xlane.f32.xlu0 %v1375
    %v1377 = vpop.xlane.xlu0 %1376
    %vm1378 = vcmp.eq.f32.partialorder %v1375, %v1377
    %v1379 = vsel %vm1378, %v1374, inf
    %1380 = vmin.xlane.f32.xlu0 %v1379
    %v1381 = vpop.xlane.xlu0 %1380
    %v1382 = vcvt.f32.s32 %v1381
    %v1383 = vcvt.f32.s32 %v1377
    %v1384 = vshll.u32 %v1383, 16
    %v1385 = vadd.s32 %v1384, %v1382
    %v1386 = vsel %vm275, %v1350, 2147483647
    %v1387 = vand.u32 %v1386, 65535
    %v1388 = vshra.s32 %v1386, 16
    %v1389 = vcvt.s32.f32 %v1387
    %v1390 = vcvt.s32.f32 %v1388
    %1391 = vmin.xlane.f32.xlu0 %v1390
    %v1392 = vpop.xlane.xlu0 %1391
    %vm1393 = vcmp.eq.f32.partialorder %v1390, %v1392
    %v1394 = vsel %vm1393, %v1389, inf
    %1395 = vmin.xlane.f32.xlu0 %v1394
    %v1396 = vpop.xlane.xlu0 %1395
    %v1397 = vcvt.f32.s32 %v1396
    %v1398 = vcvt.f32.s32 %v1392
    %v1399 = vshll.u32 %v1398, 16
    %v1400 = vadd.s32 %v1399, %v1397
    %v1401 = vsel %vm275, %v1351, 2147483647
    %v1402 = vand.u32 %v1401, 65535
    %v1403 = vshra.s32 %v1401, 16
    %v1404 = vcvt.s32.f32 %v1402
    %v1405 = vcvt.s32.f32 %v1403
    %1406 = vmin.xlane.f32.xlu0 %v1405
    %v1407 = vpop.xlane.xlu0 %1406
    %vm1408 = vcmp.eq.f32.partialorder %v1405, %v1407
    %v1409 = vsel %vm1408, %v1404, inf
    %1410 = vmin.xlane.f32.xlu0 %v1409
    %v1411 = vpop.xlane.xlu0 %1410
    %v1412 = vcvt.f32.s32 %v1411
    %v1413 = vcvt.f32.s32 %v1407
    %v1414 = vshll.u32 %v1413, 16
    %v1415 = vadd.s32 %v1414, %v1412
    %v1416 = vsel %vm275, %v1352, 2147483647
    %v1417 = vand.u32 %v1416, 65535
    %v1418 = vshra.s32 %v1416, 16
    %v1419 = vcvt.s32.f32 %v1417
    %v1420 = vcvt.s32.f32 %v1418
    %1421 = vmin.xlane.f32.xlu0 %v1420
    %v1422 = vpop.xlane.xlu0 %1421
    %vm1423 = vcmp.eq.f32.partialorder %v1420, %v1422
    %v1424 = vsel %vm1423, %v1419, inf
    %1425 = vmin.xlane.f32.xlu0 %v1424
    %v1426 = vpop.xlane.xlu0 %1425
    %v1427 = vcvt.f32.s32 %v1426
    %v1428 = vcvt.f32.s32 %v1422
    %v1429 = vshll.u32 %v1428, 16
    %v1430 = vadd.s32 %v1429, %v1427
    %v1431 = vsel %vm275, %v1353, 2147483647
    %v1432 = vand.u32 %v1431, 65535
    %v1433 = vshra.s32 %v1431, 16
    %v1434 = vcvt.s32.f32 %v1432
    %v1435 = vcvt.s32.f32 %v1433
    %1436 = vmin.xlane.f32.xlu0 %v1435
    %v1437 = vpop.xlane.xlu0 %1436
    %vm1438 = vcmp.eq.f32.partialorder %v1435, %v1437
    %v1439 = vsel %vm1438, %v1434, inf
    %1440 = vmin.xlane.f32.xlu0 %v1439
    %v1441 = vpop.xlane.xlu0 %1440
    %v1442 = vcvt.f32.s32 %v1441
    %v1443 = vcvt.f32.s32 %v1437
    %v1444 = vshll.u32 %v1443, 16
    %v1445 = vadd.s32 %v1444, %v1442
    %v1446 = vsel %vm275, %v1354, 2147483647
    %v1447 = vand.u32 %v1446, 65535
    %v1448 = vshra.s32 %v1446, 16
    %v1449 = vcvt.s32.f32 %v1447
    %v1450 = vcvt.s32.f32 %v1448
    %1451 = vmin.xlane.f32.xlu0 %v1450
    %v1452 = vpop.xlane.xlu0 %1451
    %vm1453 = vcmp.eq.f32.partialorder %v1450, %v1452
    %v1454 = vsel %vm1453, %v1449, inf
    %1455 = vmin.xlane.f32.xlu0 %v1454
    %v1456 = vpop.xlane.xlu0 %1455
    %v1457 = vcvt.f32.s32 %v1456
    %v1458 = vcvt.f32.s32 %v1452
    %v1459 = vshll.u32 %v1458, 16
    %v1460 = vadd.s32 %v1459, %v1457
    %v1461 = vsel %vm275, %v1355, 2147483647
    %v1462 = vand.u32 %v1461, 65535
    %v1463 = vshra.s32 %v1461, 16
    %v1464 = vcvt.s32.f32 %v1462
    %v1465 = vcvt.s32.f32 %v1463
    %1466 = vmin.xlane.f32.xlu0 %v1465
    %v1467 = vpop.xlane.xlu0 %1466
    %vm1468 = vcmp.eq.f32.partialorder %v1465, %v1467
    %v1469 = vsel %vm1468, %v1464, inf
    %1470 = vmin.xlane.f32.xlu0 %v1469
    %v1471 = vpop.xlane.xlu0 %1470
    %v1472 = vcvt.f32.s32 %v1471
    %v1473 = vcvt.f32.s32 %v1467
    %v1474 = vshll.u32 %v1473, 16
    %v1475 = vadd.s32 %v1474, %v1472
    %vm1476 = vcmp.eq.s32.totalorder %v128, %v1370
    %vm1477 = vcmp.eq.s32.totalorder %v128, %v1385
    %vm1478 = vcmp.eq.s32.totalorder %v128, %v1400
    %vm1479 = vcmp.eq.s32.totalorder %v128, %v1415
    %vm1480 = vcmp.eq.s32.totalorder %v128, %v1430
    %vm1481 = vcmp.eq.s32.totalorder %v128, %v1445
    %vm1482 = vcmp.eq.s32.totalorder %v128, %v1460
    %vm1483 = vcmp.eq.s32.totalorder %v128, %v1475
    %v1484 = vsel %vm1476, 1, 0
    %v1485 = vsel %vm1477, 1, 0
    %v1486 = vsel %vm1478, 1, 0
    %v1487 = vsel %vm1479, 1, 0
    %v1488 = vsel %vm1480, 1, 0
    %v1489 = vsel %vm1481, 1, 0
    %v1490 = vsel %vm1482, 1, 0
    %v1491 = vsel %vm1483, 1, 0
    %v1492 = vcvt.s32.f32 %v1484
    %v1493 = vcvt.s32.f32 %v1485
    %v1494 = vcvt.s32.f32 %v1486
    %v1495 = vcvt.s32.f32 %v1487
    %v1496 = vcvt.s32.f32 %v1488
    %v1497 = vcvt.s32.f32 %v1489
    %v1498 = vcvt.s32.f32 %v1490
    %v1499 = vcvt.s32.f32 %v1491
    %v1500 = vadd.f32 %v1292, %v1492
    %v1501 = vadd.f32 %v1293, %v1493
    %v1502 = vadd.f32 %v1294, %v1494
    %v1503 = vadd.f32 %v1295, %v1495
    %v1504 = vadd.f32 %v1296, %v1496
    %v1505 = vadd.f32 %v1297, %v1497
    %v1506 = vadd.f32 %v1298, %v1498
    %v1507 = vadd.f32 %v1299, %v1499
    %v1508 = vmul.f32 %v1492, 1e+30
    %v1509 = vmul.f32 %v1493, 1e+30
    %v1510 = vmul.f32 %v1494, 1e+30
    %v1511 = vmul.f32 %v1495, 1e+30
    %v1512 = vmul.f32 %v1496, 1e+30
    %v1513 = vmul.f32 %v1497, 1e+30
    %v1514 = vmul.f32 %v1498, 1e+30
    %v1515 = vmul.f32 %v1499, 1e+30
    %v1516 = vadd.f32 %v1308, %v1508
    %v1517 = vadd.f32 %v1309, %v1509
    %v1518 = vadd.f32 %v1310, %v1510
    %v1519 = vadd.f32 %v1311, %v1511
    %v1520 = vadd.f32 %v1312, %v1512
    %v1521 = vadd.f32 %v1313, %v1513
    %v1522 = vadd.f32 %v1314, %v1514
    %v1523 = vadd.f32 %v1315, %v1515
    %v1524 = vsel %vm275, %v1516, inf
    %1525 = vmin.xlane.f32.xlu0 %v1524
    %v1526 = vpop.xlane.xlu0 %1525
    %v1527 = vsel %vm275, %v1517, inf
    %1528 = vmin.xlane.f32.xlu0 %v1527
    %v1529 = vpop.xlane.xlu0 %1528
    %v1530 = vsel %vm275, %v1518, inf
    %1531 = vmin.xlane.f32.xlu0 %v1530
    %v1532 = vpop.xlane.xlu0 %1531
    %v1533 = vsel %vm275, %v1519, inf
    %1534 = vmin.xlane.f32.xlu0 %v1533
    %v1535 = vpop.xlane.xlu0 %1534
    %v1536 = vsel %vm275, %v1520, inf
    %1537 = vmin.xlane.f32.xlu0 %v1536
    %v1538 = vpop.xlane.xlu0 %1537
    %v1539 = vsel %vm275, %v1521, inf
    %1540 = vmin.xlane.f32.xlu0 %v1539
    %v1541 = vpop.xlane.xlu0 %1540
    %v1542 = vsel %vm275, %v1522, inf
    %1543 = vmin.xlane.f32.xlu0 %v1542
    %v1544 = vpop.xlane.xlu0 %1543
    %v1545 = vsel %vm275, %v1523, inf
    %1546 = vmin.xlane.f32.xlu0 %v1545
    %v1547 = vpop.xlane.xlu0 %1546
    %vm1548 = vcmp.le.f32.partialorder %v1516, %v1526
    %vm1549 = vcmp.le.f32.partialorder %v1517, %v1529
    %vm1550 = vcmp.le.f32.partialorder %v1518, %v1532
    %vm1551 = vcmp.le.f32.partialorder %v1519, %v1535
    %vm1552 = vcmp.le.f32.partialorder %v1520, %v1538
    %vm1553 = vcmp.le.f32.partialorder %v1521, %v1541
    %vm1554 = vcmp.le.f32.partialorder %v1522, %v1544
    %vm1555 = vcmp.le.f32.partialorder %v1523, %v1547
    %v1556 = vsel %vm1548, %v128, 64
    %v1557 = vsel %vm1549, %v128, 64
    %v1558 = vsel %vm1550, %v128, 64
    %v1559 = vsel %vm1551, %v128, 64
    %v1560 = vsel %vm1552, %v128, 64
    %v1561 = vsel %vm1553, %v128, 64
    %v1562 = vsel %vm1554, %v128, 64
    %v1563 = vsel %vm1555, %v128, 64
    %v1564 = vsel %vm275, %v1556, 2147483647
    %v1565 = vand.u32 %v1564, 65535
    %v1566 = vshra.s32 %v1564, 16
    %v1567 = vcvt.s32.f32 %v1565
    %v1568 = vcvt.s32.f32 %v1566
    %1569 = vmin.xlane.f32.xlu0 %v1568
    %v1570 = vpop.xlane.xlu0 %1569
    %vm1571 = vcmp.eq.f32.partialorder %v1568, %v1570
    %v1572 = vsel %vm1571, %v1567, inf
    %1573 = vmin.xlane.f32.xlu0 %v1572
    %v1574 = vpop.xlane.xlu0 %1573
    %v1575 = vcvt.f32.s32 %v1574
    %v1576 = vcvt.f32.s32 %v1570
    %v1577 = vshll.u32 %v1576, 16
    %v1578 = vadd.s32 %v1577, %v1575
    %v1579 = vsel %vm275, %v1557, 2147483647
    %v1580 = vand.u32 %v1579, 65535
    %v1581 = vshra.s32 %v1579, 16
    %v1582 = vcvt.s32.f32 %v1580
    %v1583 = vcvt.s32.f32 %v1581
    %1584 = vmin.xlane.f32.xlu0 %v1583
    %v1585 = vpop.xlane.xlu0 %1584
    %vm1586 = vcmp.eq.f32.partialorder %v1583, %v1585
    %v1587 = vsel %vm1586, %v1582, inf
    %1588 = vmin.xlane.f32.xlu0 %v1587
    %v1589 = vpop.xlane.xlu0 %1588
    %v1590 = vcvt.f32.s32 %v1589
    %v1591 = vcvt.f32.s32 %v1585
    %v1592 = vshll.u32 %v1591, 16
    %v1593 = vadd.s32 %v1592, %v1590
    %v1594 = vsel %vm275, %v1558, 2147483647
    %v1595 = vand.u32 %v1594, 65535
    %v1596 = vshra.s32 %v1594, 16
    %v1597 = vcvt.s32.f32 %v1595
    %v1598 = vcvt.s32.f32 %v1596
    %1599 = vmin.xlane.f32.xlu0 %v1598
    %v1600 = vpop.xlane.xlu0 %1599
    %vm1601 = vcmp.eq.f32.partialorder %v1598, %v1600
    %v1602 = vsel %vm1601, %v1597, inf
    %1603 = vmin.xlane.f32.xlu0 %v1602
    %v1604 = vpop.xlane.xlu0 %1603
    %v1605 = vcvt.f32.s32 %v1604
    %v1606 = vcvt.f32.s32 %v1600
    %v1607 = vshll.u32 %v1606, 16
    %v1608 = vadd.s32 %v1607, %v1605
    %v1609 = vsel %vm275, %v1559, 2147483647
    %v1610 = vand.u32 %v1609, 65535
    %v1611 = vshra.s32 %v1609, 16
    %v1612 = vcvt.s32.f32 %v1610
    %v1613 = vcvt.s32.f32 %v1611
    %1614 = vmin.xlane.f32.xlu0 %v1613
    %v1615 = vpop.xlane.xlu0 %1614
    %vm1616 = vcmp.eq.f32.partialorder %v1613, %v1615
    %v1617 = vsel %vm1616, %v1612, inf
    %1618 = vmin.xlane.f32.xlu0 %v1617
    %v1619 = vpop.xlane.xlu0 %1618
    %v1620 = vcvt.f32.s32 %v1619
    %v1621 = vcvt.f32.s32 %v1615
    %v1622 = vshll.u32 %v1621, 16
    %v1623 = vadd.s32 %v1622, %v1620
    %v1624 = vsel %vm275, %v1560, 2147483647
    %v1625 = vand.u32 %v1624, 65535
    %v1626 = vshra.s32 %v1624, 16
    %v1627 = vcvt.s32.f32 %v1625
    %v1628 = vcvt.s32.f32 %v1626
    %1629 = vmin.xlane.f32.xlu0 %v1628
    %v1630 = vpop.xlane.xlu0 %1629
    %vm1631 = vcmp.eq.f32.partialorder %v1628, %v1630
    %v1632 = vsel %vm1631, %v1627, inf
    %1633 = vmin.xlane.f32.xlu0 %v1632
    %v1634 = vpop.xlane.xlu0 %1633
    %v1635 = vcvt.f32.s32 %v1634
    %v1636 = vcvt.f32.s32 %v1630
    %v1637 = vshll.u32 %v1636, 16
    %v1638 = vadd.s32 %v1637, %v1635
    %v1639 = vsel %vm275, %v1561, 2147483647
    %v1640 = vand.u32 %v1639, 65535
    %v1641 = vshra.s32 %v1639, 16
    %v1642 = vcvt.s32.f32 %v1640
    %v1643 = vcvt.s32.f32 %v1641
    %1644 = vmin.xlane.f32.xlu0 %v1643
    %v1645 = vpop.xlane.xlu0 %1644
    %vm1646 = vcmp.eq.f32.partialorder %v1643, %v1645
    %v1647 = vsel %vm1646, %v1642, inf
    %1648 = vmin.xlane.f32.xlu0 %v1647
    %v1649 = vpop.xlane.xlu0 %1648
    %v1650 = vcvt.f32.s32 %v1649
    %v1651 = vcvt.f32.s32 %v1645
    %v1652 = vshll.u32 %v1651, 16
    %v1653 = vadd.s32 %v1652, %v1650
    %v1654 = vsel %vm275, %v1562, 2147483647
    %v1655 = vand.u32 %v1654, 65535
    %v1656 = vshra.s32 %v1654, 16
    %v1657 = vcvt.s32.f32 %v1655
    %v1658 = vcvt.s32.f32 %v1656
    %1659 = vmin.xlane.f32.xlu0 %v1658
    %v1660 = vpop.xlane.xlu0 %1659
    %vm1661 = vcmp.eq.f32.partialorder %v1658, %v1660
    %v1662 = vsel %vm1661, %v1657, inf
    %1663 = vmin.xlane.f32.xlu0 %v1662
    %v1664 = vpop.xlane.xlu0 %1663
    %v1665 = vcvt.f32.s32 %v1664
    %v1666 = vcvt.f32.s32 %v1660
    %v1667 = vshll.u32 %v1666, 16
    %v1668 = vadd.s32 %v1667, %v1665
    %v1669 = vsel %vm275, %v1563, 2147483647
    %v1670 = vand.u32 %v1669, 65535
    %v1671 = vshra.s32 %v1669, 16
    %v1672 = vcvt.s32.f32 %v1670
    %v1673 = vcvt.s32.f32 %v1671
    %1674 = vmin.xlane.f32.xlu0 %v1673
    %v1675 = vpop.xlane.xlu0 %1674
    %vm1676 = vcmp.eq.f32.partialorder %v1673, %v1675
    %v1677 = vsel %vm1676, %v1672, inf
    %1678 = vmin.xlane.f32.xlu0 %v1677
    %v1679 = vpop.xlane.xlu0 %1678
    %v1680 = vcvt.f32.s32 %v1679
    %v1681 = vcvt.f32.s32 %v1675
    %v1682 = vshll.u32 %v1681, 16
    %v1683 = vadd.s32 %v1682, %v1680
    %vm1684 = vcmp.eq.s32.totalorder %v128, %v1578
    %vm1685 = vcmp.eq.s32.totalorder %v128, %v1593
    %vm1686 = vcmp.eq.s32.totalorder %v128, %v1608
    %vm1687 = vcmp.eq.s32.totalorder %v128, %v1623
    %vm1688 = vcmp.eq.s32.totalorder %v128, %v1638
    %vm1689 = vcmp.eq.s32.totalorder %v128, %v1653
    %vm1690 = vcmp.eq.s32.totalorder %v128, %v1668
    %vm1691 = vcmp.eq.s32.totalorder %v128, %v1683
    %v1692 = vsel %vm1684, 1, 0
    %v1693 = vsel %vm1685, 1, 0
    %v1694 = vsel %vm1686, 1, 0
    %v1695 = vsel %vm1687, 1, 0
    %v1696 = vsel %vm1688, 1, 0
    %v1697 = vsel %vm1689, 1, 0
    %v1698 = vsel %vm1690, 1, 0
    %v1699 = vsel %vm1691, 1, 0
    %v1700 = vcvt.s32.f32 %v1692
    %v1701 = vcvt.s32.f32 %v1693
    %v1702 = vcvt.s32.f32 %v1694
    %v1703 = vcvt.s32.f32 %v1695
    %v1704 = vcvt.s32.f32 %v1696
    %v1705 = vcvt.s32.f32 %v1697
    %v1706 = vcvt.s32.f32 %v1698
    %v1707 = vcvt.s32.f32 %v1699
    %v1708 = vadd.f32 %v1500, %v1700
    %v1709 = vadd.f32 %v1501, %v1701
    %v1710 = vadd.f32 %v1502, %v1702
    %v1711 = vadd.f32 %v1503, %v1703
    %v1712 = vadd.f32 %v1504, %v1704
    %v1713 = vadd.f32 %v1505, %v1705
    %v1714 = vadd.f32 %v1506, %v1706
    %v1715 = vadd.f32 %v1507, %v1707
    %v1716 = vmul.f32 %v1700, 1e+30
    %v1717 = vmul.f32 %v1701, 1e+30
    %v1718 = vmul.f32 %v1702, 1e+30
    %v1719 = vmul.f32 %v1703, 1e+30
    %v1720 = vmul.f32 %v1704, 1e+30
    %v1721 = vmul.f32 %v1705, 1e+30
    %v1722 = vmul.f32 %v1706, 1e+30
    %v1723 = vmul.f32 %v1707, 1e+30
    %v1724 = vadd.f32 %v1516, %v1716
    %v1725 = vadd.f32 %v1517, %v1717
    %v1726 = vadd.f32 %v1518, %v1718
    %v1727 = vadd.f32 %v1519, %v1719
    %v1728 = vadd.f32 %v1520, %v1720
    %v1729 = vadd.f32 %v1521, %v1721
    %v1730 = vadd.f32 %v1522, %v1722
    %v1731 = vadd.f32 %v1523, %v1723
    %v1732 = vsel %vm275, %v1724, inf
    %1733 = vmin.xlane.f32.xlu0 %v1732
    %v1734 = vpop.xlane.xlu0 %1733
    %v1735 = vsel %vm275, %v1725, inf
    %1736 = vmin.xlane.f32.xlu0 %v1735
    %v1737 = vpop.xlane.xlu0 %1736
    %v1738 = vsel %vm275, %v1726, inf
    %1739 = vmin.xlane.f32.xlu0 %v1738
    %v1740 = vpop.xlane.xlu0 %1739
    %v1741 = vsel %vm275, %v1727, inf
    %1742 = vmin.xlane.f32.xlu0 %v1741
    %v1743 = vpop.xlane.xlu0 %1742
    %v1744 = vsel %vm275, %v1728, inf
    %1745 = vmin.xlane.f32.xlu0 %v1744
    %v1746 = vpop.xlane.xlu0 %1745
    %v1747 = vsel %vm275, %v1729, inf
    %1748 = vmin.xlane.f32.xlu0 %v1747
    %v1749 = vpop.xlane.xlu0 %1748
    %v1750 = vsel %vm275, %v1730, inf
    %1751 = vmin.xlane.f32.xlu0 %v1750
    %v1752 = vpop.xlane.xlu0 %1751
    %v1753 = vsel %vm275, %v1731, inf
    %1754 = vmin.xlane.f32.xlu0 %v1753
    %v1755 = vpop.xlane.xlu0 %1754
    %vm1756 = vcmp.le.f32.partialorder %v1724, %v1734
    %vm1757 = vcmp.le.f32.partialorder %v1725, %v1737
    %vm1758 = vcmp.le.f32.partialorder %v1726, %v1740
    %vm1759 = vcmp.le.f32.partialorder %v1727, %v1743
    %vm1760 = vcmp.le.f32.partialorder %v1728, %v1746
    %vm1761 = vcmp.le.f32.partialorder %v1729, %v1749
    %vm1762 = vcmp.le.f32.partialorder %v1730, %v1752
    %vm1763 = vcmp.le.f32.partialorder %v1731, %v1755
    %v1764 = vsel %vm1756, %v128, 64
    %v1765 = vsel %vm1757, %v128, 64
    %v1766 = vsel %vm1758, %v128, 64
    %v1767 = vsel %vm1759, %v128, 64
    %v1768 = vsel %vm1760, %v128, 64
    %v1769 = vsel %vm1761, %v128, 64
    %v1770 = vsel %vm1762, %v128, 64
    %v1771 = vsel %vm1763, %v128, 64
    %v1772 = vsel %vm275, %v1764, 2147483647
    %v1773 = vand.u32 %v1772, 65535
    %v1774 = vshra.s32 %v1772, 16
    %v1775 = vcvt.s32.f32 %v1773
    %v1776 = vcvt.s32.f32 %v1774
    %1777 = vmin.xlane.f32.xlu0 %v1776
    %v1778 = vpop.xlane.xlu0 %1777
    %vm1779 = vcmp.eq.f32.partialorder %v1776, %v1778
    %v1780 = vsel %vm1779, %v1775, inf
    %1781 = vmin.xlane.f32.xlu0 %v1780
    %v1782 = vpop.xlane.xlu0 %1781
    %v1783 = vcvt.f32.s32 %v1782
    %v1784 = vcvt.f32.s32 %v1778
    %v1785 = vshll.u32 %v1784, 16
    %v1786 = vadd.s32 %v1785, %v1783
    %v1787 = vsel %vm275, %v1765, 2147483647
    %v1788 = vand.u32 %v1787, 65535
    %v1789 = vshra.s32 %v1787, 16
    %v1790 = vcvt.s32.f32 %v1788
    %v1791 = vcvt.s32.f32 %v1789
    %1792 = vmin.xlane.f32.xlu0 %v1791
    %v1793 = vpop.xlane.xlu0 %1792
    %vm1794 = vcmp.eq.f32.partialorder %v1791, %v1793
    %v1795 = vsel %vm1794, %v1790, inf
    %1796 = vmin.xlane.f32.xlu0 %v1795
    %v1797 = vpop.xlane.xlu0 %1796
    %v1798 = vcvt.f32.s32 %v1797
    %v1799 = vcvt.f32.s32 %v1793
    %v1800 = vshll.u32 %v1799, 16
    %v1801 = vadd.s32 %v1800, %v1798
    %v1802 = vsel %vm275, %v1766, 2147483647
    %v1803 = vand.u32 %v1802, 65535
    %v1804 = vshra.s32 %v1802, 16
    %v1805 = vcvt.s32.f32 %v1803
    %v1806 = vcvt.s32.f32 %v1804
    %1807 = vmin.xlane.f32.xlu0 %v1806
    %v1808 = vpop.xlane.xlu0 %1807
    %vm1809 = vcmp.eq.f32.partialorder %v1806, %v1808
    %v1810 = vsel %vm1809, %v1805, inf
    %1811 = vmin.xlane.f32.xlu0 %v1810
    %v1812 = vpop.xlane.xlu0 %1811
    %v1813 = vcvt.f32.s32 %v1812
    %v1814 = vcvt.f32.s32 %v1808
    %v1815 = vshll.u32 %v1814, 16
    %v1816 = vadd.s32 %v1815, %v1813
    %v1817 = vsel %vm275, %v1767, 2147483647
    %v1818 = vand.u32 %v1817, 65535
    %v1819 = vshra.s32 %v1817, 16
    %v1820 = vcvt.s32.f32 %v1818
    %v1821 = vcvt.s32.f32 %v1819
    %1822 = vmin.xlane.f32.xlu0 %v1821
    %v1823 = vpop.xlane.xlu0 %1822
    %vm1824 = vcmp.eq.f32.partialorder %v1821, %v1823
    %v1825 = vsel %vm1824, %v1820, inf
    %1826 = vmin.xlane.f32.xlu0 %v1825
    %v1827 = vpop.xlane.xlu0 %1826
    %v1828 = vcvt.f32.s32 %v1827
    %v1829 = vcvt.f32.s32 %v1823
    %v1830 = vshll.u32 %v1829, 16
    %v1831 = vadd.s32 %v1830, %v1828
    %v1832 = vsel %vm275, %v1768, 2147483647
    %v1833 = vand.u32 %v1832, 65535
    %v1834 = vshra.s32 %v1832, 16
    %v1835 = vcvt.s32.f32 %v1833
    %v1836 = vcvt.s32.f32 %v1834
    %1837 = vmin.xlane.f32.xlu0 %v1836
    %v1838 = vpop.xlane.xlu0 %1837
    %vm1839 = vcmp.eq.f32.partialorder %v1836, %v1838
    %v1840 = vsel %vm1839, %v1835, inf
    %1841 = vmin.xlane.f32.xlu0 %v1840
    %v1842 = vpop.xlane.xlu0 %1841
    %v1843 = vcvt.f32.s32 %v1842
    %v1844 = vcvt.f32.s32 %v1838
    %v1845 = vshll.u32 %v1844, 16
    %v1846 = vadd.s32 %v1845, %v1843
    %v1847 = vsel %vm275, %v1769, 2147483647
    %v1848 = vand.u32 %v1847, 65535
    %v1849 = vshra.s32 %v1847, 16
    %v1850 = vcvt.s32.f32 %v1848
    %v1851 = vcvt.s32.f32 %v1849
    %1852 = vmin.xlane.f32.xlu0 %v1851
    %v1853 = vpop.xlane.xlu0 %1852
    %vm1854 = vcmp.eq.f32.partialorder %v1851, %v1853
    %v1855 = vsel %vm1854, %v1850, inf
    %1856 = vmin.xlane.f32.xlu0 %v1855
    %v1857 = vpop.xlane.xlu0 %1856
    %v1858 = vcvt.f32.s32 %v1857
    %v1859 = vcvt.f32.s32 %v1853
    %v1860 = vshll.u32 %v1859, 16
    %v1861 = vadd.s32 %v1860, %v1858
    %v1862 = vsel %vm275, %v1770, 2147483647
    %v1863 = vand.u32 %v1862, 65535
    %v1864 = vshra.s32 %v1862, 16
    %v1865 = vcvt.s32.f32 %v1863
    %v1866 = vcvt.s32.f32 %v1864
    %1867 = vmin.xlane.f32.xlu0 %v1866
    %v1868 = vpop.xlane.xlu0 %1867
    %vm1869 = vcmp.eq.f32.partialorder %v1866, %v1868
    %v1870 = vsel %vm1869, %v1865, inf
    %1871 = vmin.xlane.f32.xlu0 %v1870
    %v1872 = vpop.xlane.xlu0 %1871
    %v1873 = vcvt.f32.s32 %v1872
    %v1874 = vcvt.f32.s32 %v1868
    %v1875 = vshll.u32 %v1874, 16
    %v1876 = vadd.s32 %v1875, %v1873
    %v1877 = vsel %vm275, %v1771, 2147483647
    %v1878 = vand.u32 %v1877, 65535
    %v1879 = vshra.s32 %v1877, 16
    %v1880 = vcvt.s32.f32 %v1878
    %v1881 = vcvt.s32.f32 %v1879
    %1882 = vmin.xlane.f32.xlu0 %v1881
    %v1883 = vpop.xlane.xlu0 %1882
    %vm1884 = vcmp.eq.f32.partialorder %v1881, %v1883
    %v1885 = vsel %vm1884, %v1880, inf
    %1886 = vmin.xlane.f32.xlu0 %v1885
    %v1887 = vpop.xlane.xlu0 %1886
    %v1888 = vcvt.f32.s32 %v1887
    %v1889 = vcvt.f32.s32 %v1883
    %v1890 = vshll.u32 %v1889, 16
    %v1891 = vadd.s32 %v1890, %v1888
    %vm1892 = vcmp.eq.s32.totalorder %v128, %v1786
    %vm1893 = vcmp.eq.s32.totalorder %v128, %v1801
    %vm1894 = vcmp.eq.s32.totalorder %v128, %v1816
    %vm1895 = vcmp.eq.s32.totalorder %v128, %v1831
    %vm1896 = vcmp.eq.s32.totalorder %v128, %v1846
    %vm1897 = vcmp.eq.s32.totalorder %v128, %v1861
    %vm1898 = vcmp.eq.s32.totalorder %v128, %v1876
    %vm1899 = vcmp.eq.s32.totalorder %v128, %v1891
    %v1900 = vsel %vm1892, 1, 0
    %v1901 = vsel %vm1893, 1, 0
    %v1902 = vsel %vm1894, 1, 0
    %v1903 = vsel %vm1895, 1, 0
    %v1904 = vsel %vm1896, 1, 0
    %v1905 = vsel %vm1897, 1, 0
    %v1906 = vsel %vm1898, 1, 0
    %v1907 = vsel %vm1899, 1, 0
    %v1908 = vcvt.s32.f32 %v1900
    %v1909 = vcvt.s32.f32 %v1901
    %v1910 = vcvt.s32.f32 %v1902
    %v1911 = vcvt.s32.f32 %v1903
    %v1912 = vcvt.s32.f32 %v1904
    %v1913 = vcvt.s32.f32 %v1905
    %v1914 = vcvt.s32.f32 %v1906
    %v1915 = vcvt.s32.f32 %v1907
    %v1916 = vadd.f32 %v1708, %v1908
    %v1917 = vadd.f32 %v1709, %v1909
    %v1918 = vadd.f32 %v1710, %v1910
    %v1919 = vadd.f32 %v1711, %v1911
    %v1920 = vadd.f32 %v1712, %v1912
    %v1921 = vadd.f32 %v1713, %v1913
    %v1922 = vadd.f32 %v1714, %v1914
    %v1923 = vadd.f32 %v1715, %v1915
    %1924 = vxpose.xlu0.b32.start [1/16] %v1916, 128
    %1925 = vxpose.xlu0.b32.cont [2/16] %v1917, 128
    %1926 = vxpose.xlu0.b32.cont [3/16] %v1918, 128
    %1927 = vxpose.xlu0.b32.cont [4/16] %v1919, 128
    %1928 = vxpose.xlu0.b32.cont [5/16] %v1920, 128
    %1929 = vxpose.xlu0.b32.cont [6/16] %v1921, 128
    %1930 = vxpose.xlu0.b32.cont [7/16] %v1922, 128
    %1931 = vxpose.xlu0.b32.cont [8/16] %v1923, 128
    %1932 = vxpose.xlu0.b32.cont [9/16] 0.0, 128
    %1933 = vxpose.xlu0.b32.cont [10/16] 0.0, 128
    %1934 = vxpose.xlu0.b32.cont [11/16] 0.0, 128
    %1935 = vxpose.xlu0.b32.cont [12/16] 0.0, 128
    %1936 = vxpose.xlu0.b32.cont [13/16] 0.0, 128
    %1937 = vxpose.xlu0.b32.cont [14/16] 0.0, 128
    %1938 = vxpose.xlu0.b32.cont [15/16] 0.0, 128
    %1939 = vxpose.xlu0.b32.end [16/16] 0.0, 128
    %v1940 = vpop.trf.xlu0
    %v1941 = vpop.trf.xlu0
    %v1942 = vpop.trf.xlu0
    %v1943 = vpop.trf.xlu0
    %v1944 = vpop.trf.xlu0
    %v1945 = vpop.trf.xlu0
    %v1946 = vpop.trf.xlu0
    %v1947 = vpop.trf.xlu0
    %v1948 = vpop.trf.xlu0
    %v1949 = vpop.trf.xlu0
    %v1950 = vpop.trf.xlu0
    %v1951 = vpop.trf.xlu0
    %v1952 = vpop.trf.xlu0
    %v1953 = vpop.trf.xlu0
    %v1954 = vpop.trf.xlu0
    %v1955 = vpop.trf.xlu0
    %v1956 = vld [vmem:[#allocation6] sm:$0xff]
    %v1957 = vld [vmem:[#allocation6 + $0x8] sm:$0xff]
    %v1958 = vld [vmem:[#allocation6 + $0x10] sm:$0xff]
    %v1959 = vld [vmem:[#allocation6 + $0x18] sm:$0xff]
    %v1960 = vld [vmem:[#allocation6 + $0x20] sm:$0xff]
    %v1961 = vld [vmem:[#allocation6 + $0x28] sm:$0xff]
    %v1962 = vld [vmem:[#allocation6 + $0x30] sm:$0xff]
    %v1963 = vld [vmem:[#allocation6 + $0x38] sm:$0xff]
    %v1964 = vld [vmem:[#allocation6 + $0x40] sm:$0xff]
    %v1965 = vld [vmem:[#allocation6 + $0x48] sm:$0xff]
    %v1966 = vld [vmem:[#allocation6 + $0x50] sm:$0xff]
    %v1967 = vld [vmem:[#allocation6 + $0x58] sm:$0xff]
    %v1968 = vld [vmem:[#allocation6 + $0x60] sm:$0xff]
    %v1969 = vld [vmem:[#allocation6 + $0x68] sm:$0xff]
    %v1970 = vld [vmem:[#allocation6 + $0x70] sm:$0xff]
    %v1971 = vld [vmem:[#allocation6 + $0x78] sm:$0xff]
    %v1972 = vperm.slane %v115, 0
    %1973 = vmatpush.msra.mxu0 %v1971
    %1974 = vmatpush.msra.mxu0 %v1970
    %1975 = vmatpush.msra.mxu0 %v1969
    %1976 = vmatpush.msra.mxu0 %v1968
    %1977 = vmatpush.msra.mxu0 %v1967
    %1978 = vmatpush.msra.mxu0 %v1966
    %1979 = vmatpush.msra.mxu0 %v1965
    %1980 = vmatpush.msra.mxu0 %v1964
    %1981 = vmatpush.msra.mxu0 %v1963
    %1982 = vmatpush.msra.mxu0 %v1962
    %1983 = vmatpush.msra.mxu0 %v1961
    %1984 = vmatpush.msra.mxu0 %v1960
    %1985 = vmatpush.msra.mxu0 %v1959
    %1986 = vmatpush.msra.mxu0 %v1958
    %1987 = vmatpush.msra.mxu0 %v1957
    %1988 = vmatpush.msra.mxu0 %v1956
    %1989 = vmatmul.f32.gmra.mxu0 %v129
    %v1990 = vpop.f32.mrf.mxu0
    %v1991 = vadd.f32 %v1972, %v1990
    %1992 = vmatmul.f32.gmra.mxu0 %v130
    %v1993 = vpop.f32.mrf.mxu0
    %v1994 = vadd.f32 %v1972, %v1993
    %1995 = vmatmul.f32.gmra.mxu0 %v131
    %v1996 = vpop.f32.mrf.mxu0
    %v1997 = vadd.f32 %v1972, %v1996
    %1998 = vmatmul.f32.gmra.mxu0 %v132
    %v1999 = vpop.f32.mrf.mxu0
    %v2000 = vadd.f32 %v1972, %v1999
    %2001 = vmatmul.f32.gmra.mxu0 %v133
    %v2002 = vpop.f32.mrf.mxu0
    %v2003 = vadd.f32 %v1972, %v2002
    %2004 = vmatmul.f32.gmra.mxu0 %v134
    %v2005 = vpop.f32.mrf.mxu0
    %v2006 = vadd.f32 %v1972, %v2005
    %2007 = vmatmul.f32.gmra.mxu0 %v135
    %v2008 = vpop.f32.mrf.mxu0
    %v2009 = vadd.f32 %v1972, %v2008
    %2010 = vmatmul.f32.gmra.mxu0 %v136
    %v2011 = vpop.f32.mrf.mxu0
    %v2012 = vadd.f32 %v1972, %v2011
    %2013 = vdwg.mxu0
    %s2014 = scalar_lea.vmem [#allocation6], 128
    %v2015 = vld [vmem:[%s2014] sm:$0xff]
    %v2016 = vld [vmem:[%s2014 + $0x8] sm:$0xff]
    %v2017 = vld [vmem:[%s2014 + $0x10] sm:$0xff]
    %v2018 = vld [vmem:[%s2014 + $0x18] sm:$0xff]
    %v2019 = vld [vmem:[%s2014 + $0x20] sm:$0xff]
    %v2020 = vld [vmem:[%s2014 + $0x28] sm:$0xff]
    %v2021 = vld [vmem:[%s2014 + $0x30] sm:$0xff]
    %v2022 = vld [vmem:[%s2014 + $0x38] sm:$0xff]
    %v2023 = vld [vmem:[%s2014 + $0x40] sm:$0xff]
    %v2024 = vld [vmem:[%s2014 + $0x48] sm:$0xff]
    %v2025 = vld [vmem:[%s2014 + $0x50] sm:$0xff]
    %v2026 = vld [vmem:[%s2014 + $0x58] sm:$0xff]
    %v2027 = vld [vmem:[%s2014 + $0x60] sm:$0xff]
    %v2028 = vld [vmem:[%s2014 + $0x68] sm:$0xff]
    %v2029 = vld [vmem:[%s2014 + $0x70] sm:$0xff]
    %v2030 = vld [vmem:[%s2014 + $0x78] sm:$0xff]
    %s2031 = scalar_lea.vmem [#allocation6], 256
    %v2032 = vld [vmem:[%s2031] sm:$0xff]
    %v2033 = vld [vmem:[%s2031 + $0x8] sm:$0xff]
    %v2034 = vld [vmem:[%s2031 + $0x10] sm:$0xff]
    %v2035 = vld [vmem:[%s2031 + $0x18] sm:$0xff]
    %v2036 = vld [vmem:[%s2031 + $0x20] sm:$0xff]
    %v2037 = vld [vmem:[%s2031 + $0x28] sm:$0xff]
    %v2038 = vld [vmem:[%s2031 + $0x30] sm:$0xff]
    %v2039 = vld [vmem:[%s2031 + $0x38] sm:$0xff]
    %v2040 = vld [vmem:[%s2031 + $0x40] sm:$0xff]
    %v2041 = vld [vmem:[%s2031 + $0x48] sm:$0xff]
    %v2042 = vld [vmem:[%s2031 + $0x50] sm:$0xff]
    %v2043 = vld [vmem:[%s2031 + $0x58] sm:$0xff]
    %v2044 = vld [vmem:[%s2031 + $0x60] sm:$0xff]
    %v2045 = vld [vmem:[%s2031 + $0x68] sm:$0xff]
    %v2046 = vld [vmem:[%s2031 + $0x70] sm:$0xff]
    %v2047 = vld [vmem:[%s2031 + $0x78] sm:$0xff]
    %v2048 = vld [vmem:[#allocation4] sm:$0xff]
    %v2049 = vld [vmem:[#allocation4 + $0x8] sm:$0xff]
    %v2050 = vld [vmem:[#allocation4 + $0x10] sm:$0xff]
    %v2051 = vld [vmem:[#allocation4 + $0x18] sm:$0xff]
    %v2052 = vld [vmem:[#allocation4 + $0x20] sm:$0xff]
    %v2053 = vld [vmem:[#allocation4 + $0x28] sm:$0xff]
    %v2054 = vld [vmem:[#allocation4 + $0x30] sm:$0xff]
    %v2055 = vld [vmem:[#allocation4 + $0x38] sm:$0xff]
    %v2057 = vsel %vm275, %v1940, 0
    %v2060 = vsel %vm275, %v1941, 0
    %v2063 = vsel %vm275, %v1942, 0
    %v2066 = vsel %vm275, %v1943, 0
    %v2069 = vsel %vm275, %v1944, 0
    %v2072 = vsel %vm275, %v1945, 0
    %v2075 = vsel %vm275, %v1946, 0
    %v2078 = vsel %vm275, %v1947, 0
    %2080 = vmatpush.msra.mxu0 0.0
    %2081 = vmatpush.msra.mxu0 0.0
    %2082 = vmatpush.msra.mxu0 0.0
    %2083 = vmatpush.msra.mxu0 0.0
    %2084 = vmatpush.msra.mxu0 0.0
    %2085 = vmatpush.msra.mxu0 0.0
    %2086 = vmatpush.msra.mxu0 0.0
    %2087 = vmatpush.msra.mxu0 0.0
    %2088 = vmatpush.msra.mxu0 %v2012
    %2089 = vmatpush.msra.mxu0 %v2009
    %2090 = vmatpush.msra.mxu0 %v2006
    %2091 = vmatpush.msra.mxu0 %v2003
    %2092 = vmatpush.msra.mxu0 %v2000
    %2093 = vmatpush.msra.mxu0 %v1997
    %2094 = vmatpush.msra.mxu0 %v1994
    %2095 = vmatpush.msra.mxu0 %v1991
    %2096 = vmatmul.f32.gmra.mxu0 %v2057
    %v2097 = vpop.f32.mrf.mxu0
    %v2098 = vadd.f32 0.0, %v2097
    %2099 = vmatmul.f32.gmra.mxu0 %v2060
    %v2100 = vpop.f32.mrf.mxu0
    %v2101 = vadd.f32 0.0, %v2100
    %2102 = vmatmul.f32.gmra.mxu0 %v2063
    %v2103 = vpop.f32.mrf.mxu0
    %v2104 = vadd.f32 0.0, %v2103
    %2105 = vmatmul.f32.gmra.mxu0 %v2066
    %v2106 = vpop.f32.mrf.mxu0
    %v2107 = vadd.f32 0.0, %v2106
    %2108 = vmatmul.f32.gmra.mxu0 %v2069
    %v2109 = vpop.f32.mrf.mxu0
    %v2110 = vadd.f32 0.0, %v2109
    %2111 = vmatmul.f32.gmra.mxu0 %v2072
    %v2112 = vpop.f32.mrf.mxu0
    %v2113 = vadd.f32 0.0, %v2112
    %2114 = vmatmul.f32.gmra.mxu0 %v2075
    %v2115 = vpop.f32.mrf.mxu0
    %v2116 = vadd.f32 0.0, %v2115
    %2117 = vmatmul.f32.gmra.mxu0 %v2078
    %v2118 = vpop.f32.mrf.mxu0
    %v2119 = vadd.f32 0.0, %v2118
    %2120 = vdwg.mxu0
    %v2121 = vadd.f32 %v1991, %v2098
    %v2122 = vadd.f32 %v1994, %v2101
    %v2123 = vadd.f32 %v1997, %v2104
    %v2124 = vadd.f32 %v2000, %v2107
    %v2125 = vadd.f32 %v2003, %v2110
    %v2126 = vadd.f32 %v2006, %v2113
    %v2127 = vadd.f32 %v2009, %v2116
    %v2128 = vadd.f32 %v2012, %v2119
    %v2129 = vperm.slane %v115, 1
    %2130 = vmatpush.msra.mxu0 %v2030
    %2131 = vmatpush.msra.mxu0 %v2029
    %2132 = vmatpush.msra.mxu0 %v2028
    %2133 = vmatpush.msra.mxu0 %v2027
    %2134 = vmatpush.msra.mxu0 %v2026
    %2135 = vmatpush.msra.mxu0 %v2025
    %2136 = vmatpush.msra.mxu0 %v2024
    %2137 = vmatpush.msra.mxu0 %v2023
    %2138 = vmatpush.msra.mxu0 %v2022
    %2139 = vmatpush.msra.mxu0 %v2021
    %2140 = vmatpush.msra.mxu0 %v2020
    %2141 = vmatpush.msra.mxu0 %v2019
    %2142 = vmatpush.msra.mxu0 %v2018
    %2143 = vmatpush.msra.mxu0 %v2017
    %2144 = vmatpush.msra.mxu0 %v2016
    %2145 = vmatpush.msra.mxu0 %v2015
    %2146 = vmatmul.f32.gmra.mxu0 %v2121
    %v2147 = vpop.f32.mrf.mxu0
    %v2148 = vadd.f32 %v2129, %v2147
    %2149 = vmatmul.f32.gmra.mxu0 %v2122
    %v2150 = vpop.f32.mrf.mxu0
    %v2151 = vadd.f32 %v2129, %v2150
    %2152 = vmatmul.f32.gmra.mxu0 %v2123
    %v2153 = vpop.f32.mrf.mxu0
    %v2154 = vadd.f32 %v2129, %v2153
    %2155 = vmatmul.f32.gmra.mxu0 %v2124
    %v2156 = vpop.f32.mrf.mxu0
    %v2157 = vadd.f32 %v2129, %v2156
    %2158 = vmatmul.f32.gmra.mxu0 %v2125
    %v2159 = vpop.f32.mrf.mxu0
    %v2160 = vadd.f32 %v2129, %v2159
    %2161 = vmatmul.f32.gmra.mxu0 %v2126
    %v2162 = vpop.f32.mrf.mxu0
    %v2163 = vadd.f32 %v2129, %v2162
    %2164 = vmatmul.f32.gmra.mxu0 %v2127
    %v2165 = vpop.f32.mrf.mxu0
    %v2166 = vadd.f32 %v2129, %v2165
    %2167 = vmatmul.f32.gmra.mxu0 %v2128
    %v2168 = vpop.f32.mrf.mxu0
    %v2169 = vadd.f32 %v2129, %v2168
    %2170 = vdwg.mxu0
    %v2171 = vmax.f32 %v2148, 0.0
    %v2172 = vmax.f32 %v2151, 0.0
    %v2173 = vmax.f32 %v2154, 0.0
    %v2174 = vmax.f32 %v2157, 0.0
    %v2175 = vmax.f32 %v2160, 0.0
    %v2176 = vmax.f32 %v2163, 0.0
    %v2177 = vmax.f32 %v2166, 0.0
    %v2178 = vmax.f32 %v2169, 0.0
    %v2179 = vperm.slane %v115, 2
    %2180 = vmatpush.msra.mxu0 %v2047
    %2181 = vmatpush.msra.mxu0 %v2046
    %2182 = vmatpush.msra.mxu0 %v2045
    %2183 = vmatpush.msra.mxu0 %v2044
    %2184 = vmatpush.msra.mxu0 %v2043
    %2185 = vmatpush.msra.mxu0 %v2042
    %2186 = vmatpush.msra.mxu0 %v2041
    %2187 = vmatpush.msra.mxu0 %v2040
    %2188 = vmatpush.msra.mxu0 %v2039
    %2189 = vmatpush.msra.mxu0 %v2038
    %2190 = vmatpush.msra.mxu0 %v2037
    %2191 = vmatpush.msra.mxu0 %v2036
    %2192 = vmatpush.msra.mxu0 %v2035
    %2193 = vmatpush.msra.mxu0 %v2034
    %2194 = vmatpush.msra.mxu0 %v2033
    %2195 = vmatpush.msra.mxu0 %v2032
    %2196 = vmatmul.f32.gmra.mxu0 %v2171
    %v2197 = vpop.f32.mrf.mxu0
    %v2198 = vadd.f32 %v2179, %v2197
    %2199 = vmatmul.f32.gmra.mxu0 %v2172
    %v2200 = vpop.f32.mrf.mxu0
    %v2201 = vadd.f32 %v2179, %v2200
    %2202 = vmatmul.f32.gmra.mxu0 %v2173
    %v2203 = vpop.f32.mrf.mxu0
    %v2204 = vadd.f32 %v2179, %v2203
    %2205 = vmatmul.f32.gmra.mxu0 %v2174
    %v2206 = vpop.f32.mrf.mxu0
    %v2207 = vadd.f32 %v2179, %v2206
    %2208 = vmatmul.f32.gmra.mxu0 %v2175
    %v2209 = vpop.f32.mrf.mxu0
    %v2210 = vadd.f32 %v2179, %v2209
    %2211 = vmatmul.f32.gmra.mxu0 %v2176
    %v2212 = vpop.f32.mrf.mxu0
    %v2213 = vadd.f32 %v2179, %v2212
    %2214 = vmatmul.f32.gmra.mxu0 %v2177
    %v2215 = vpop.f32.mrf.mxu0
    %v2216 = vadd.f32 %v2179, %v2215
    %2217 = vmatmul.f32.gmra.mxu0 %v2178
    %v2218 = vpop.f32.mrf.mxu0
    %v2219 = vadd.f32 %v2179, %v2218
    %2220 = vdwg.mxu0
    %2221 = vadd.xlane.f32.xlu0 %v2198
    %v2222 = vpop.xlane.xlu0 %2221
    %2223 = vadd.xlane.f32.xlu0 %v2201
    %v2224 = vpop.xlane.xlu0 %2223
    %2225 = vadd.xlane.f32.xlu0 %v2204
    %v2226 = vpop.xlane.xlu0 %2225
    %2227 = vadd.xlane.f32.xlu0 %v2207
    %v2228 = vpop.xlane.xlu0 %2227
    %2229 = vadd.xlane.f32.xlu0 %v2210
    %v2230 = vpop.xlane.xlu0 %2229
    %2231 = vadd.xlane.f32.xlu0 %v2213
    %v2232 = vpop.xlane.xlu0 %2231
    %2233 = vadd.xlane.f32.xlu0 %v2216
    %v2234 = vpop.xlane.xlu0 %2233
    %2235 = vadd.xlane.f32.xlu0 %v2219
    %v2236 = vpop.xlane.xlu0 %2235
    %v2237 = vrcp.pop 128.0
    %v2238 = vmul.f32 128.0, %v2237
    %v2239 = vsub.f32 1.0, %v2238
    %v2240 = vmul.f32 %v2237, %v2239
    %v2241 = vadd.f32 %v2237, %v2240
    %vm2242 = vweird.f32 %v2237
    %v2243 = vsel %vm2242, %v2237, %v2241
    %v2244 = vmul.f32 %v2222, %v2243
    %v2245 = vmul.f32 %v2224, %v2243
    %v2246 = vmul.f32 %v2226, %v2243
    %v2247 = vmul.f32 %v2228, %v2243
    %v2248 = vmul.f32 %v2230, %v2243
    %v2249 = vmul.f32 %v2232, %v2243
    %v2250 = vmul.f32 %v2234, %v2243
    %v2251 = vmul.f32 %v2236, %v2243
    %v2252 = vsub.f32 %v2198, %v2244
    %v2253 = vsub.f32 %v2201, %v2245
    %v2254 = vsub.f32 %v2204, %v2246
    %v2255 = vsub.f32 %v2207, %v2247
    %v2256 = vsub.f32 %v2210, %v2248
    %v2257 = vsub.f32 %v2213, %v2249
    %v2258 = vsub.f32 %v2216, %v2250
    %v2259 = vsub.f32 %v2219, %v2251
    %v2260 = vmul.f32 %v2252, %v2252
    %v2261 = vmul.f32 %v2253, %v2253
    %v2262 = vmul.f32 %v2254, %v2254
    %v2263 = vmul.f32 %v2255, %v2255
    %v2264 = vmul.f32 %v2256, %v2256
    %v2265 = vmul.f32 %v2257, %v2257
    %v2266 = vmul.f32 %v2258, %v2258
    %v2267 = vmul.f32 %v2259, %v2259
    %2268 = vadd.xlane.f32.xlu0 %v2260
    %v2269 = vpop.xlane.xlu0 %2268
    %2270 = vadd.xlane.f32.xlu0 %v2261
    %v2271 = vpop.xlane.xlu0 %2270
    %2272 = vadd.xlane.f32.xlu0 %v2262
    %v2273 = vpop.xlane.xlu0 %2272
    %2274 = vadd.xlane.f32.xlu0 %v2263
    %v2275 = vpop.xlane.xlu0 %2274
    %2276 = vadd.xlane.f32.xlu0 %v2264
    %v2277 = vpop.xlane.xlu0 %2276
    %2278 = vadd.xlane.f32.xlu0 %v2265
    %v2279 = vpop.xlane.xlu0 %2278
    %2280 = vadd.xlane.f32.xlu0 %v2266
    %v2281 = vpop.xlane.xlu0 %2280
    %2282 = vadd.xlane.f32.xlu0 %v2267
    %v2283 = vpop.xlane.xlu0 %2282
    %v2284 = vmul.f32 %v2269, %v2243
    %v2285 = vmul.f32 %v2271, %v2243
    %v2286 = vmul.f32 %v2273, %v2243
    %v2287 = vmul.f32 %v2275, %v2243
    %v2288 = vmul.f32 %v2277, %v2243
    %v2289 = vmul.f32 %v2279, %v2243
    %v2290 = vmul.f32 %v2281, %v2243
    %v2291 = vmul.f32 %v2283, %v2243
    %v2292 = vadd.f32 %v2284, 1e-05
    %v2293 = vadd.f32 %v2285, 1e-05
    %v2294 = vadd.f32 %v2286, 1e-05
    %v2295 = vadd.f32 %v2287, 1e-05
    %v2296 = vadd.f32 %v2288, 1e-05
    %v2297 = vadd.f32 %v2289, 1e-05
    %v2298 = vadd.f32 %v2290, 1e-05
    %v2299 = vadd.f32 %v2291, 1e-05
    %v2300 = vrsqrt.pop %v2292
    %v2301 = vmul.f32 %v2300, %v2292
    %v2302 = vmul.f32 %v2301, %v2300
    %v2303 = vmul.f32 0.5, %v2302
    %v2304 = vsub.f32 1.5, %v2303
    %v2305 = vmul.f32 %v2300, %v2304
    %vm2306 = vweird.f32 %v2292
    %vm2307 = vweird.f32 %v2300
    %vm2308 = vmor %vm2306, %vm2307
    %v2309 = vsel %vm2308, %v2300, %v2305
    %v2310 = vrsqrt.pop %v2293
    %v2311 = vmul.f32 %v2310, %v2293
    %v2312 = vmul.f32 %v2311, %v2310
    %v2313 = vmul.f32 0.5, %v2312
    %v2314 = vsub.f32 1.5, %v2313
    %v2315 = vmul.f32 %v2310, %v2314
    %vm2316 = vweird.f32 %v2293
    %vm2317 = vweird.f32 %v2310
    %vm2318 = vmor %vm2316, %vm2317
    %v2319 = vsel %vm2318, %v2310, %v2315
    %v2320 = vrsqrt.pop %v2294
    %v2321 = vmul.f32 %v2320, %v2294
    %v2322 = vmul.f32 %v2321, %v2320
    %v2323 = vmul.f32 0.5, %v2322
    %v2324 = vsub.f32 1.5, %v2323
    %v2325 = vmul.f32 %v2320, %v2324
    %vm2326 = vweird.f32 %v2294
    %vm2327 = vweird.f32 %v2320
    %vm2328 = vmor %vm2326, %vm2327
    %v2329 = vsel %vm2328, %v2320, %v2325
    %v2330 = vrsqrt.pop %v2295
    %v2331 = vmul.f32 %v2330, %v2295
    %v2332 = vmul.f32 %v2331, %v2330
    %v2333 = vmul.f32 0.5, %v2332
    %v2334 = vsub.f32 1.5, %v2333
    %v2335 = vmul.f32 %v2330, %v2334
    %vm2336 = vweird.f32 %v2295
    %vm2337 = vweird.f32 %v2330
    %vm2338 = vmor %vm2336, %vm2337
    %v2339 = vsel %vm2338, %v2330, %v2335
    %v2340 = vrsqrt.pop %v2296
    %v2341 = vmul.f32 %v2340, %v2296
    %v2342 = vmul.f32 %v2341, %v2340
    %v2343 = vmul.f32 0.5, %v2342
    %v2344 = vsub.f32 1.5, %v2343
    %v2345 = vmul.f32 %v2340, %v2344
    %vm2346 = vweird.f32 %v2296
    %vm2347 = vweird.f32 %v2340
    %vm2348 = vmor %vm2346, %vm2347
    %v2349 = vsel %vm2348, %v2340, %v2345
    %v2350 = vrsqrt.pop %v2297
    %v2351 = vmul.f32 %v2350, %v2297
    %v2352 = vmul.f32 %v2351, %v2350
    %v2353 = vmul.f32 0.5, %v2352
    %v2354 = vsub.f32 1.5, %v2353
    %v2355 = vmul.f32 %v2350, %v2354
    %vm2356 = vweird.f32 %v2297
    %vm2357 = vweird.f32 %v2350
    %vm2358 = vmor %vm2356, %vm2357
    %v2359 = vsel %vm2358, %v2350, %v2355
    %v2360 = vrsqrt.pop %v2298
    %v2361 = vmul.f32 %v2360, %v2298
    %v2362 = vmul.f32 %v2361, %v2360
    %v2363 = vmul.f32 0.5, %v2362
    %v2364 = vsub.f32 1.5, %v2363
    %v2365 = vmul.f32 %v2360, %v2364
    %vm2366 = vweird.f32 %v2298
    %vm2367 = vweird.f32 %v2360
    %vm2368 = vmor %vm2366, %vm2367
    %v2369 = vsel %vm2368, %v2360, %v2365
    %v2370 = vrsqrt.pop %v2299
    %v2371 = vmul.f32 %v2370, %v2299
    %v2372 = vmul.f32 %v2371, %v2370
    %v2373 = vmul.f32 0.5, %v2372
    %v2374 = vsub.f32 1.5, %v2373
    %v2375 = vmul.f32 %v2370, %v2374
    %vm2376 = vweird.f32 %v2299
    %vm2377 = vweird.f32 %v2370
    %vm2378 = vmor %vm2376, %vm2377
    %v2379 = vsel %vm2378, %v2370, %v2375
    %v2380 = vmul.f32 %v2252, %v2309
    %v2381 = vmul.f32 %v2253, %v2319
    %v2382 = vmul.f32 %v2254, %v2329
    %v2383 = vmul.f32 %v2255, %v2339
    %v2384 = vmul.f32 %v2256, %v2349
    %v2385 = vmul.f32 %v2257, %v2359
    %v2386 = vmul.f32 %v2258, %v2369
    %v2387 = vmul.f32 %v2259, %v2379
    %v2388 = vperm.slane %v115, 3
    %v2389 = vmul.f32 %v2380, %v2388
    %v2390 = vmul.f32 %v2381, %v2388
    %v2391 = vmul.f32 %v2382, %v2388
    %v2392 = vmul.f32 %v2383, %v2388
    %v2393 = vmul.f32 %v2384, %v2388
    %v2394 = vmul.f32 %v2385, %v2388
    %v2395 = vmul.f32 %v2386, %v2388
    %v2396 = vmul.f32 %v2387, %v2388
    %v2397 = vperm.slane %v115, 4
    %v2398 = vadd.f32 %v2389, %v2397
    %v2399 = vadd.f32 %v2390, %v2397
    %v2400 = vadd.f32 %v2391, %v2397
    %v2401 = vadd.f32 %v2392, %v2397
    %v2402 = vadd.f32 %v2393, %v2397
    %v2403 = vadd.f32 %v2394, %v2397
    %v2404 = vadd.f32 %v2395, %v2397
    %v2405 = vadd.f32 %v2396, %v2397
    %v2406 = vadd.f32 %v2398, %v2048
    %v2407 = vadd.f32 %v2399, %v2049
    %v2408 = vadd.f32 %v2400, %v2050
    %v2409 = vadd.f32 %v2401, %v2051
    %v2410 = vadd.f32 %v2402, %v2052
    %v2411 = vadd.f32 %v2403, %v2053
    %v2412 = vadd.f32 %v2404, %v2054
    %v2413 = vadd.f32 %v2405, %v2055
    %vm2414 = vcmp.gt.f32.partialorder %v2406, 0.0
    %vm2415 = vcmp.gt.f32.partialorder %v2407, 0.0
    %vm2416 = vcmp.gt.f32.partialorder %v2408, 0.0
    %vm2417 = vcmp.gt.f32.partialorder %v2409, 0.0
    %vm2418 = vcmp.gt.f32.partialorder %v2410, 0.0
    %vm2419 = vcmp.gt.f32.partialorder %v2411, 0.0
    %vm2420 = vcmp.gt.f32.partialorder %v2412, 0.0
    %vm2421 = vcmp.gt.f32.partialorder %v2413, 0.0
    %v2422 = vmul.f32 %v2406, 0.1
    %v2423 = vmul.f32 %v2407, 0.1
    %v2424 = vmul.f32 %v2408, 0.1
    %v2425 = vmul.f32 %v2409, 0.1
    %v2426 = vmul.f32 %v2410, 0.1
    %v2427 = vmul.f32 %v2411, 0.1
    %v2428 = vmul.f32 %v2412, 0.1
    %v2429 = vmul.f32 %v2413, 0.1
    %v2430 = vsel %vm2414, %v2406, %v2422
    %v2431 = vsel %vm2415, %v2407, %v2423
    %v2432 = vsel %vm2416, %v2408, %v2424
    %v2433 = vsel %vm2417, %v2409, %v2425
    %v2434 = vsel %vm2418, %v2410, %v2426
    %v2435 = vsel %vm2419, %v2411, %v2427
    %v2436 = vsel %vm2420, %v2412, %v2428
    %v2437 = vsel %vm2421, %v2413, %v2429
    %v2438 = vmul.f32 %v115, %v115
    %vm2439 = vcmask 1045509
    %v2440 = vsel %vm2439, %v2438, 0.0
    %2441 = vadd.xlane.f32.xlu0 %v2440
    %v2442 = vpop.xlane.xlu0 %2441
    %v2443 = vrsqrt.pop %v2442
    %v2444 = vmul.f32 %v2443, %v2442
    %v2445 = vmul.f32 %v2444, %v2443
    %v2446 = vmul.f32 0.5, %v2445
    %v2447 = vsub.f32 1.5, %v2446
    %v2448 = vmul.f32 %v2443, %v2447
    %vm2449 = vweird.f32 %v2442
    %vm2450 = vweird.f32 %v2443
    %vm2451 = vmor %vm2449, %vm2450
    %v2452 = vsel %vm2451, %v2443, %v2448
    %v2453 = vperm.slane %v115, 5
    %v2454 = vmul.f32 %v2430, %v2453
    %v2455 = vmul.f32 %v2431, %v2453
    %v2456 = vmul.f32 %v2432, %v2453
    %v2457 = vmul.f32 %v2433, %v2453
    %v2458 = vmul.f32 %v2434, %v2453
    %v2459 = vmul.f32 %v2435, %v2453
    %v2460 = vmul.f32 %v2436, %v2453
    %v2461 = vmul.f32 %v2437, %v2453
    %2462 = vadd.xlane.f32.xlu0 %v2454
    %v2463 = vpop.xlane.xlu0 %2462
    %2464 = vadd.xlane.f32.xlu0 %v2455
    %v2465 = vpop.xlane.xlu0 %2464
    %2466 = vadd.xlane.f32.xlu0 %v2456
    %v2467 = vpop.xlane.xlu0 %2466
    %2468 = vadd.xlane.f32.xlu0 %v2457
    %v2469 = vpop.xlane.xlu0 %2468
    %2470 = vadd.xlane.f32.xlu0 %v2458
    %v2471 = vpop.xlane.xlu0 %2470
    %2472 = vadd.xlane.f32.xlu0 %v2459
    %v2473 = vpop.xlane.xlu0 %2472
    %2474 = vadd.xlane.f32.xlu0 %v2460
    %v2475 = vpop.xlane.xlu0 %2474
    %2476 = vadd.xlane.f32.xlu0 %v2461
    %v2477 = vpop.xlane.xlu0 %2476
    %v2478 = vperm.slane %v2452, 5
    %v2479 = vmul.f32 %v2463, %v2478
    %v2480 = vmul.f32 %v2465, %v2478
    %v2481 = vmul.f32 %v2467, %v2478
    %v2482 = vmul.f32 %v2469, %v2478
    %v2483 = vmul.f32 %v2471, %v2478
    %v2484 = vmul.f32 %v2473, %v2478
    %v2485 = vmul.f32 %v2475, %v2478
    %v2486 = vmul.f32 %v2477, %v2478
    %v2487 = vtanh.pop %v2479
    %v2488 = vtanh.pop %v2480
    %v2489 = vtanh.pop %v2481
    %v2490 = vtanh.pop %v2482
    %v2491 = vtanh.pop %v2483
    %v2492 = vtanh.pop %v2484
    %v2493 = vtanh.pop %v2485
    %v2494 = vtanh.pop %v2486
    %vm2495 = vcmp.gt.f32.partialorder 1.0, 0.5
    %v2496 = vsel %vm2495, %v2487, -1e+30
    %v2497 = vsel %vm2495, %v2488, -1e+30
    %v2498 = vsel %vm2495, %v2489, -1e+30
    %v2499 = vsel %vm2495, %v2490, -1e+30
    %v2500 = vsel %vm2495, %v2491, -1e+30
    %v2501 = vsel %vm2495, %v2492, -1e+30
    %v2502 = vsel %vm2495, %v2493, -1e+30
    %v2503 = vsel %vm2495, %v2494, -1e+30
    %2504 = vxpose.xlu0.b32.start [1/16] %v2496, 128
    %2505 = vxpose.xlu0.b32.cont [2/16] %v2497, 128
    %2506 = vxpose.xlu0.b32.cont [3/16] %v2498, 128
    %2507 = vxpose.xlu0.b32.cont [4/16] %v2499, 128
    %2508 = vxpose.xlu0.b32.cont [5/16] %v2500, 128
    %2509 = vxpose.xlu0.b32.cont [6/16] %v2501, 128
    %2510 = vxpose.xlu0.b32.cont [7/16] %v2502, 128
    %2511 = vxpose.xlu0.b32.cont [8/16] %v2503, 128
    %2512 = vxpose.xlu0.b32.cont [9/16] 0.0, 128
    %2513 = vxpose.xlu0.b32.cont [10/16] 0.0, 128
    %2514 = vxpose.xlu0.b32.cont [11/16] 0.0, 128
    %2515 = vxpose.xlu0.b32.cont [12/16] 0.0, 128
    %2516 = vxpose.xlu0.b32.cont [13/16] 0.0, 128
    %2517 = vxpose.xlu0.b32.cont [14/16] 0.0, 128
    %2518 = vxpose.xlu0.b32.cont [15/16] 0.0, 128
    %2519 = vxpose.xlu0.b32.end [16/16] 0.0, 128
    %v2520 = vpop.trf.xlu0
    %v2521 = vpop.trf.xlu0
    %v2522 = vpop.trf.xlu0
    %v2523 = vpop.trf.xlu0
    %v2524 = vpop.trf.xlu0
    %v2525 = vpop.trf.xlu0
    %v2526 = vpop.trf.xlu0
    %v2527 = vpop.trf.xlu0
    %v2528 = vpop.trf.xlu0
    %v2529 = vpop.trf.xlu0
    %v2530 = vpop.trf.xlu0
    %v2531 = vpop.trf.xlu0
    %v2532 = vpop.trf.xlu0
    %v2533 = vpop.trf.xlu0
    %v2534 = vpop.trf.xlu0
    %v2535 = vpop.trf.xlu0
    %v2536 = vperm.slane %v2520, 0
    %vm2537 = vcmp.gt.f32.partialorder %v2536, %v2496
    %vm2538 = vcmp.gt.f32.partialorder %v2536, %v2497
    %vm2539 = vcmp.gt.f32.partialorder %v2536, %v2498
    %vm2540 = vcmp.gt.f32.partialorder %v2536, %v2499
    %vm2541 = vcmp.gt.f32.partialorder %v2536, %v2500
    %vm2542 = vcmp.gt.f32.partialorder %v2536, %v2501
    %vm2543 = vcmp.gt.f32.partialorder %v2536, %v2502
    %vm2544 = vcmp.gt.f32.partialorder %v2536, %v2503
    %v2545 = vsel %vm2537, 1, 0
    %v2546 = vsel %vm2538, 1, 0
    %v2547 = vsel %vm2539, 1, 0
    %v2548 = vsel %vm2540, 1, 0
    %v2549 = vsel %vm2541, 1, 0
    %v2550 = vsel %vm2542, 1, 0
    %v2551 = vsel %vm2543, 1, 0
    %v2552 = vsel %vm2544, 1, 0
    %v2553 = vcvt.s32.f32 %v2545
    %v2554 = vcvt.s32.f32 %v2546
    %v2555 = vcvt.s32.f32 %v2547
    %v2556 = vcvt.s32.f32 %v2548
    %v2557 = vcvt.s32.f32 %v2549
    %v2558 = vcvt.s32.f32 %v2550
    %v2559 = vcvt.s32.f32 %v2551
    %v2560 = vcvt.s32.f32 %v2552
    %vm2561 = vcmp.eq.f32.partialorder %v2536, %v2496
    %vm2562 = vcmp.eq.f32.partialorder %v2536, %v2497
    %vm2563 = vcmp.eq.f32.partialorder %v2536, %v2498
    %vm2564 = vcmp.eq.f32.partialorder %v2536, %v2499
    %vm2565 = vcmp.eq.f32.partialorder %v2536, %v2500
    %vm2566 = vcmp.eq.f32.partialorder %v2536, %v2501
    %vm2567 = vcmp.eq.f32.partialorder %v2536, %v2502
    %vm2568 = vcmp.eq.f32.partialorder %v2536, %v2503
    %vm2569 = vcmp.lt.s32.totalorder %v128, %v119
    %vm2570 = vcmp.lt.s32.totalorder %v128, %v120
    %vm2571 = vcmp.lt.s32.totalorder %v128, %v121
    %vm2572 = vcmp.lt.s32.totalorder %v128, %v122
    %vm2573 = vcmp.lt.s32.totalorder %v128, %v123
    %vm2574 = vcmp.lt.s32.totalorder %v128, %v124
    %vm2575 = vcmp.lt.s32.totalorder %v128, %v125
    %vm2576 = vcmp.lt.s32.totalorder %v128, %v126
    %vm2577 = vmand %vm2561, %vm2569
    %vm2578 = vmand %vm2562, %vm2570
    %vm2579 = vmand %vm2563, %vm2571
    %vm2580 = vmand %vm2564, %vm2572
    %vm2581 = vmand %vm2565, %vm2573
    %vm2582 = vmand %vm2566, %vm2574
    %vm2583 = vmand %vm2567, %vm2575
    %vm2584 = vmand %vm2568, %vm2576
    %v2585 = vsel %vm2577, 1, 0
    %v2586 = vsel %vm2578, 1, 0
    %v2587 = vsel %vm2579, 1, 0
    %v2588 = vsel %vm2580, 1, 0
    %v2589 = vsel %vm2581, 1, 0
    %v2590 = vsel %vm2582, 1, 0
    %v2591 = vsel %vm2583, 1, 0
    %v2592 = vsel %vm2584, 1, 0
    %v2593 = vcvt.s32.f32 %v2585
    %v2594 = vcvt.s32.f32 %v2586
    %v2595 = vcvt.s32.f32 %v2587
    %v2596 = vcvt.s32.f32 %v2588
    %v2597 = vcvt.s32.f32 %v2589
    %v2598 = vcvt.s32.f32 %v2590
    %v2599 = vcvt.s32.f32 %v2591
    %v2600 = vcvt.s32.f32 %v2592
    %v2601 = vadd.f32 %v2553, %v2593
    %v2602 = vadd.f32 %v2554, %v2594
    %v2603 = vadd.f32 %v2555, %v2595
    %v2604 = vadd.f32 %v2556, %v2596
    %v2605 = vadd.f32 %v2557, %v2597
    %v2606 = vadd.f32 %v2558, %v2598
    %v2607 = vadd.f32 %v2559, %v2599
    %v2608 = vadd.f32 %v2560, %v2600
    %v2609 = vsel %vm275, %v2601, 0.0
    %2610 = vadd.xlane.f32.xlu0 %v2609
    %v2611 = vpop.xlane.xlu0 %2610
    %v2612 = vsel %vm275, %v2602, 0.0
    %2613 = vadd.xlane.f32.xlu0 %v2612
    %v2614 = vpop.xlane.xlu0 %2613
    %v2615 = vsel %vm275, %v2603, 0.0
    %2616 = vadd.xlane.f32.xlu0 %v2615
    %v2617 = vpop.xlane.xlu0 %2616
    %v2618 = vsel %vm275, %v2604, 0.0
    %2619 = vadd.xlane.f32.xlu0 %v2618
    %v2620 = vpop.xlane.xlu0 %2619
    %v2621 = vsel %vm275, %v2605, 0.0
    %2622 = vadd.xlane.f32.xlu0 %v2621
    %v2623 = vpop.xlane.xlu0 %2622
    %v2624 = vsel %vm275, %v2606, 0.0
    %2625 = vadd.xlane.f32.xlu0 %v2624
    %v2626 = vpop.xlane.xlu0 %2625
    %v2627 = vsel %vm275, %v2607, 0.0
    %2628 = vadd.xlane.f32.xlu0 %v2627
    %v2629 = vpop.xlane.xlu0 %2628
    %v2630 = vsel %vm275, %v2608, 0.0
    %2631 = vadd.xlane.f32.xlu0 %v2630
    %v2632 = vpop.xlane.xlu0 %2631
    %vm2633 = vcmp.lt.f32.partialorder %v2611, 32.0
    %vm2634 = vcmp.lt.f32.partialorder %v2614, 32.0
    %vm2635 = vcmp.lt.f32.partialorder %v2617, 32.0
    %vm2636 = vcmp.lt.f32.partialorder %v2620, 32.0
    %vm2637 = vcmp.lt.f32.partialorder %v2623, 32.0
    %vm2638 = vcmp.lt.f32.partialorder %v2626, 32.0
    %vm2639 = vcmp.lt.f32.partialorder %v2629, 32.0
    %vm2640 = vcmp.lt.f32.partialorder %v2632, 32.0
    %v2641 = vsel %vm2633, 1, 0
    %v2642 = vsel %vm2634, 1, 0
    %v2643 = vsel %vm2635, 1, 0
    %v2644 = vsel %vm2636, 1, 0
    %v2645 = vsel %vm2637, 1, 0
    %v2646 = vsel %vm2638, 1, 0
    %v2647 = vsel %vm2639, 1, 0
    %v2648 = vsel %vm2640, 1, 0
    %v2649 = vcvt.s32.f32 %v2641
    %v2650 = vcvt.s32.f32 %v2642
    %v2651 = vcvt.s32.f32 %v2643
    %v2652 = vcvt.s32.f32 %v2644
    %v2653 = vcvt.s32.f32 %v2645
    %v2654 = vcvt.s32.f32 %v2646
    %v2655 = vcvt.s32.f32 %v2647
    %v2656 = vcvt.s32.f32 %v2648
    %v2657 = vmul.f32 %v2649, %v2487
    %v2658 = vmul.f32 %v2650, %v2488
    %v2659 = vmul.f32 %v2651, %v2489
    %v2660 = vmul.f32 %v2652, %v2490
    %v2661 = vmul.f32 %v2653, %v2491
    %v2662 = vmul.f32 %v2654, %v2492
    %v2663 = vmul.f32 %v2655, %v2493
    %v2664 = vmul.f32 %v2656, %v2494
    %v2665 = vmul.f32 %v2430, %v2657
    %v2666 = vmul.f32 %v2431, %v2658
    %v2667 = vmul.f32 %v2432, %v2659
    %v2668 = vmul.f32 %v2433, %v2660
    %v2669 = vmul.f32 %v2434, %v2661
    %v2670 = vmul.f32 %v2435, %v2662
    %v2671 = vmul.f32 %v2436, %v2663
    %v2672 = vmul.f32 %v2437, %v2664
    %vm2673 = vcmp.gt.f32.partialorder %v2649, 0.5
    %vm2674 = vcmp.gt.f32.partialorder %v2650, 0.5
    %vm2675 = vcmp.gt.f32.partialorder %v2651, 0.5
    %vm2676 = vcmp.gt.f32.partialorder %v2652, 0.5
    %vm2677 = vcmp.gt.f32.partialorder %v2653, 0.5
    %vm2678 = vcmp.gt.f32.partialorder %v2654, 0.5
    %vm2679 = vcmp.gt.f32.partialorder %v2655, 0.5
    %vm2680 = vcmp.gt.f32.partialorder %v2656, 0.5
    %v2681 = vsel %vm2673, 1, 0
    %v2682 = vsel %vm2674, 1, 0
    %v2683 = vsel %vm2675, 1, 0
    %v2684 = vsel %vm2676, 1, 0
    %v2685 = vsel %vm2677, 1, 0
    %v2686 = vsel %vm2678, 1, 0
    %v2687 = vsel %vm2679, 1, 0
    %v2688 = vsel %vm2680, 1, 0
    %vm2689 = vcmp.eq.s32.totalorder %v2681, 1
    %vm2690 = vcmp.eq.s32.totalorder %v2682, 1
    %vm2691 = vcmp.eq.s32.totalorder %v2683, 1
    %vm2692 = vcmp.eq.s32.totalorder %v2684, 1
    %vm2693 = vcmp.eq.s32.totalorder %v2685, 1
    %vm2694 = vcmp.eq.s32.totalorder %v2686, 1
    %vm2695 = vcmp.eq.s32.totalorder %v2687, 1
    %vm2696 = vcmp.eq.s32.totalorder %v2688, 1
    %v2697 = vsel %vm2689, %v2665, -1e+30
    %v2698 = vsel %vm2690, %v2666, -1e+30
    %v2699 = vsel %vm2691, %v2667, -1e+30
    %v2700 = vsel %vm2692, %v2668, -1e+30
    %v2701 = vsel %vm2693, %v2669, -1e+30
    %v2702 = vsel %vm2694, %v2670, -1e+30
    %v2703 = vsel %vm2695, %v2671, -1e+30
    %v2704 = vsel %vm2696, %v2672, -1e+30
    %v2705 = vmax.f32 %v2697, %v2701
    %v2706 = vmax.f32 %v2698, %v2702
    %v2707 = vmax.f32 %v2699, %v2703
    %v2708 = vmax.f32 %v2700, %v2704
    %v2709 = vmax.f32 %v2705, %v2706
    %v2710 = vmax.f32 %v2707, %v2708
    %v2711 = vmax.f32 %v2709, %v2710
    %v2712 = vrot.slane %v2711, 4
    %v2713 = vmax.f32 %v2711, %v2712
    %v2714 = vrot.slane %v2713, 2
    %v2715 = vmax.f32 %v2713, %v2714
    %v2716 = vrot.slane %v2715, 1
    %v2717 = vmax.f32 %v2715, %v2716
    %v2718 = vadd.f32 %v2665, %v2666
    %v2719 = vadd.f32 %v2718, %v2667
    %v2720 = vadd.f32 %v2719, %v2668
    %v2721 = vadd.f32 %v2720, %v2669
    %v2722 = vadd.f32 %v2721, %v2670
    %v2723 = vadd.f32 %v2722, %v2671
    %v2724 = vadd.f32 %v2723, %v2672
    %v2725 = vrot.slane %v2724, 4
    %v2726 = vadd.f32 %v2724, %v2725
    %v2727 = vrot.slane %v2726, 2
    %v2728 = vadd.f32 %v2726, %v2727
    %v2729 = vrot.slane %v2728, 1
    %v2730 = vadd.f32 %v2728, %v2729
    %v2731 = vmul.f32 %v2730, 0.03125
    %s2732 = scalar_lea.vmem [#allocation6], 384
    %v2733 = vld [vmem:[%s2732] sm:$0xff]
    %v2734 = vld [vmem:[%s2732 + $0x8] sm:$0xff]
    %v2735 = vld [vmem:[%s2732 + $0x10] sm:$0xff]
    %v2736 = vld [vmem:[%s2732 + $0x18] sm:$0xff]
    %v2737 = vld [vmem:[%s2732 + $0x20] sm:$0xff]
    %v2738 = vld [vmem:[%s2732 + $0x28] sm:$0xff]
    %v2739 = vld [vmem:[%s2732 + $0x30] sm:$0xff]
    %v2740 = vld [vmem:[%s2732 + $0x38] sm:$0xff]
    %v2741 = vld [vmem:[%s2732 + $0x40] sm:$0xff]
    %v2742 = vld [vmem:[%s2732 + $0x48] sm:$0xff]
    %v2743 = vld [vmem:[%s2732 + $0x50] sm:$0xff]
    %v2744 = vld [vmem:[%s2732 + $0x58] sm:$0xff]
    %v2745 = vld [vmem:[%s2732 + $0x60] sm:$0xff]
    %v2746 = vld [vmem:[%s2732 + $0x68] sm:$0xff]
    %v2747 = vld [vmem:[%s2732 + $0x70] sm:$0xff]
    %v2748 = vld [vmem:[%s2732 + $0x78] sm:$0xff]
    %s2749 = scalar_lea.vmem [#allocation6], 512
    %v2750 = vld [vmem:[%s2749] sm:$0xff]
    %v2751 = vld [vmem:[%s2749 + $0x8] sm:$0xff]
    %v2752 = vld [vmem:[%s2749 + $0x10] sm:$0xff]
    %v2753 = vld [vmem:[%s2749 + $0x18] sm:$0xff]
    %v2754 = vld [vmem:[%s2749 + $0x20] sm:$0xff]
    %v2755 = vld [vmem:[%s2749 + $0x28] sm:$0xff]
    %v2756 = vld [vmem:[%s2749 + $0x30] sm:$0xff]
    %v2757 = vld [vmem:[%s2749 + $0x38] sm:$0xff]
    %v2758 = vld [vmem:[%s2749 + $0x40] sm:$0xff]
    %v2759 = vld [vmem:[%s2749 + $0x48] sm:$0xff]
    %v2760 = vld [vmem:[%s2749 + $0x50] sm:$0xff]
    %v2761 = vld [vmem:[%s2749 + $0x58] sm:$0xff]
    %v2762 = vld [vmem:[%s2749 + $0x60] sm:$0xff]
    %v2763 = vld [vmem:[%s2749 + $0x68] sm:$0xff]
    %v2764 = vld [vmem:[%s2749 + $0x70] sm:$0xff]
    %v2765 = vld [vmem:[%s2749 + $0x78] sm:$0xff]
    %2766 = vmatpush.msra.mxu0 0.0
    %2767 = vmatpush.msra.mxu0 0.0
    %2768 = vmatpush.msra.mxu0 0.0
    %2769 = vmatpush.msra.mxu0 0.0
    %2770 = vmatpush.msra.mxu0 0.0
    %2771 = vmatpush.msra.mxu0 0.0
    %2772 = vmatpush.msra.mxu0 0.0
    %2773 = vmatpush.msra.mxu0 0.0
    %2774 = vmatpush.msra.mxu0 %v2672
    %2775 = vmatpush.msra.mxu0 %v2671
    %2776 = vmatpush.msra.mxu0 %v2670
    %2777 = vmatpush.msra.mxu0 %v2669
    %2778 = vmatpush.msra.mxu0 %v2668
    %2779 = vmatpush.msra.mxu0 %v2667
    %2780 = vmatpush.msra.mxu0 %v2666
    %2781 = vmatpush.msra.mxu0 %v2665
    %2782 = vmatmul.f32.gmra.mxu0 %v2057
    %v2783 = vpop.f32.mrf.mxu0
    %v2784 = vadd.f32 0.0, %v2783
    %2785 = vmatmul.f32.gmra.mxu0 %v2060
    %v2786 = vpop.f32.mrf.mxu0
    %v2787 = vadd.f32 0.0, %v2786
    %2788 = vmatmul.f32.gmra.mxu0 %v2063
    %v2789 = vpop.f32.mrf.mxu0
    %v2790 = vadd.f32 0.0, %v2789
    %2791 = vmatmul.f32.gmra.mxu0 %v2066
    %v2792 = vpop.f32.mrf.mxu0
    %v2793 = vadd.f32 0.0, %v2792
    %2794 = vmatmul.f32.gmra.mxu0 %v2069
    %v2795 = vpop.f32.mrf.mxu0
    %v2796 = vadd.f32 0.0, %v2795
    %2797 = vmatmul.f32.gmra.mxu0 %v2072
    %v2798 = vpop.f32.mrf.mxu0
    %v2799 = vadd.f32 0.0, %v2798
    %2800 = vmatmul.f32.gmra.mxu0 %v2075
    %v2801 = vpop.f32.mrf.mxu0
    %v2802 = vadd.f32 0.0, %v2801
    %2803 = vmatmul.f32.gmra.mxu0 %v2078
    %v2804 = vpop.f32.mrf.mxu0
    %v2805 = vadd.f32 0.0, %v2804
    %2806 = vdwg.mxu0
    %v2807 = vadd.f32 %v2665, %v2784
    %v2808 = vadd.f32 %v2666, %v2787
    %v2809 = vadd.f32 %v2667, %v2790
    %v2810 = vadd.f32 %v2668, %v2793
    %v2811 = vadd.f32 %v2669, %v2796
    %v2812 = vadd.f32 %v2670, %v2799
    %v2813 = vadd.f32 %v2671, %v2802
    %v2814 = vadd.f32 %v2672, %v2805
    %v2815 = vperm.slane %v115, 6
    %2816 = vmatpush.msra.mxu0 %v2748
    %2817 = vmatpush.msra.mxu0 %v2747
    %2818 = vmatpush.msra.mxu0 %v2746
    %2819 = vmatpush.msra.mxu0 %v2745
    %2820 = vmatpush.msra.mxu0 %v2744
    %2821 = vmatpush.msra.mxu0 %v2743
    %2822 = vmatpush.msra.mxu0 %v2742
    %2823 = vmatpush.msra.mxu0 %v2741
    %2824 = vmatpush.msra.mxu0 %v2740
    %2825 = vmatpush.msra.mxu0 %v2739
    %2826 = vmatpush.msra.mxu0 %v2738
    %2827 = vmatpush.msra.mxu0 %v2737
    %2828 = vmatpush.msra.mxu0 %v2736
    %2829 = vmatpush.msra.mxu0 %v2735
    %2830 = vmatpush.msra.mxu0 %v2734
    %2831 = vmatpush.msra.mxu0 %v2733
    %2832 = vmatmul.f32.gmra.mxu0 %v2807
    %v2833 = vpop.f32.mrf.mxu0
    %v2834 = vadd.f32 %v2815, %v2833
    %2835 = vmatmul.f32.gmra.mxu0 %v2808
    %v2836 = vpop.f32.mrf.mxu0
    %v2837 = vadd.f32 %v2815, %v2836
    %2838 = vmatmul.f32.gmra.mxu0 %v2809
    %v2839 = vpop.f32.mrf.mxu0
    %v2840 = vadd.f32 %v2815, %v2839
    %2841 = vmatmul.f32.gmra.mxu0 %v2810
    %v2842 = vpop.f32.mrf.mxu0
    %v2843 = vadd.f32 %v2815, %v2842
    %2844 = vmatmul.f32.gmra.mxu0 %v2811
    %v2845 = vpop.f32.mrf.mxu0
    %v2846 = vadd.f32 %v2815, %v2845
    %2847 = vmatmul.f32.gmra.mxu0 %v2812
    %v2848 = vpop.f32.mrf.mxu0
    %v2849 = vadd.f32 %v2815, %v2848
    %2850 = vmatmul.f32.gmra.mxu0 %v2813
    %v2851 = vpop.f32.mrf.mxu0
    %v2852 = vadd.f32 %v2815, %v2851
    %2853 = vmatmul.f32.gmra.mxu0 %v2814
    %v2854 = vpop.f32.mrf.mxu0
    %v2855 = vadd.f32 %v2815, %v2854
    %2856 = vdwg.mxu0
    %v2857 = vmax.f32 %v2834, 0.0
    %v2858 = vmax.f32 %v2837, 0.0
    %v2859 = vmax.f32 %v2840, 0.0
    %v2860 = vmax.f32 %v2843, 0.0
    %v2861 = vmax.f32 %v2846, 0.0
    %v2862 = vmax.f32 %v2849, 0.0
    %v2863 = vmax.f32 %v2852, 0.0
    %v2864 = vmax.f32 %v2855, 0.0
    %v2865 = vperm.slane %v115, 7
    %2866 = vmatpush.msra.mxu0 %v2765
    %2867 = vmatpush.msra.mxu0 %v2764
    %2868 = vmatpush.msra.mxu0 %v2763
    %2869 = vmatpush.msra.mxu0 %v2762
    %2870 = vmatpush.msra.mxu0 %v2761
    %2871 = vmatpush.msra.mxu0 %v2760
    %2872 = vmatpush.msra.mxu0 %v2759
    %2873 = vmatpush.msra.mxu0 %v2758
    %2874 = vmatpush.msra.mxu0 %v2757
    %2875 = vmatpush.msra.mxu0 %v2756
    %2876 = vmatpush.msra.mxu0 %v2755
    %2877 = vmatpush.msra.mxu0 %v2754
    %2878 = vmatpush.msra.mxu0 %v2753
    %2879 = vmatpush.msra.mxu0 %v2752
    %2880 = vmatpush.msra.mxu0 %v2751
    %2881 = vmatpush.msra.mxu0 %v2750
    %2882 = vmatmul.f32.gmra.mxu0 %v2857
    %v2883 = vpop.f32.mrf.mxu0
    %v2884 = vadd.f32 %v2865, %v2883
    %2885 = vmatmul.f32.gmra.mxu0 %v2858
    %v2886 = vpop.f32.mrf.mxu0
    %v2887 = vadd.f32 %v2865, %v2886
    %2888 = vmatmul.f32.gmra.mxu0 %v2859
    %v2889 = vpop.f32.mrf.mxu0
    %v2890 = vadd.f32 %v2865, %v2889
    %2891 = vmatmul.f32.gmra.mxu0 %v2860
    %v2892 = vpop.f32.mrf.mxu0
    %v2893 = vadd.f32 %v2865, %v2892
    %2894 = vmatmul.f32.gmra.mxu0 %v2861
    %v2895 = vpop.f32.mrf.mxu0
    %v2896 = vadd.f32 %v2865, %v2895
    %2897 = vmatmul.f32.gmra.mxu0 %v2862
    %v2898 = vpop.f32.mrf.mxu0
    %v2899 = vadd.f32 %v2865, %v2898
    %2900 = vmatmul.f32.gmra.mxu0 %v2863
    %v2901 = vpop.f32.mrf.mxu0
    %v2902 = vadd.f32 %v2865, %v2901
    %2903 = vmatmul.f32.gmra.mxu0 %v2864
    %v2904 = vpop.f32.mrf.mxu0
    %v2905 = vadd.f32 %v2865, %v2904
    %2906 = vdwg.mxu0
    %2907 = vadd.xlane.f32.xlu0 %v2884
    %v2908 = vpop.xlane.xlu0 %2907
    %2909 = vadd.xlane.f32.xlu0 %v2887
    %v2910 = vpop.xlane.xlu0 %2909
    %2911 = vadd.xlane.f32.xlu0 %v2890
    %v2912 = vpop.xlane.xlu0 %2911
    %2913 = vadd.xlane.f32.xlu0 %v2893
    %v2914 = vpop.xlane.xlu0 %2913
    %2915 = vadd.xlane.f32.xlu0 %v2896
    %v2916 = vpop.xlane.xlu0 %2915
    %2917 = vadd.xlane.f32.xlu0 %v2899
    %v2918 = vpop.xlane.xlu0 %2917
    %2919 = vadd.xlane.f32.xlu0 %v2902
    %v2920 = vpop.xlane.xlu0 %2919
    %2921 = vadd.xlane.f32.xlu0 %v2905
    %v2922 = vpop.xlane.xlu0 %2921
    %v2923 = vmul.f32 %v2908, %v2243
    %v2924 = vmul.f32 %v2910, %v2243
    %v2925 = vmul.f32 %v2912, %v2243
    %v2926 = vmul.f32 %v2914, %v2243
    %v2927 = vmul.f32 %v2916, %v2243
    %v2928 = vmul.f32 %v2918, %v2243
    %v2929 = vmul.f32 %v2920, %v2243
    %v2930 = vmul.f32 %v2922, %v2243
    %v2931 = vsub.f32 %v2884, %v2923
    %v2932 = vsub.f32 %v2887, %v2924
    %v2933 = vsub.f32 %v2890, %v2925
    %v2934 = vsub.f32 %v2893, %v2926
    %v2935 = vsub.f32 %v2896, %v2927
    %v2936 = vsub.f32 %v2899, %v2928
    %v2937 = vsub.f32 %v2902, %v2929
    %v2938 = vsub.f32 %v2905, %v2930
    %v2939 = vmul.f32 %v2931, %v2931
    %v2940 = vmul.f32 %v2932, %v2932
    %v2941 = vmul.f32 %v2933, %v2933
    %v2942 = vmul.f32 %v2934, %v2934
    %v2943 = vmul.f32 %v2935, %v2935
    %v2944 = vmul.f32 %v2936, %v2936
    %v2945 = vmul.f32 %v2937, %v2937
    %v2946 = vmul.f32 %v2938, %v2938
    %2947 = vadd.xlane.f32.xlu0 %v2939
    %v2948 = vpop.xlane.xlu0 %2947
    %2949 = vadd.xlane.f32.xlu0 %v2940
    %v2950 = vpop.xlane.xlu0 %2949
    %2951 = vadd.xlane.f32.xlu0 %v2941
    %v2952 = vpop.xlane.xlu0 %2951
    %2953 = vadd.xlane.f32.xlu0 %v2942
    %v2954 = vpop.xlane.xlu0 %2953
    %2955 = vadd.xlane.f32.xlu0 %v2943
    %v2956 = vpop.xlane.xlu0 %2955
    %2957 = vadd.xlane.f32.xlu0 %v2944
    %v2958 = vpop.xlane.xlu0 %2957
    %2959 = vadd.xlane.f32.xlu0 %v2945
    %v2960 = vpop.xlane.xlu0 %2959
    %2961 = vadd.xlane.f32.xlu0 %v2946
    %v2962 = vpop.xlane.xlu0 %2961
    %v2963 = vmul.f32 %v2948, %v2243
    %v2964 = vmul.f32 %v2950, %v2243
    %v2965 = vmul.f32 %v2952, %v2243
    %v2966 = vmul.f32 %v2954, %v2243
    %v2967 = vmul.f32 %v2956, %v2243
    %v2968 = vmul.f32 %v2958, %v2243
    %v2969 = vmul.f32 %v2960, %v2243
    %v2970 = vmul.f32 %v2962, %v2243
    %v2971 = vadd.f32 %v2963, 1e-05
    %v2972 = vadd.f32 %v2964, 1e-05
    %v2973 = vadd.f32 %v2965, 1e-05
    %v2974 = vadd.f32 %v2966, 1e-05
    %v2975 = vadd.f32 %v2967, 1e-05
    %v2976 = vadd.f32 %v2968, 1e-05
    %v2977 = vadd.f32 %v2969, 1e-05
    %v2978 = vadd.f32 %v2970, 1e-05
    %v2979 = vrsqrt.pop %v2971
    %v2980 = vmul.f32 %v2979, %v2971
    %v2981 = vmul.f32 %v2980, %v2979
    %v2982 = vmul.f32 0.5, %v2981
    %v2983 = vsub.f32 1.5, %v2982
    %v2984 = vmul.f32 %v2979, %v2983
    %vm2985 = vweird.f32 %v2971
    %vm2986 = vweird.f32 %v2979
    %vm2987 = vmor %vm2985, %vm2986
    %v2988 = vsel %vm2987, %v2979, %v2984
    %v2989 = vrsqrt.pop %v2972
    %v2990 = vmul.f32 %v2989, %v2972
    %v2991 = vmul.f32 %v2990, %v2989
    %v2992 = vmul.f32 0.5, %v2991
    %v2993 = vsub.f32 1.5, %v2992
    %v2994 = vmul.f32 %v2989, %v2993
    %vm2995 = vweird.f32 %v2972
    %vm2996 = vweird.f32 %v2989
    %vm2997 = vmor %vm2995, %vm2996
    %v2998 = vsel %vm2997, %v2989, %v2994
    %v2999 = vrsqrt.pop %v2973
    %v3000 = vmul.f32 %v2999, %v2973
    %v3001 = vmul.f32 %v3000, %v2999
    %v3002 = vmul.f32 0.5, %v3001
    %v3003 = vsub.f32 1.5, %v3002
    %v3004 = vmul.f32 %v2999, %v3003
    %vm3005 = vweird.f32 %v2973
    %vm3006 = vweird.f32 %v2999
    %vm3007 = vmor %vm3005, %vm3006
    %v3008 = vsel %vm3007, %v2999, %v3004
    %v3009 = vrsqrt.pop %v2974
    %v3010 = vmul.f32 %v3009, %v2974
    %v3011 = vmul.f32 %v3010, %v3009
    %v3012 = vmul.f32 0.5, %v3011
    %v3013 = vsub.f32 1.5, %v3012
    %v3014 = vmul.f32 %v3009, %v3013
    %vm3015 = vweird.f32 %v2974
    %vm3016 = vweird.f32 %v3009
    %vm3017 = vmor %vm3015, %vm3016
    %v3018 = vsel %vm3017, %v3009, %v3014
    %v3019 = vrsqrt.pop %v2975
    %v3020 = vmul.f32 %v3019, %v2975
    %v3021 = vmul.f32 %v3020, %v3019
    %v3022 = vmul.f32 0.5, %v3021
    %v3023 = vsub.f32 1.5, %v3022
    %v3024 = vmul.f32 %v3019, %v3023
    %vm3025 = vweird.f32 %v2975
    %vm3026 = vweird.f32 %v3019
    %vm3027 = vmor %vm3025, %vm3026
    %v3028 = vsel %vm3027, %v3019, %v3024
    %v3029 = vrsqrt.pop %v2976
    %v3030 = vmul.f32 %v3029, %v2976
    %v3031 = vmul.f32 %v3030, %v3029
    %v3032 = vmul.f32 0.5, %v3031
    %v3033 = vsub.f32 1.5, %v3032
    %v3034 = vmul.f32 %v3029, %v3033
    %vm3035 = vweird.f32 %v2976
    %vm3036 = vweird.f32 %v3029
    %vm3037 = vmor %vm3035, %vm3036
    %v3038 = vsel %vm3037, %v3029, %v3034
    %v3039 = vrsqrt.pop %v2977
    %v3040 = vmul.f32 %v3039, %v2977
    %v3041 = vmul.f32 %v3040, %v3039
    %v3042 = vmul.f32 0.5, %v3041
    %v3043 = vsub.f32 1.5, %v3042
    %v3044 = vmul.f32 %v3039, %v3043
    %vm3045 = vweird.f32 %v2977
    %vm3046 = vweird.f32 %v3039
    %vm3047 = vmor %vm3045, %vm3046
    %v3048 = vsel %vm3047, %v3039, %v3044
    %v3049 = vrsqrt.pop %v2978
    %v3050 = vmul.f32 %v3049, %v2978
    %v3051 = vmul.f32 %v3050, %v3049
    %v3052 = vmul.f32 0.5, %v3051
    %v3053 = vsub.f32 1.5, %v3052
    %v3054 = vmul.f32 %v3049, %v3053
    %vm3055 = vweird.f32 %v2978
    %vm3056 = vweird.f32 %v3049
    %vm3057 = vmor %vm3055, %vm3056
    %v3058 = vsel %vm3057, %v3049, %v3054
    %v3059 = vmul.f32 %v2931, %v2988
    %v3060 = vmul.f32 %v2932, %v2998
    %v3061 = vmul.f32 %v2933, %v3008
    %v3062 = vmul.f32 %v2934, %v3018
    %v3063 = vmul.f32 %v2935, %v3028
    %v3064 = vmul.f32 %v2936, %v3038
    %v3065 = vmul.f32 %v2937, %v3048
    %v3066 = vmul.f32 %v2938, %v3058
    %v3067 = vperm.slane %v116, 0
    %v3068 = vmul.f32 %v3059, %v3067
    %v3069 = vmul.f32 %v3060, %v3067
    %v3070 = vmul.f32 %v3061, %v3067
    %v3071 = vmul.f32 %v3062, %v3067
    %v3072 = vmul.f32 %v3063, %v3067
    %v3073 = vmul.f32 %v3064, %v3067
    %v3074 = vmul.f32 %v3065, %v3067
    %v3075 = vmul.f32 %v3066, %v3067
    %v3076 = vperm.slane %v116, 1
    %v3077 = vadd.f32 %v3068, %v3076
    %v3078 = vadd.f32 %v3069, %v3076
    %v3079 = vadd.f32 %v3070, %v3076
    %v3080 = vadd.f32 %v3071, %v3076
    %v3081 = vadd.f32 %v3072, %v3076
    %v3082 = vadd.f32 %v3073, %v3076
    %v3083 = vadd.f32 %v3074, %v3076
    %v3084 = vadd.f32 %v3075, %v3076
    %vm3085 = vcmp.gt.f32.partialorder %v3077, 0.0
    %vm3086 = vcmp.gt.f32.partialorder %v3078, 0.0
    %vm3087 = vcmp.gt.f32.partialorder %v3079, 0.0
    %vm3088 = vcmp.gt.f32.partialorder %v3080, 0.0
    %vm3089 = vcmp.gt.f32.partialorder %v3081, 0.0
    %vm3090 = vcmp.gt.f32.partialorder %v3082, 0.0
    %vm3091 = vcmp.gt.f32.partialorder %v3083, 0.0
    %vm3092 = vcmp.gt.f32.partialorder %v3084, 0.0
    %v3093 = vmul.f32 %v3077, 0.1
    %v3094 = vmul.f32 %v3078, 0.1
    %v3095 = vmul.f32 %v3079, 0.1
    %v3096 = vmul.f32 %v3080, 0.1
    %v3097 = vmul.f32 %v3081, 0.1
    %v3098 = vmul.f32 %v3082, 0.1
    %v3099 = vmul.f32 %v3083, 0.1
    %v3100 = vmul.f32 %v3084, 0.1
    %v3101 = vsel %vm3085, %v3077, %v3093
    %v3102 = vsel %vm3086, %v3078, %v3094
    %v3103 = vsel %vm3087, %v3079, %v3095
    %v3104 = vsel %vm3088, %v3080, %v3096
    %v3105 = vsel %vm3089, %v3081, %v3097
    %v3106 = vsel %vm3090, %v3082, %v3098
    %v3107 = vsel %vm3091, %v3083, %v3099
    %v3108 = vsel %vm3092, %v3084, %v3100
    %v3109 = vmul.f32 %v116, %v116
    %vm3110 = vcmask 1042434
    %v3111 = vsel %vm3110, %v3109, 0.0
    %3112 = vadd.xlane.f32.xlu0 %v3111
    %v3113 = vpop.xlane.xlu0 %3112
    %v3114 = vrsqrt.pop %v3113
    %v3115 = vmul.f32 %v3114, %v3113
    %v3116 = vmul.f32 %v3115, %v3114
    %v3117 = vmul.f32 0.5, %v3116
    %v3118 = vsub.f32 1.5, %v3117
    %v3119 = vmul.f32 %v3114, %v3118
    %vm3120 = vweird.f32 %v3113
    %vm3121 = vweird.f32 %v3114
    %vm3122 = vmor %vm3120, %vm3121
    %v3123 = vsel %vm3122, %v3114, %v3119
    %v3124 = vperm.slane %v116, 2
    %v3125 = vmul.f32 %v3101, %v3124
    %v3126 = vmul.f32 %v3102, %v3124
    %v3127 = vmul.f32 %v3103, %v3124
    %v3128 = vmul.f32 %v3104, %v3124
    %v3129 = vmul.f32 %v3105, %v3124
    %v3130 = vmul.f32 %v3106, %v3124
    %v3131 = vmul.f32 %v3107, %v3124
    %v3132 = vmul.f32 %v3108, %v3124
    %3133 = vadd.xlane.f32.xlu0 %v3125
    %v3134 = vpop.xlane.xlu0 %3133
    %3135 = vadd.xlane.f32.xlu0 %v3126
    %v3136 = vpop.xlane.xlu0 %3135
    %3137 = vadd.xlane.f32.xlu0 %v3127
    %v3138 = vpop.xlane.xlu0 %3137
    %3139 = vadd.xlane.f32.xlu0 %v3128
    %v3140 = vpop.xlane.xlu0 %3139
    %3141 = vadd.xlane.f32.xlu0 %v3129
    %v3142 = vpop.xlane.xlu0 %3141
    %3143 = vadd.xlane.f32.xlu0 %v3130
    %v3144 = vpop.xlane.xlu0 %3143
    %3145 = vadd.xlane.f32.xlu0 %v3131
    %v3146 = vpop.xlane.xlu0 %3145
    %3147 = vadd.xlane.f32.xlu0 %v3132
    %v3148 = vpop.xlane.xlu0 %3147
    %v3149 = vperm.slane %v3123, 2
    %v3150 = vmul.f32 %v3134, %v3149
    %v3151 = vmul.f32 %v3136, %v3149
    %v3152 = vmul.f32 %v3138, %v3149
    %v3153 = vmul.f32 %v3140, %v3149
    %v3154 = vmul.f32 %v3142, %v3149
    %v3155 = vmul.f32 %v3144, %v3149
    %v3156 = vmul.f32 %v3146, %v3149
    %v3157 = vmul.f32 %v3148, %v3149
    %v3158 = vtanh.pop %v3150
    %v3159 = vtanh.pop %v3151
    %v3160 = vtanh.pop %v3152
    %v3161 = vtanh.pop %v3153
    %v3162 = vtanh.pop %v3154
    %v3163 = vtanh.pop %v3155
    %v3164 = vtanh.pop %v3156
    %v3165 = vtanh.pop %v3157
    %v3166 = vsel %vm2673, %v3158, -1e+30
    %v3167 = vsel %vm2674, %v3159, -1e+30
    %v3168 = vsel %vm2675, %v3160, -1e+30
    %v3169 = vsel %vm2676, %v3161, -1e+30
    %v3170 = vsel %vm2677, %v3162, -1e+30
    %v3171 = vsel %vm2678, %v3163, -1e+30
    %v3172 = vsel %vm2679, %v3164, -1e+30
    %v3173 = vsel %vm2680, %v3165, -1e+30
    %3174 = vxpose.xlu0.b32.start [1/16] %v3166, 128
    %3175 = vxpose.xlu0.b32.cont [2/16] %v3167, 128
    %3176 = vxpose.xlu0.b32.cont [3/16] %v3168, 128
    %3177 = vxpose.xlu0.b32.cont [4/16] %v3169, 128
    %3178 = vxpose.xlu0.b32.cont [5/16] %v3170, 128
    %3179 = vxpose.xlu0.b32.cont [6/16] %v3171, 128
    %3180 = vxpose.xlu0.b32.cont [7/16] %v3172, 128
    %3181 = vxpose.xlu0.b32.cont [8/16] %v3173, 128
    %3182 = vxpose.xlu0.b32.cont [9/16] 0.0, 128
    %3183 = vxpose.xlu0.b32.cont [10/16] 0.0, 128
    %3184 = vxpose.xlu0.b32.cont [11/16] 0.0, 128
    %3185 = vxpose.xlu0.b32.cont [12/16] 0.0, 128
    %3186 = vxpose.xlu0.b32.cont [13/16] 0.0, 128
    %3187 = vxpose.xlu0.b32.cont [14/16] 0.0, 128
    %3188 = vxpose.xlu0.b32.cont [15/16] 0.0, 128
    %3189 = vxpose.xlu0.b32.end [16/16] 0.0, 128
    %v3190 = vpop.trf.xlu0
    %v3191 = vpop.trf.xlu0
    %v3192 = vpop.trf.xlu0
    %v3193 = vpop.trf.xlu0
    %v3194 = vpop.trf.xlu0
    %v3195 = vpop.trf.xlu0
    %v3196 = vpop.trf.xlu0
    %v3197 = vpop.trf.xlu0
    %v3198 = vpop.trf.xlu0
    %v3199 = vpop.trf.xlu0
    %v3200 = vpop.trf.xlu0
    %v3201 = vpop.trf.xlu0
    %v3202 = vpop.trf.xlu0
    %v3203 = vpop.trf.xlu0
    %v3204 = vpop.trf.xlu0
    %v3205 = vpop.trf.xlu0
    %v3206 = vperm.slane %v3190, 0
    %vm3207 = vcmp.gt.f32.partialorder %v3206, %v3166
    %vm3208 = vcmp.gt.f32.partialorder %v3206, %v3167
    %vm3209 = vcmp.gt.f32.partialorder %v3206, %v3168
    %vm3210 = vcmp.gt.f32.partialorder %v3206, %v3169
    %vm3211 = vcmp.gt.f32.partialorder %v3206, %v3170
    %vm3212 = vcmp.gt.f32.partialorder %v3206, %v3171
    %vm3213 = vcmp.gt.f32.partialorder %v3206, %v3172
    %vm3214 = vcmp.gt.f32.partialorder %v3206, %v3173
    %v3215 = vsel %vm3207, 1, 0
    %v3216 = vsel %vm3208, 1, 0
    %v3217 = vsel %vm3209, 1, 0
    %v3218 = vsel %vm3210, 1, 0
    %v3219 = vsel %vm3211, 1, 0
    %v3220 = vsel %vm3212, 1, 0
    %v3221 = vsel %vm3213, 1, 0
    %v3222 = vsel %vm3214, 1, 0
    %v3223 = vcvt.s32.f32 %v3215
    %v3224 = vcvt.s32.f32 %v3216
    %v3225 = vcvt.s32.f32 %v3217
    %v3226 = vcvt.s32.f32 %v3218
    %v3227 = vcvt.s32.f32 %v3219
    %v3228 = vcvt.s32.f32 %v3220
    %v3229 = vcvt.s32.f32 %v3221
    %v3230 = vcvt.s32.f32 %v3222
    %vm3231 = vcmp.eq.f32.partialorder %v3206, %v3166
    %vm3232 = vcmp.eq.f32.partialorder %v3206, %v3167
    %vm3233 = vcmp.eq.f32.partialorder %v3206, %v3168
    %vm3234 = vcmp.eq.f32.partialorder %v3206, %v3169
    %vm3235 = vcmp.eq.f32.partialorder %v3206, %v3170
    %vm3236 = vcmp.eq.f32.partialorder %v3206, %v3171
    %vm3237 = vcmp.eq.f32.partialorder %v3206, %v3172
    %vm3238 = vcmp.eq.f32.partialorder %v3206, %v3173
    %vm3239 = vmand %vm3231, %vm2569
    %vm3240 = vmand %vm3232, %vm2570
    %vm3241 = vmand %vm3233, %vm2571
    %vm3242 = vmand %vm3234, %vm2572
    %vm3243 = vmand %vm3235, %vm2573
    %vm3244 = vmand %vm3236, %vm2574
    %vm3245 = vmand %vm3237, %vm2575
    %vm3246 = vmand %vm3238, %vm2576
    %v3247 = vsel %vm3239, 1, 0
    %v3248 = vsel %vm3240, 1, 0
    %v3249 = vsel %vm3241, 1, 0
    %v3250 = vsel %vm3242, 1, 0
    %v3251 = vsel %vm3243, 1, 0
    %v3252 = vsel %vm3244, 1, 0
    %v3253 = vsel %vm3245, 1, 0
    %v3254 = vsel %vm3246, 1, 0
    %v3255 = vcvt.s32.f32 %v3247
    %v3256 = vcvt.s32.f32 %v3248
    %v3257 = vcvt.s32.f32 %v3249
    %v3258 = vcvt.s32.f32 %v3250
    %v3259 = vcvt.s32.f32 %v3251
    %v3260 = vcvt.s32.f32 %v3252
    %v3261 = vcvt.s32.f32 %v3253
    %v3262 = vcvt.s32.f32 %v3254
    %v3263 = vadd.f32 %v3223, %v3255
    %v3264 = vadd.f32 %v3224, %v3256
    %v3265 = vadd.f32 %v3225, %v3257
    %v3266 = vadd.f32 %v3226, %v3258
    %v3267 = vadd.f32 %v3227, %v3259
    %v3268 = vadd.f32 %v3228, %v3260
    %v3269 = vadd.f32 %v3229, %v3261
    %v3270 = vadd.f32 %v3230, %v3262
    %v3271 = vsel %vm275, %v3263, 0.0
    %3272 = vadd.xlane.f32.xlu0 %v3271
    %v3273 = vpop.xlane.xlu0 %3272
    %v3274 = vsel %vm275, %v3264, 0.0
    %3275 = vadd.xlane.f32.xlu0 %v3274
    %v3276 = vpop.xlane.xlu0 %3275
    %v3277 = vsel %vm275, %v3265, 0.0
    %3278 = vadd.xlane.f32.xlu0 %v3277
    %v3279 = vpop.xlane.xlu0 %3278
    %v3280 = vsel %vm275, %v3266, 0.0
    %3281 = vadd.xlane.f32.xlu0 %v3280
    %v3282 = vpop.xlane.xlu0 %3281
    %v3283 = vsel %vm275, %v3267, 0.0
    %3284 = vadd.xlane.f32.xlu0 %v3283
    %v3285 = vpop.xlane.xlu0 %3284
    %v3286 = vsel %vm275, %v3268, 0.0
    %3287 = vadd.xlane.f32.xlu0 %v3286
    %v3288 = vpop.xlane.xlu0 %3287
    %v3289 = vsel %vm275, %v3269, 0.0
    %3290 = vadd.xlane.f32.xlu0 %v3289
    %v3291 = vpop.xlane.xlu0 %3290
    %v3292 = vsel %vm275, %v3270, 0.0
    %3293 = vadd.xlane.f32.xlu0 %v3292
    %v3294 = vpop.xlane.xlu0 %3293
    %vm3295 = vcmp.lt.f32.partialorder %v3273, 16.0
    %vm3296 = vcmp.lt.f32.partialorder %v3276, 16.0
    %vm3297 = vcmp.lt.f32.partialorder %v3279, 16.0
    %vm3298 = vcmp.lt.f32.partialorder %v3282, 16.0
    %vm3299 = vcmp.lt.f32.partialorder %v3285, 16.0
    %vm3300 = vcmp.lt.f32.partialorder %v3288, 16.0
    %vm3301 = vcmp.lt.f32.partialorder %v3291, 16.0
    %vm3302 = vcmp.lt.f32.partialorder %v3294, 16.0
    %v3303 = vsel %vm3295, 1, 0
    %v3304 = vsel %vm3296, 1, 0
    %v3305 = vsel %vm3297, 1, 0
    %v3306 = vsel %vm3298, 1, 0
    %v3307 = vsel %vm3299, 1, 0
    %v3308 = vsel %vm3300, 1, 0
    %v3309 = vsel %vm3301, 1, 0
    %v3310 = vsel %vm3302, 1, 0
    %v3311 = vcvt.s32.f32 %v3303
    %v3312 = vcvt.s32.f32 %v3304
    %v3313 = vcvt.s32.f32 %v3305
    %v3314 = vcvt.s32.f32 %v3306
    %v3315 = vcvt.s32.f32 %v3307
    %v3316 = vcvt.s32.f32 %v3308
    %v3317 = vcvt.s32.f32 %v3309
    %v3318 = vcvt.s32.f32 %v3310
    %v3319 = vmul.f32 %v2649, %v3311
    %v3320 = vmul.f32 %v2650, %v3312
    %v3321 = vmul.f32 %v2651, %v3313
    %v3322 = vmul.f32 %v2652, %v3314
    %v3323 = vmul.f32 %v2653, %v3315
    %v3324 = vmul.f32 %v2654, %v3316
    %v3325 = vmul.f32 %v2655, %v3317
    %v3326 = vmul.f32 %v2656, %v3318
    %v3327 = vmul.f32 %v3319, %v3158
    %v3328 = vmul.f32 %v3320, %v3159
    %v3329 = vmul.f32 %v3321, %v3160
    %v3330 = vmul.f32 %v3322, %v3161
    %v3331 = vmul.f32 %v3323, %v3162
    %v3332 = vmul.f32 %v3324, %v3163
    %v3333 = vmul.f32 %v3325, %v3164
    %v3334 = vmul.f32 %v3326, %v3165
    %v3335 = vmul.f32 %v3101, %v3327
    %v3336 = vmul.f32 %v3102, %v3328
    %v3337 = vmul.f32 %v3103, %v3329
    %v3338 = vmul.f32 %v3104, %v3330
    %v3339 = vmul.f32 %v3105, %v3331
    %v3340 = vmul.f32 %v3106, %v3332
    %v3341 = vmul.f32 %v3107, %v3333
    %v3342 = vmul.f32 %v3108, %v3334
    %vm3343 = vcmp.gt.f32.partialorder %v3319, 0.5
    %vm3344 = vcmp.gt.f32.partialorder %v3320, 0.5
    %vm3345 = vcmp.gt.f32.partialorder %v3321, 0.5
    %vm3346 = vcmp.gt.f32.partialorder %v3322, 0.5
    %vm3347 = vcmp.gt.f32.partialorder %v3323, 0.5
    %vm3348 = vcmp.gt.f32.partialorder %v3324, 0.5
    %vm3349 = vcmp.gt.f32.partialorder %v3325, 0.5
    %vm3350 = vcmp.gt.f32.partialorder %v3326, 0.5
    %v3351 = vsel %vm3343, 1, 0
    %v3352 = vsel %vm3344, 1, 0
    %v3353 = vsel %vm3345, 1, 0
    %v3354 = vsel %vm3346, 1, 0
    %v3355 = vsel %vm3347, 1, 0
    %v3356 = vsel %vm3348, 1, 0
    %v3357 = vsel %vm3349, 1, 0
    %v3358 = vsel %vm3350, 1, 0
    %vm3359 = vcmp.eq.s32.totalorder %v3351, 1
    %vm3360 = vcmp.eq.s32.totalorder %v3352, 1
    %vm3361 = vcmp.eq.s32.totalorder %v3353, 1
    %vm3362 = vcmp.eq.s32.totalorder %v3354, 1
    %vm3363 = vcmp.eq.s32.totalorder %v3355, 1
    %vm3364 = vcmp.eq.s32.totalorder %v3356, 1
    %vm3365 = vcmp.eq.s32.totalorder %v3357, 1
    %vm3366 = vcmp.eq.s32.totalorder %v3358, 1
    %v3367 = vsel %vm3359, %v3335, -1e+30
    %v3368 = vsel %vm3360, %v3336, -1e+30
    %v3369 = vsel %vm3361, %v3337, -1e+30
    %v3370 = vsel %vm3362, %v3338, -1e+30
    %v3371 = vsel %vm3363, %v3339, -1e+30
    %v3372 = vsel %vm3364, %v3340, -1e+30
    %v3373 = vsel %vm3365, %v3341, -1e+30
    %v3374 = vsel %vm3366, %v3342, -1e+30
    %v3375 = vmax.f32 %v3367, %v3371
    %v3376 = vmax.f32 %v3368, %v3372
    %v3377 = vmax.f32 %v3369, %v3373
    %v3378 = vmax.f32 %v3370, %v3374
    %v3379 = vmax.f32 %v3375, %v3376
    %v3380 = vmax.f32 %v3377, %v3378
    %v3381 = vmax.f32 %v3379, %v3380
    %v3382 = vrot.slane %v3381, 4
    %v3383 = vmax.f32 %v3381, %v3382
    %v3384 = vrot.slane %v3383, 2
    %v3385 = vmax.f32 %v3383, %v3384
    %v3386 = vrot.slane %v3385, 1
    %v3387 = vmax.f32 %v3385, %v3386
    %v3388 = vadd.f32 %v3335, %v3336
    %v3389 = vadd.f32 %v3388, %v3337
    %v3390 = vadd.f32 %v3389, %v3338
    %v3391 = vadd.f32 %v3390, %v3339
    %v3392 = vadd.f32 %v3391, %v3340
    %v3393 = vadd.f32 %v3392, %v3341
    %v3394 = vadd.f32 %v3393, %v3342
    %v3395 = vrot.slane %v3394, 4
    %v3396 = vadd.f32 %v3394, %v3395
    %v3397 = vrot.slane %v3396, 2
    %v3398 = vadd.f32 %v3396, %v3397
    %v3399 = vrot.slane %v3398, 1
    %v3400 = vadd.f32 %v3398, %v3399
    %v3401 = vmul.f32 %v3400, 0.0625
    %s3402 = scalar_lea.vmem [#allocation6], 640
    %v3403 = vld [vmem:[%s3402] sm:$0xff]
    %v3404 = vld [vmem:[%s3402 + $0x8] sm:$0xff]
    %v3405 = vld [vmem:[%s3402 + $0x10] sm:$0xff]
    %v3406 = vld [vmem:[%s3402 + $0x18] sm:$0xff]
    %v3407 = vld [vmem:[%s3402 + $0x20] sm:$0xff]
    %v3408 = vld [vmem:[%s3402 + $0x28] sm:$0xff]
    %v3409 = vld [vmem:[%s3402 + $0x30] sm:$0xff]
    %v3410 = vld [vmem:[%s3402 + $0x38] sm:$0xff]
    %v3411 = vld [vmem:[%s3402 + $0x40] sm:$0xff]
    %v3412 = vld [vmem:[%s3402 + $0x48] sm:$0xff]
    %v3413 = vld [vmem:[%s3402 + $0x50] sm:$0xff]
    %v3414 = vld [vmem:[%s3402 + $0x58] sm:$0xff]
    %v3415 = vld [vmem:[%s3402 + $0x60] sm:$0xff]
    %v3416 = vld [vmem:[%s3402 + $0x68] sm:$0xff]
    %v3417 = vld [vmem:[%s3402 + $0x70] sm:$0xff]
    %v3418 = vld [vmem:[%s3402 + $0x78] sm:$0xff]
    %s3419 = scalar_lea.vmem [#allocation6], 768
    %v3420 = vld [vmem:[%s3419] sm:$0xff]
    %v3421 = vld [vmem:[%s3419 + $0x8] sm:$0xff]
    %v3422 = vld [vmem:[%s3419 + $0x10] sm:$0xff]
    %v3423 = vld [vmem:[%s3419 + $0x18] sm:$0xff]
    %v3424 = vld [vmem:[%s3419 + $0x20] sm:$0xff]
    %v3425 = vld [vmem:[%s3419 + $0x28] sm:$0xff]
    %v3426 = vld [vmem:[%s3419 + $0x30] sm:$0xff]
    %v3427 = vld [vmem:[%s3419 + $0x38] sm:$0xff]
    %v3428 = vld [vmem:[%s3419 + $0x40] sm:$0xff]
    %v3429 = vld [vmem:[%s3419 + $0x48] sm:$0xff]
    %v3430 = vld [vmem:[%s3419 + $0x50] sm:$0xff]
    %v3431 = vld [vmem:[%s3419 + $0x58] sm:$0xff]
    %v3432 = vld [vmem:[%s3419 + $0x60] sm:$0xff]
    %v3433 = vld [vmem:[%s3419 + $0x68] sm:$0xff]
    %v3434 = vld [vmem:[%s3419 + $0x70] sm:$0xff]
    %v3435 = vld [vmem:[%s3419 + $0x78] sm:$0xff]
    %3436 = vmatpush.msra.mxu0 0.0
    %3437 = vmatpush.msra.mxu0 0.0
    %3438 = vmatpush.msra.mxu0 0.0
    %3439 = vmatpush.msra.mxu0 0.0
    %3440 = vmatpush.msra.mxu0 0.0
    %3441 = vmatpush.msra.mxu0 0.0
    %3442 = vmatpush.msra.mxu0 0.0
    %3443 = vmatpush.msra.mxu0 0.0
    %3444 = vmatpush.msra.mxu0 %v3342
    %3445 = vmatpush.msra.mxu0 %v3341
    %3446 = vmatpush.msra.mxu0 %v3340
    %3447 = vmatpush.msra.mxu0 %v3339
    %3448 = vmatpush.msra.mxu0 %v3338
    %3449 = vmatpush.msra.mxu0 %v3337
    %3450 = vmatpush.msra.mxu0 %v3336
    %3451 = vmatpush.msra.mxu0 %v3335
    %3452 = vmatmul.f32.gmra.mxu0 %v2057
    %v3453 = vpop.f32.mrf.mxu0
    %v3454 = vadd.f32 0.0, %v3453
    %3455 = vmatmul.f32.gmra.mxu0 %v2060
    %v3456 = vpop.f32.mrf.mxu0
    %v3457 = vadd.f32 0.0, %v3456
    %3458 = vmatmul.f32.gmra.mxu0 %v2063
    %v3459 = vpop.f32.mrf.mxu0
    %v3460 = vadd.f32 0.0, %v3459
    %3461 = vmatmul.f32.gmra.mxu0 %v2066
    %v3462 = vpop.f32.mrf.mxu0
    %v3463 = vadd.f32 0.0, %v3462
    %3464 = vmatmul.f32.gmra.mxu0 %v2069
    %v3465 = vpop.f32.mrf.mxu0
    %v3466 = vadd.f32 0.0, %v3465
    %3467 = vmatmul.f32.gmra.mxu0 %v2072
    %v3468 = vpop.f32.mrf.mxu0
    %v3469 = vadd.f32 0.0, %v3468
    %3470 = vmatmul.f32.gmra.mxu0 %v2075
    %v3471 = vpop.f32.mrf.mxu0
    %v3472 = vadd.f32 0.0, %v3471
    %3473 = vmatmul.f32.gmra.mxu0 %v2078
    %v3474 = vpop.f32.mrf.mxu0
    %v3475 = vadd.f32 0.0, %v3474
    %3476 = vdwg.mxu0
    %v3477 = vadd.f32 %v3335, %v3454
    %v3478 = vadd.f32 %v3336, %v3457
    %v3479 = vadd.f32 %v3337, %v3460
    %v3480 = vadd.f32 %v3338, %v3463
    %v3481 = vadd.f32 %v3339, %v3466
    %v3482 = vadd.f32 %v3340, %v3469
    %v3483 = vadd.f32 %v3341, %v3472
    %v3484 = vadd.f32 %v3342, %v3475
    %v3485 = vperm.slane %v116, 3
    %3486 = vmatpush.msra.mxu0 %v3418
    %3487 = vmatpush.msra.mxu0 %v3417
    %3488 = vmatpush.msra.mxu0 %v3416
    %3489 = vmatpush.msra.mxu0 %v3415
    %3490 = vmatpush.msra.mxu0 %v3414
    %3491 = vmatpush.msra.mxu0 %v3413
    %3492 = vmatpush.msra.mxu0 %v3412
    %3493 = vmatpush.msra.mxu0 %v3411
    %3494 = vmatpush.msra.mxu0 %v3410
    %3495 = vmatpush.msra.mxu0 %v3409
    %3496 = vmatpush.msra.mxu0 %v3408
    %3497 = vmatpush.msra.mxu0 %v3407
    %3498 = vmatpush.msra.mxu0 %v3406
    %3499 = vmatpush.msra.mxu0 %v3405
    %3500 = vmatpush.msra.mxu0 %v3404
    %3501 = vmatpush.msra.mxu0 %v3403
    %3502 = vmatmul.f32.gmra.mxu0 %v3477
    %v3503 = vpop.f32.mrf.mxu0
    %v3504 = vadd.f32 %v3485, %v3503
    %3505 = vmatmul.f32.gmra.mxu0 %v3478
    %v3506 = vpop.f32.mrf.mxu0
    %v3507 = vadd.f32 %v3485, %v3506
    %3508 = vmatmul.f32.gmra.mxu0 %v3479
    %v3509 = vpop.f32.mrf.mxu0
    %v3510 = vadd.f32 %v3485, %v3509
    %3511 = vmatmul.f32.gmra.mxu0 %v3480
    %v3512 = vpop.f32.mrf.mxu0
    %v3513 = vadd.f32 %v3485, %v3512
    %3514 = vmatmul.f32.gmra.mxu0 %v3481
    %v3515 = vpop.f32.mrf.mxu0
    %v3516 = vadd.f32 %v3485, %v3515
    %3517 = vmatmul.f32.gmra.mxu0 %v3482
    %v3518 = vpop.f32.mrf.mxu0
    %v3519 = vadd.f32 %v3485, %v3518
    %3520 = vmatmul.f32.gmra.mxu0 %v3483
    %v3521 = vpop.f32.mrf.mxu0
    %v3522 = vadd.f32 %v3485, %v3521
    %3523 = vmatmul.f32.gmra.mxu0 %v3484
    %v3524 = vpop.f32.mrf.mxu0
    %v3525 = vadd.f32 %v3485, %v3524
    %3526 = vdwg.mxu0
    %v3527 = vmax.f32 %v3504, 0.0
    %v3528 = vmax.f32 %v3507, 0.0
    %v3529 = vmax.f32 %v3510, 0.0
    %v3530 = vmax.f32 %v3513, 0.0
    %v3531 = vmax.f32 %v3516, 0.0
    %v3532 = vmax.f32 %v3519, 0.0
    %v3533 = vmax.f32 %v3522, 0.0
    %v3534 = vmax.f32 %v3525, 0.0
    %v3535 = vperm.slane %v116, 4
    %3536 = vmatpush.msra.mxu0 %v3435
    %3537 = vmatpush.msra.mxu0 %v3434
    %3538 = vmatpush.msra.mxu0 %v3433
    %3539 = vmatpush.msra.mxu0 %v3432
    %3540 = vmatpush.msra.mxu0 %v3431
    %3541 = vmatpush.msra.mxu0 %v3430
    %3542 = vmatpush.msra.mxu0 %v3429
    %3543 = vmatpush.msra.mxu0 %v3428
    %3544 = vmatpush.msra.mxu0 %v3427
    %3545 = vmatpush.msra.mxu0 %v3426
    %3546 = vmatpush.msra.mxu0 %v3425
    %3547 = vmatpush.msra.mxu0 %v3424
    %3548 = vmatpush.msra.mxu0 %v3423
    %3549 = vmatpush.msra.mxu0 %v3422
    %3550 = vmatpush.msra.mxu0 %v3421
    %3551 = vmatpush.msra.mxu0 %v3420
    %3552 = vmatmul.f32.gmra.mxu0 %v3527
    %v3553 = vpop.f32.mrf.mxu0
    %v3554 = vadd.f32 %v3535, %v3553
    %3555 = vmatmul.f32.gmra.mxu0 %v3528
    %v3556 = vpop.f32.mrf.mxu0
    %v3557 = vadd.f32 %v3535, %v3556
    %3558 = vmatmul.f32.gmra.mxu0 %v3529
    %v3559 = vpop.f32.mrf.mxu0
    %v3560 = vadd.f32 %v3535, %v3559
    %3561 = vmatmul.f32.gmra.mxu0 %v3530
    %v3562 = vpop.f32.mrf.mxu0
    %v3563 = vadd.f32 %v3535, %v3562
    %3564 = vmatmul.f32.gmra.mxu0 %v3531
    %v3565 = vpop.f32.mrf.mxu0
    %v3566 = vadd.f32 %v3535, %v3565
    %3567 = vmatmul.f32.gmra.mxu0 %v3532
    %v3568 = vpop.f32.mrf.mxu0
    %v3569 = vadd.f32 %v3535, %v3568
    %3570 = vmatmul.f32.gmra.mxu0 %v3533
    %v3571 = vpop.f32.mrf.mxu0
    %v3572 = vadd.f32 %v3535, %v3571
    %3573 = vmatmul.f32.gmra.mxu0 %v3534
    %v3574 = vpop.f32.mrf.mxu0
    %v3575 = vadd.f32 %v3535, %v3574
    %3576 = vdwg.mxu0
    %3577 = vadd.xlane.f32.xlu0 %v3554
    %v3578 = vpop.xlane.xlu0 %3577
    %3579 = vadd.xlane.f32.xlu0 %v3557
    %v3580 = vpop.xlane.xlu0 %3579
    %3581 = vadd.xlane.f32.xlu0 %v3560
    %v3582 = vpop.xlane.xlu0 %3581
    %3583 = vadd.xlane.f32.xlu0 %v3563
    %v3584 = vpop.xlane.xlu0 %3583
    %3585 = vadd.xlane.f32.xlu0 %v3566
    %v3586 = vpop.xlane.xlu0 %3585
    %3587 = vadd.xlane.f32.xlu0 %v3569
    %v3588 = vpop.xlane.xlu0 %3587
    %3589 = vadd.xlane.f32.xlu0 %v3572
    %v3590 = vpop.xlane.xlu0 %3589
    %3591 = vadd.xlane.f32.xlu0 %v3575
    %v3592 = vpop.xlane.xlu0 %3591
    %v3593 = vmul.f32 %v3578, %v2243
    %v3594 = vmul.f32 %v3580, %v2243
    %v3595 = vmul.f32 %v3582, %v2243
    %v3596 = vmul.f32 %v3584, %v2243
    %v3597 = vmul.f32 %v3586, %v2243
    %v3598 = vmul.f32 %v3588, %v2243
    %v3599 = vmul.f32 %v3590, %v2243
    %v3600 = vmul.f32 %v3592, %v2243
    %v3601 = vsub.f32 %v3554, %v3593
    %v3602 = vsub.f32 %v3557, %v3594
    %v3603 = vsub.f32 %v3560, %v3595
    %v3604 = vsub.f32 %v3563, %v3596
    %v3605 = vsub.f32 %v3566, %v3597
    %v3606 = vsub.f32 %v3569, %v3598
    %v3607 = vsub.f32 %v3572, %v3599
    %v3608 = vsub.f32 %v3575, %v3600
    %v3609 = vmul.f32 %v3601, %v3601
    %v3610 = vmul.f32 %v3602, %v3602
    %v3611 = vmul.f32 %v3603, %v3603
    %v3612 = vmul.f32 %v3604, %v3604
    %v3613 = vmul.f32 %v3605, %v3605
    %v3614 = vmul.f32 %v3606, %v3606
    %v3615 = vmul.f32 %v3607, %v3607
    %v3616 = vmul.f32 %v3608, %v3608
    %3617 = vadd.xlane.f32.xlu0 %v3609
    %v3618 = vpop.xlane.xlu0 %3617
    %3619 = vadd.xlane.f32.xlu0 %v3610
    %v3620 = vpop.xlane.xlu0 %3619
    %3621 = vadd.xlane.f32.xlu0 %v3611
    %v3622 = vpop.xlane.xlu0 %3621
    %3623 = vadd.xlane.f32.xlu0 %v3612
    %v3624 = vpop.xlane.xlu0 %3623
    %3625 = vadd.xlane.f32.xlu0 %v3613
    %v3626 = vpop.xlane.xlu0 %3625
    %3627 = vadd.xlane.f32.xlu0 %v3614
    %v3628 = vpop.xlane.xlu0 %3627
    %3629 = vadd.xlane.f32.xlu0 %v3615
    %v3630 = vpop.xlane.xlu0 %3629
    %3631 = vadd.xlane.f32.xlu0 %v3616
    %v3632 = vpop.xlane.xlu0 %3631
    %v3633 = vmul.f32 %v3618, %v2243
    %v3634 = vmul.f32 %v3620, %v2243
    %v3635 = vmul.f32 %v3622, %v2243
    %v3636 = vmul.f32 %v3624, %v2243
    %v3637 = vmul.f32 %v3626, %v2243
    %v3638 = vmul.f32 %v3628, %v2243
    %v3639 = vmul.f32 %v3630, %v2243
    %v3640 = vmul.f32 %v3632, %v2243
    %v3641 = vadd.f32 %v3633, 1e-05
    %v3642 = vadd.f32 %v3634, 1e-05
    %v3643 = vadd.f32 %v3635, 1e-05
    %v3644 = vadd.f32 %v3636, 1e-05
    %v3645 = vadd.f32 %v3637, 1e-05
    %v3646 = vadd.f32 %v3638, 1e-05
    %v3647 = vadd.f32 %v3639, 1e-05
    %v3648 = vadd.f32 %v3640, 1e-05
    %v3649 = vrsqrt.pop %v3641
    %v3650 = vmul.f32 %v3649, %v3641
    %v3651 = vmul.f32 %v3650, %v3649
    %v3652 = vmul.f32 0.5, %v3651
    %v3653 = vsub.f32 1.5, %v3652
    %v3654 = vmul.f32 %v3649, %v3653
    %vm3655 = vweird.f32 %v3641
    %vm3656 = vweird.f32 %v3649
    %vm3657 = vmor %vm3655, %vm3656
    %v3658 = vsel %vm3657, %v3649, %v3654
    %v3659 = vrsqrt.pop %v3642
    %v3660 = vmul.f32 %v3659, %v3642
    %v3661 = vmul.f32 %v3660, %v3659
    %v3662 = vmul.f32 0.5, %v3661
    %v3663 = vsub.f32 1.5, %v3662
    %v3664 = vmul.f32 %v3659, %v3663
    %vm3665 = vweird.f32 %v3642
    %vm3666 = vweird.f32 %v3659
    %vm3667 = vmor %vm3665, %vm3666
    %v3668 = vsel %vm3667, %v3659, %v3664
    %v3669 = vrsqrt.pop %v3643
    %v3670 = vmul.f32 %v3669, %v3643
    %v3671 = vmul.f32 %v3670, %v3669
    %v3672 = vmul.f32 0.5, %v3671
    %v3673 = vsub.f32 1.5, %v3672
    %v3674 = vmul.f32 %v3669, %v3673
    %vm3675 = vweird.f32 %v3643
    %vm3676 = vweird.f32 %v3669
    %vm3677 = vmor %vm3675, %vm3676
    %v3678 = vsel %vm3677, %v3669, %v3674
    %v3679 = vrsqrt.pop %v3644
    %v3680 = vmul.f32 %v3679, %v3644
    %v3681 = vmul.f32 %v3680, %v3679
    %v3682 = vmul.f32 0.5, %v3681
    %v3683 = vsub.f32 1.5, %v3682
    %v3684 = vmul.f32 %v3679, %v3683
    %vm3685 = vweird.f32 %v3644
    %vm3686 = vweird.f32 %v3679
    %vm3687 = vmor %vm3685, %vm3686
    %v3688 = vsel %vm3687, %v3679, %v3684
    %v3689 = vrsqrt.pop %v3645
    %v3690 = vmul.f32 %v3689, %v3645
    %v3691 = vmul.f32 %v3690, %v3689
    %v3692 = vmul.f32 0.5, %v3691
    %v3693 = vsub.f32 1.5, %v3692
    %v3694 = vmul.f32 %v3689, %v3693
    %vm3695 = vweird.f32 %v3645
    %vm3696 = vweird.f32 %v3689
    %vm3697 = vmor %vm3695, %vm3696
    %v3698 = vsel %vm3697, %v3689, %v3694
    %v3699 = vrsqrt.pop %v3646
    %v3700 = vmul.f32 %v3699, %v3646
    %v3701 = vmul.f32 %v3700, %v3699
    %v3702 = vmul.f32 0.5, %v3701
    %v3703 = vsub.f32 1.5, %v3702
    %v3704 = vmul.f32 %v3699, %v3703
    %vm3705 = vweird.f32 %v3646
    %vm3706 = vweird.f32 %v3699
    %vm3707 = vmor %vm3705, %vm3706
    %v3708 = vsel %vm3707, %v3699, %v3704
    %v3709 = vrsqrt.pop %v3647
    %v3710 = vmul.f32 %v3709, %v3647
    %v3711 = vmul.f32 %v3710, %v3709
    %v3712 = vmul.f32 0.5, %v3711
    %v3713 = vsub.f32 1.5, %v3712
    %v3714 = vmul.f32 %v3709, %v3713
    %vm3715 = vweird.f32 %v3647
    %vm3716 = vweird.f32 %v3709
    %vm3717 = vmor %vm3715, %vm3716
    %v3718 = vsel %vm3717, %v3709, %v3714
    %v3719 = vrsqrt.pop %v3648
    %v3720 = vmul.f32 %v3719, %v3648
    %v3721 = vmul.f32 %v3720, %v3719
    %v3722 = vmul.f32 0.5, %v3721
    %v3723 = vsub.f32 1.5, %v3722
    %v3724 = vmul.f32 %v3719, %v3723
    %vm3725 = vweird.f32 %v3648
    %vm3726 = vweird.f32 %v3719
    %vm3727 = vmor %vm3725, %vm3726
    %v3728 = vsel %vm3727, %v3719, %v3724
    %v3729 = vmul.f32 %v3601, %v3658
    %v3730 = vmul.f32 %v3602, %v3668
    %v3731 = vmul.f32 %v3603, %v3678
    %v3732 = vmul.f32 %v3604, %v3688
    %v3733 = vmul.f32 %v3605, %v3698
    %v3734 = vmul.f32 %v3606, %v3708
    %v3735 = vmul.f32 %v3607, %v3718
    %v3736 = vmul.f32 %v3608, %v3728
    %v3737 = vperm.slane %v116, 5
    %v3738 = vmul.f32 %v3729, %v3737
    %v3739 = vmul.f32 %v3730, %v3737
    %v3740 = vmul.f32 %v3731, %v3737
    %v3741 = vmul.f32 %v3732, %v3737
    %v3742 = vmul.f32 %v3733, %v3737
    %v3743 = vmul.f32 %v3734, %v3737
    %v3744 = vmul.f32 %v3735, %v3737
    %v3745 = vmul.f32 %v3736, %v3737
    %v3746 = vperm.slane %v116, 6
    %v3747 = vadd.f32 %v3738, %v3746
    %v3748 = vadd.f32 %v3739, %v3746
    %v3749 = vadd.f32 %v3740, %v3746
    %v3750 = vadd.f32 %v3741, %v3746
    %v3751 = vadd.f32 %v3742, %v3746
    %v3752 = vadd.f32 %v3743, %v3746
    %v3753 = vadd.f32 %v3744, %v3746
    %v3754 = vadd.f32 %v3745, %v3746
    %vm3755 = vcmp.gt.f32.partialorder %v3747, 0.0
    %vm3756 = vcmp.gt.f32.partialorder %v3748, 0.0
    %vm3757 = vcmp.gt.f32.partialorder %v3749, 0.0
    %vm3758 = vcmp.gt.f32.partialorder %v3750, 0.0
    %vm3759 = vcmp.gt.f32.partialorder %v3751, 0.0
    %vm3760 = vcmp.gt.f32.partialorder %v3752, 0.0
    %vm3761 = vcmp.gt.f32.partialorder %v3753, 0.0
    %vm3762 = vcmp.gt.f32.partialorder %v3754, 0.0
    %v3763 = vmul.f32 %v3747, 0.1
    %v3764 = vmul.f32 %v3748, 0.1
    %v3765 = vmul.f32 %v3749, 0.1
    %v3766 = vmul.f32 %v3750, 0.1
    %v3767 = vmul.f32 %v3751, 0.1
    %v3768 = vmul.f32 %v3752, 0.1
    %v3769 = vmul.f32 %v3753, 0.1
    %v3770 = vmul.f32 %v3754, 0.1
    %v3771 = vsel %vm3755, %v3747, %v3763
    %v3772 = vsel %vm3756, %v3748, %v3764
    %v3773 = vsel %vm3757, %v3749, %v3765
    %v3774 = vsel %vm3758, %v3750, %v3766
    %v3775 = vsel %vm3759, %v3751, %v3767
    %v3776 = vsel %vm3760, %v3752, %v3768
    %v3777 = vsel %vm3761, %v3753, %v3769
    %v3778 = vsel %vm3762, %v3754, %v3770
    %vm3779 = vcmask 1047559
    %v3780 = vsel %vm3779, %v3109, 0.0
    %3781 = vadd.xlane.f32.xlu0 %v3780
    %v3782 = vpop.xlane.xlu0 %3781
    %v3783 = vrsqrt.pop %v3782
    %v3784 = vmul.f32 %v3783, %v3782
    %v3785 = vmul.f32 %v3784, %v3783
    %v3786 = vmul.f32 0.5, %v3785
    %v3787 = vsub.f32 1.5, %v3786
    %v3788 = vmul.f32 %v3783, %v3787
    %vm3789 = vweird.f32 %v3782
    %vm3790 = vweird.f32 %v3783
    %vm3791 = vmor %vm3789, %vm3790
    %v3792 = vsel %vm3791, %v3783, %v3788
    %v3793 = vperm.slane %v116, 7
    %v3794 = vmul.f32 %v3771, %v3793
    %v3795 = vmul.f32 %v3772, %v3793
    %v3796 = vmul.f32 %v3773, %v3793
    %v3797 = vmul.f32 %v3774, %v3793
    %v3798 = vmul.f32 %v3775, %v3793
    %v3799 = vmul.f32 %v3776, %v3793
    %v3800 = vmul.f32 %v3777, %v3793
    %v3801 = vmul.f32 %v3778, %v3793
    %3802 = vadd.xlane.f32.xlu0 %v3794
    %v3803 = vpop.xlane.xlu0 %3802
    %3804 = vadd.xlane.f32.xlu0 %v3795
    %v3805 = vpop.xlane.xlu0 %3804
    %3806 = vadd.xlane.f32.xlu0 %v3796
    %v3807 = vpop.xlane.xlu0 %3806
    %3808 = vadd.xlane.f32.xlu0 %v3797
    %v3809 = vpop.xlane.xlu0 %3808
    %3810 = vadd.xlane.f32.xlu0 %v3798
    %v3811 = vpop.xlane.xlu0 %3810
    %3812 = vadd.xlane.f32.xlu0 %v3799
    %v3813 = vpop.xlane.xlu0 %3812
    %3814 = vadd.xlane.f32.xlu0 %v3800
    %v3815 = vpop.xlane.xlu0 %3814
    %3816 = vadd.xlane.f32.xlu0 %v3801
    %v3817 = vpop.xlane.xlu0 %3816
    %v3818 = vperm.slane %v3792, 7
    %v3819 = vmul.f32 %v3803, %v3818
    %v3820 = vmul.f32 %v3805, %v3818
    %v3821 = vmul.f32 %v3807, %v3818
    %v3822 = vmul.f32 %v3809, %v3818
    %v3823 = vmul.f32 %v3811, %v3818
    %v3824 = vmul.f32 %v3813, %v3818
    %v3825 = vmul.f32 %v3815, %v3818
    %v3826 = vmul.f32 %v3817, %v3818
    %v3827 = vtanh.pop %v3819
    %v3828 = vtanh.pop %v3820
    %v3829 = vtanh.pop %v3821
    %v3830 = vtanh.pop %v3822
    %v3831 = vtanh.pop %v3823
    %v3832 = vtanh.pop %v3824
    %v3833 = vtanh.pop %v3825
    %v3834 = vtanh.pop %v3826
    %v3835 = vsel %vm3343, %v3827, -1e+30
    %v3836 = vsel %vm3344, %v3828, -1e+30
    %v3837 = vsel %vm3345, %v3829, -1e+30
    %v3838 = vsel %vm3346, %v3830, -1e+30
    %v3839 = vsel %vm3347, %v3831, -1e+30
    %v3840 = vsel %vm3348, %v3832, -1e+30
    %v3841 = vsel %vm3349, %v3833, -1e+30
    %v3842 = vsel %vm3350, %v3834, -1e+30
    %3843 = vxpose.xlu0.b32.start [1/16] %v3835, 128
    %3844 = vxpose.xlu0.b32.cont [2/16] %v3836, 128
    %3845 = vxpose.xlu0.b32.cont [3/16] %v3837, 128
    %3846 = vxpose.xlu0.b32.cont [4/16] %v3838, 128
    %3847 = vxpose.xlu0.b32.cont [5/16] %v3839, 128
    %3848 = vxpose.xlu0.b32.cont [6/16] %v3840, 128
    %3849 = vxpose.xlu0.b32.cont [7/16] %v3841, 128
    %3850 = vxpose.xlu0.b32.cont [8/16] %v3842, 128
    %3851 = vxpose.xlu0.b32.cont [9/16] 0.0, 128
    %3852 = vxpose.xlu0.b32.cont [10/16] 0.0, 128
    %3853 = vxpose.xlu0.b32.cont [11/16] 0.0, 128
    %3854 = vxpose.xlu0.b32.cont [12/16] 0.0, 128
    %3855 = vxpose.xlu0.b32.cont [13/16] 0.0, 128
    %3856 = vxpose.xlu0.b32.cont [14/16] 0.0, 128
    %3857 = vxpose.xlu0.b32.cont [15/16] 0.0, 128
    %3858 = vxpose.xlu0.b32.end [16/16] 0.0, 128
    %v3859 = vpop.trf.xlu0
    %v3860 = vpop.trf.xlu0
    %v3861 = vpop.trf.xlu0
    %v3862 = vpop.trf.xlu0
    %v3863 = vpop.trf.xlu0
    %v3864 = vpop.trf.xlu0
    %v3865 = vpop.trf.xlu0
    %v3866 = vpop.trf.xlu0
    %v3867 = vpop.trf.xlu0
    %v3868 = vpop.trf.xlu0
    %v3869 = vpop.trf.xlu0
    %v3870 = vpop.trf.xlu0
    %v3871 = vpop.trf.xlu0
    %v3872 = vpop.trf.xlu0
    %v3873 = vpop.trf.xlu0
    %v3874 = vpop.trf.xlu0
    %v3875 = vperm.slane %v3859, 0
    %vm3876 = vcmp.gt.f32.partialorder %v3875, %v3835
    %vm3877 = vcmp.gt.f32.partialorder %v3875, %v3836
    %vm3878 = vcmp.gt.f32.partialorder %v3875, %v3837
    %vm3879 = vcmp.gt.f32.partialorder %v3875, %v3838
    %vm3880 = vcmp.gt.f32.partialorder %v3875, %v3839
    %vm3881 = vcmp.gt.f32.partialorder %v3875, %v3840
    %vm3882 = vcmp.gt.f32.partialorder %v3875, %v3841
    %vm3883 = vcmp.gt.f32.partialorder %v3875, %v3842
    %v3884 = vsel %vm3876, 1, 0
    %v3885 = vsel %vm3877, 1, 0
    %v3886 = vsel %vm3878, 1, 0
    %v3887 = vsel %vm3879, 1, 0
    %v3888 = vsel %vm3880, 1, 0
    %v3889 = vsel %vm3881, 1, 0
    %v3890 = vsel %vm3882, 1, 0
    %v3891 = vsel %vm3883, 1, 0
    %v3892 = vcvt.s32.f32 %v3884
    %v3893 = vcvt.s32.f32 %v3885
    %v3894 = vcvt.s32.f32 %v3886
    %v3895 = vcvt.s32.f32 %v3887
    %v3896 = vcvt.s32.f32 %v3888
    %v3897 = vcvt.s32.f32 %v3889
    %v3898 = vcvt.s32.f32 %v3890
    %v3899 = vcvt.s32.f32 %v3891
    %vm3900 = vcmp.eq.f32.partialorder %v3875, %v3835
    %vm3901 = vcmp.eq.f32.partialorder %v3875, %v3836
    %vm3902 = vcmp.eq.f32.partialorder %v3875, %v3837
    %vm3903 = vcmp.eq.f32.partialorder %v3875, %v3838
    %vm3904 = vcmp.eq.f32.partialorder %v3875, %v3839
    %vm3905 = vcmp.eq.f32.partialorder %v3875, %v3840
    %vm3906 = vcmp.eq.f32.partialorder %v3875, %v3841
    %vm3907 = vcmp.eq.f32.partialorder %v3875, %v3842
    %vm3908 = vmand %vm3900, %vm2569
    %vm3909 = vmand %vm3901, %vm2570
    %vm3910 = vmand %vm3902, %vm2571
    %vm3911 = vmand %vm3903, %vm2572
    %vm3912 = vmand %vm3904, %vm2573
    %vm3913 = vmand %vm3905, %vm2574
    %vm3914 = vmand %vm3906, %vm2575
    %vm3915 = vmand %vm3907, %vm2576
    %v3916 = vsel %vm3908, 1, 0
    %v3917 = vsel %vm3909, 1, 0
    %v3918 = vsel %vm3910, 1, 0
    %v3919 = vsel %vm3911, 1, 0
    %v3920 = vsel %vm3912, 1, 0
    %v3921 = vsel %vm3913, 1, 0
    %v3922 = vsel %vm3914, 1, 0
    %v3923 = vsel %vm3915, 1, 0
    %v3924 = vcvt.s32.f32 %v3916
    %v3925 = vcvt.s32.f32 %v3917
    %v3926 = vcvt.s32.f32 %v3918
    %v3927 = vcvt.s32.f32 %v3919
    %v3928 = vcvt.s32.f32 %v3920
    %v3929 = vcvt.s32.f32 %v3921
    %v3930 = vcvt.s32.f32 %v3922
    %v3931 = vcvt.s32.f32 %v3923
    %v3932 = vadd.f32 %v3892, %v3924
    %v3933 = vadd.f32 %v3893, %v3925
    %v3934 = vadd.f32 %v3894, %v3926
    %v3935 = vadd.f32 %v3895, %v3927
    %v3936 = vadd.f32 %v3896, %v3928
    %v3937 = vadd.f32 %v3897, %v3929
    %v3938 = vadd.f32 %v3898, %v3930
    %v3939 = vadd.f32 %v3899, %v3931
    %v3940 = vsel %vm275, %v3932, 0.0
    %3941 = vadd.xlane.f32.xlu0 %v3940
    %v3942 = vpop.xlane.xlu0 %3941
    %v3943 = vsel %vm275, %v3933, 0.0
    %3944 = vadd.xlane.f32.xlu0 %v3943
    %v3945 = vpop.xlane.xlu0 %3944
    %v3946 = vsel %vm275, %v3934, 0.0
    %3947 = vadd.xlane.f32.xlu0 %v3946
    %v3948 = vpop.xlane.xlu0 %3947
    %v3949 = vsel %vm275, %v3935, 0.0
    %3950 = vadd.xlane.f32.xlu0 %v3949
    %v3951 = vpop.xlane.xlu0 %3950
    %v3952 = vsel %vm275, %v3936, 0.0
    %3953 = vadd.xlane.f32.xlu0 %v3952
    %v3954 = vpop.xlane.xlu0 %3953
    %v3955 = vsel %vm275, %v3937, 0.0
    %3956 = vadd.xlane.f32.xlu0 %v3955
    %v3957 = vpop.xlane.xlu0 %3956
    %v3958 = vsel %vm275, %v3938, 0.0
    %3959 = vadd.xlane.f32.xlu0 %v3958
    %v3960 = vpop.xlane.xlu0 %3959
    %v3961 = vsel %vm275, %v3939, 0.0
    %3962 = vadd.xlane.f32.xlu0 %v3961
    %v3963 = vpop.xlane.xlu0 %3962
    %vm3964 = vcmp.lt.f32.partialorder %v3942, 8.0
    %vm3965 = vcmp.lt.f32.partialorder %v3945, 8.0
    %vm3966 = vcmp.lt.f32.partialorder %v3948, 8.0
    %vm3967 = vcmp.lt.f32.partialorder %v3951, 8.0
    %vm3968 = vcmp.lt.f32.partialorder %v3954, 8.0
    %vm3969 = vcmp.lt.f32.partialorder %v3957, 8.0
    %vm3970 = vcmp.lt.f32.partialorder %v3960, 8.0
    %vm3971 = vcmp.lt.f32.partialorder %v3963, 8.0
    %v3972 = vsel %vm3964, 1, 0
    %v3973 = vsel %vm3965, 1, 0
    %v3974 = vsel %vm3966, 1, 0
    %v3975 = vsel %vm3967, 1, 0
    %v3976 = vsel %vm3968, 1, 0
    %v3977 = vsel %vm3969, 1, 0
    %v3978 = vsel %vm3970, 1, 0
    %v3979 = vsel %vm3971, 1, 0
    %v3980 = vcvt.s32.f32 %v3972
    %v3981 = vcvt.s32.f32 %v3973
    %v3982 = vcvt.s32.f32 %v3974
    %v3983 = vcvt.s32.f32 %v3975
    %v3984 = vcvt.s32.f32 %v3976
    %v3985 = vcvt.s32.f32 %v3977
    %v3986 = vcvt.s32.f32 %v3978
    %v3987 = vcvt.s32.f32 %v3979
    %v3988 = vmul.f32 %v3319, %v3980
    %v3989 = vmul.f32 %v3320, %v3981
    %v3990 = vmul.f32 %v3321, %v3982
    %v3991 = vmul.f32 %v3322, %v3983
    %v3992 = vmul.f32 %v3323, %v3984
    %v3993 = vmul.f32 %v3324, %v3985
    %v3994 = vmul.f32 %v3325, %v3986
    %v3995 = vmul.f32 %v3326, %v3987
    %v3996 = vmul.f32 %v3988, %v3827
    %v3997 = vmul.f32 %v3989, %v3828
    %v3998 = vmul.f32 %v3990, %v3829
    %v3999 = vmul.f32 %v3991, %v3830
    %v4000 = vmul.f32 %v3992, %v3831
    %v4001 = vmul.f32 %v3993, %v3832
    %v4002 = vmul.f32 %v3994, %v3833
    %v4003 = vmul.f32 %v3995, %v3834
    %v4004 = vmul.f32 %v3771, %v3996
    %v4005 = vmul.f32 %v3772, %v3997
    %v4006 = vmul.f32 %v3773, %v3998
    %v4007 = vmul.f32 %v3774, %v3999
    %v4008 = vmul.f32 %v3775, %v4000
    %v4009 = vmul.f32 %v3776, %v4001
    %v4010 = vmul.f32 %v3777, %v4002
    %v4011 = vmul.f32 %v3778, %v4003
    %vm4012 = vcmp.gt.f32.partialorder %v3988, 0.5
    %vm4013 = vcmp.gt.f32.partialorder %v3989, 0.5
    %vm4014 = vcmp.gt.f32.partialorder %v3990, 0.5
    %vm4015 = vcmp.gt.f32.partialorder %v3991, 0.5
    %vm4016 = vcmp.gt.f32.partialorder %v3992, 0.5
    %vm4017 = vcmp.gt.f32.partialorder %v3993, 0.5
    %vm4018 = vcmp.gt.f32.partialorder %v3994, 0.5
    %vm4019 = vcmp.gt.f32.partialorder %v3995, 0.5
    %v4020 = vsel %vm4012, 1, 0
    %v4021 = vsel %vm4013, 1, 0
    %v4022 = vsel %vm4014, 1, 0
    %v4023 = vsel %vm4015, 1, 0
    %v4024 = vsel %vm4016, 1, 0
    %v4025 = vsel %vm4017, 1, 0
    %v4026 = vsel %vm4018, 1, 0
    %v4027 = vsel %vm4019, 1, 0
    %vm4028 = vcmp.eq.s32.totalorder %v4020, 1
    %vm4029 = vcmp.eq.s32.totalorder %v4021, 1
    %vm4030 = vcmp.eq.s32.totalorder %v4022, 1
    %vm4031 = vcmp.eq.s32.totalorder %v4023, 1
    %vm4032 = vcmp.eq.s32.totalorder %v4024, 1
    %vm4033 = vcmp.eq.s32.totalorder %v4025, 1
    %vm4034 = vcmp.eq.s32.totalorder %v4026, 1
    %vm4035 = vcmp.eq.s32.totalorder %v4027, 1
    %v4036 = vsel %vm4028, %v4004, -1e+30
    %v4037 = vsel %vm4029, %v4005, -1e+30
    %v4038 = vsel %vm4030, %v4006, -1e+30
    %v4039 = vsel %vm4031, %v4007, -1e+30
    %v4040 = vsel %vm4032, %v4008, -1e+30
    %v4041 = vsel %vm4033, %v4009, -1e+30
    %v4042 = vsel %vm4034, %v4010, -1e+30
    %v4043 = vsel %vm4035, %v4011, -1e+30
    %v4044 = vmax.f32 %v4036, %v4040
    %v4045 = vmax.f32 %v4037, %v4041
    %v4046 = vmax.f32 %v4038, %v4042
    %v4047 = vmax.f32 %v4039, %v4043
    %v4048 = vmax.f32 %v4044, %v4045
    %v4049 = vmax.f32 %v4046, %v4047
    %v4050 = vmax.f32 %v4048, %v4049
    %v4051 = vrot.slane %v4050, 4
    %v4052 = vmax.f32 %v4050, %v4051
    %v4053 = vrot.slane %v4052, 2
    %v4054 = vmax.f32 %v4052, %v4053
    %v4055 = vrot.slane %v4054, 1
    %v4056 = vmax.f32 %v4054, %v4055
    %v4057 = vadd.f32 %v4004, %v4005
    %v4058 = vadd.f32 %v4057, %v4006
    %v4059 = vadd.f32 %v4058, %v4007
    %v4060 = vadd.f32 %v4059, %v4008
    %v4061 = vadd.f32 %v4060, %v4009
    %v4062 = vadd.f32 %v4061, %v4010
    %v4063 = vadd.f32 %v4062, %v4011
    %v4064 = vrot.slane %v4063, 4
    %v4065 = vadd.f32 %v4063, %v4064
    %v4066 = vrot.slane %v4065, 2
    %v4067 = vadd.f32 %v4065, %v4066
    %v4068 = vrot.slane %v4067, 1
    %v4069 = vadd.f32 %v4067, %v4068
    %v4070 = vmul.f32 %v4069, 0.125
    %vm4071 = vcmask 1040384
    %v4072 = vsel %vm4071, %v4056, 0.0
    %v4073 = vsel %vm4071, %v4070, 0.0
    %v4074 = vadd.f32 %v4072, %v4073
    %4075 = vadd.xlane.f32.xlu0 %v4074
    %v4076 = vpop.xlane.xlu0 %4075
    %v4077 = vrcp.pop 256.0
    %v4078 = vmul.f32 256.0, %v4077
    %v4079 = vsub.f32 1.0, %v4078
    %v4080 = vmul.f32 %v4077, %v4079
    %v4081 = vadd.f32 %v4077, %v4080
    %vm4082 = vweird.f32 %v4077
    %v4083 = vsel %vm4082, %v4077, %v4081
    %v4084 = vmul.f32 %v4076, %v4083
    %v4085 = vsub.f32 %v4056, %v4084
    %v4086 = vsub.f32 %v4070, %v4084
    %v4087 = vmul.f32 %v4085, %v4085
    %v4088 = vmul.f32 %v4086, %v4086
    %v4089 = vsel %vm4071, %v4087, 0.0
    %v4090 = vsel %vm4071, %v4088, 0.0
    %v4091 = vadd.f32 %v4089, %v4090
    %4092 = vadd.xlane.f32.xlu0 %v4091
    %v4093 = vpop.xlane.xlu0 %4092
    %v4094 = vmul.f32 %v4093, %v4083
    %v4095 = vadd.f32 %v4094, 1e-05
    %v4096 = vrsqrt.pop %v4095
    %v4097 = vmul.f32 %v4096, %v4095
    %v4098 = vmul.f32 %v4097, %v4096
    %v4099 = vmul.f32 0.5, %v4098
    %v4100 = vsub.f32 1.5, %v4099
    %v4101 = vmul.f32 %v4096, %v4100
    %vm4102 = vweird.f32 %v4095
    %vm4103 = vweird.f32 %v4096
    %vm4104 = vmor %vm4102, %vm4103
    %v4105 = vsel %vm4104, %v4096, %v4101
    %v4106 = vmul.f32 %v4085, %v4105
    %v4107 = vmul.f32 %v4086, %v4105
    %v4109 = vperm.slane %v117, 0
    %v4110 = vperm.slane %v117, 4
    %v4113 = vmul.f32 %v4106, %v4109
    %v4114 = vmul.f32 %v4107, %v4110
    %v4115 = vperm.slane %v117, 1
    %v4116 = vperm.slane %v117, 5
    %v4119 = vadd.f32 %v4113, %v4115
    %v4120 = vadd.f32 %v4114, %v4116
    %vm4121 = vcmp.gt.f32.partialorder %v2717, 0.0
    %vm4122 = vcmp.gt.f32.partialorder %v2731, 0.0
    %v4123 = vmul.f32 %v2717, 0.1
    %v4124 = vmul.f32 %v2731, 0.1
    %v4125 = vsel %vm4121, %v2717, %v4123
    %v4126 = vsel %vm4122, %v2731, %v4124
    %vm4127 = vcmp.gt.f32.partialorder %v3387, 0.0
    %vm4128 = vcmp.gt.f32.partialorder %v3401, 0.0
    %v4129 = vmul.f32 %v3387, 0.1
    %v4130 = vmul.f32 %v3401, 0.1
    %v4131 = vsel %vm4127, %v3387, %v4129
    %v4132 = vsel %vm4128, %v3401, %v4130
    %v4133 = vadd.f32 %v4125, %v4131
    %v4134 = vadd.f32 %v4126, %v4132
    %vm4135 = vcmp.gt.f32.partialorder %v4119, 0.0
    %vm4136 = vcmp.gt.f32.partialorder %v4120, 0.0
    %v4137 = vmul.f32 %v4119, 0.1
    %v4138 = vmul.f32 %v4120, 0.1
    %v4139 = vsel %vm4135, %v4119, %v4137
    %v4140 = vsel %vm4136, %v4120, %v4138
    %v4141 = vadd.f32 %v4133, %v4139
    %v4142 = vadd.f32 %v4134, %v4140
    %v4143 = vld [vmem:[#allocation9] sm:$0xff]
    %v4144 = vld [vmem:[#allocation9 + $0x8] sm:$0xff]
    %v4145 = vld [vmem:[#allocation9 + $0x10] sm:$0xff]
    %v4146 = vld [vmem:[#allocation9 + $0x18] sm:$0xff]
    %v4147 = vld [vmem:[#allocation9 + $0x20] sm:$0xff]
    %v4148 = vld [vmem:[#allocation9 + $0x28] sm:$0xff]
    %v4149 = vld [vmem:[#allocation9 + $0x30] sm:$0xff]
    %v4150 = vld [vmem:[#allocation9 + $0x38] sm:$0xff]
    %v4151 = vld [vmem:[#allocation9 + $0x40] sm:$0xff]
    %v4152 = vld [vmem:[#allocation9 + $0x48] sm:$0xff]
    %v4153 = vld [vmem:[#allocation9 + $0x50] sm:$0xff]
    %v4154 = vld [vmem:[#allocation9 + $0x58] sm:$0xff]
    %v4155 = vld [vmem:[#allocation9 + $0x60] sm:$0xff]
    %v4156 = vld [vmem:[#allocation9 + $0x68] sm:$0xff]
    %v4157 = vld [vmem:[#allocation9 + $0x70] sm:$0xff]
    %v4158 = vld [vmem:[#allocation9 + $0x78] sm:$0xff]
    %v4159 = vld [vmem:[#allocation9 + $0x80] sm:$0xff]
    %v4160 = vld [vmem:[#allocation9 + $0x88] sm:$0xff]
    %v4161 = vld [vmem:[#allocation9 + $0x90] sm:$0xff]
    %v4162 = vld [vmem:[#allocation9 + $0x98] sm:$0xff]
    %v4163 = vld [vmem:[#allocation9 + $0xa0] sm:$0xff]
    %v4164 = vld [vmem:[#allocation9 + $0xa8] sm:$0xff]
    %v4165 = vld [vmem:[#allocation9 + $0xb0] sm:$0xff]
    %v4166 = vld [vmem:[#allocation9 + $0xb8] sm:$0xff]
    %v4167 = vld [vmem:[#allocation9 + $0xc0] sm:$0xff]
    %v4168 = vld [vmem:[#allocation9 + $0xc8] sm:$0xff]
    %v4169 = vld [vmem:[#allocation9 + $0xd0] sm:$0xff]
    %v4170 = vld [vmem:[#allocation9 + $0xd8] sm:$0xff]
    %v4171 = vld [vmem:[#allocation9 + $0xe0] sm:$0xff]
    %v4172 = vld [vmem:[#allocation9 + $0xe8] sm:$0xff]
    %v4173 = vld [vmem:[#allocation9 + $0xf0] sm:$0xff]
    %v4174 = vld [vmem:[#allocation9 + $0xf8] sm:$0xff]
    %v4175 = vld [vmem:[#allocation9 + $0x100] sm:$0xff]
    %v4176 = vld [vmem:[#allocation9 + $0x108] sm:$0xff]
    %v4177 = vld [vmem:[#allocation9 + $0x110] sm:$0xff]
    %v4178 = vld [vmem:[#allocation9 + $0x118] sm:$0xff]
    %v4179 = vld [vmem:[#allocation9 + $0x120] sm:$0xff]
    %v4180 = vld [vmem:[#allocation9 + $0x128] sm:$0xff]
    %v4181 = vld [vmem:[#allocation9 + $0x130] sm:$0xff]
    %v4182 = vld [vmem:[#allocation9 + $0x138] sm:$0xff]
    %v4183 = vld [vmem:[#allocation9 + $0x140] sm:$0xff]
    %v4184 = vld [vmem:[#allocation9 + $0x148] sm:$0xff]
    %v4185 = vld [vmem:[#allocation9 + $0x150] sm:$0xff]
    %v4186 = vld [vmem:[#allocation9 + $0x158] sm:$0xff]
    %v4187 = vld [vmem:[#allocation9 + $0x160] sm:$0xff]
    %v4188 = vld [vmem:[#allocation9 + $0x168] sm:$0xff]
    %v4189 = vld [vmem:[#allocation9 + $0x170] sm:$0xff]
    %v4190 = vld [vmem:[#allocation9 + $0x178] sm:$0xff]
    %v4191 = vperm.slane %v117, 2
    %4193 = vmatpush.msra.mxu0 %v4158
    %4194 = vmatpush.msra.mxu0 %v4157
    %4195 = vmatpush.msra.mxu0 %v4156
    %4196 = vmatpush.msra.mxu0 %v4155
    %4197 = vmatpush.msra.mxu0 %v4154
    %4198 = vmatpush.msra.mxu0 %v4153
    %4199 = vmatpush.msra.mxu0 %v4152
    %4200 = vmatpush.msra.mxu0 %v4151
    %4201 = vmatpush.msra.mxu0 %v4150
    %4202 = vmatpush.msra.mxu0 %v4149
    %4203 = vmatpush.msra.mxu0 %v4148
    %4204 = vmatpush.msra.mxu0 %v4147
    %4205 = vmatpush.msra.mxu0 %v4146
    %4206 = vmatpush.msra.mxu0 %v4145
    %4207 = vmatpush.msra.mxu0 %v4144
    %4208 = vmatpush.msra.mxu0 %v4143
    %4209 = vmatmul.f32.gmra.mxu0 %v4141
    %v4210 = vpop.f32.mrf.mxu0
    %v4211 = vadd.f32 %v4191, %v4210
    %4212 = vdwg.mxu0
    %4213 = vmatpush.msra.mxu0 %v4174
    %4214 = vmatpush.msra.mxu0 %v4173
    %4215 = vmatpush.msra.mxu0 %v4172
    %4216 = vmatpush.msra.mxu0 %v4171
    %4217 = vmatpush.msra.mxu0 %v4170
    %4218 = vmatpush.msra.mxu0 %v4169
    %4219 = vmatpush.msra.mxu0 %v4168
    %4220 = vmatpush.msra.mxu0 %v4167
    %4221 = vmatpush.msra.mxu0 %v4166
    %4222 = vmatpush.msra.mxu0 %v4165
    %4223 = vmatpush.msra.mxu0 %v4164
    %4224 = vmatpush.msra.mxu0 %v4163
    %4225 = vmatpush.msra.mxu0 %v4162
    %4226 = vmatpush.msra.mxu0 %v4161
    %4227 = vmatpush.msra.mxu0 %v4160
    %4228 = vmatpush.msra.mxu0 %v4159
    %4229 = vmatmul.f32.gmra.mxu0 %v4142
    %v4230 = vpop.f32.mrf.mxu0
    %v4231 = vadd.f32 %v4211, %v4230
    %4232 = vdwg.mxu0
    %4233 = vmatpush.msra.mxu0 %v4190
    %4234 = vmatpush.msra.mxu0 %v4189
    %4235 = vmatpush.msra.mxu0 %v4188
    %4236 = vmatpush.msra.mxu0 %v4187
    %4237 = vmatpush.msra.mxu0 %v4186
    %4238 = vmatpush.msra.mxu0 %v4185
    %4239 = vmatpush.msra.mxu0 %v4184
    %4240 = vmatpush.msra.mxu0 %v4183
    %4241 = vmatpush.msra.mxu0 %v4182
    %4242 = vmatpush.msra.mxu0 %v4181
    %4243 = vmatpush.msra.mxu0 %v4180
    %4244 = vmatpush.msra.mxu0 %v4179
    %4245 = vmatpush.msra.mxu0 %v4178
    %4246 = vmatpush.msra.mxu0 %v4177
    %4247 = vmatpush.msra.mxu0 %v4176
    %4248 = vmatpush.msra.mxu0 %v4175
    %4249 = vmatmul.f32.gmra.mxu0 %v4231
    %v4250 = vpop.f32.mrf.mxu0
    %v4251 = vadd.f32 0.0, %v4250
    %4252 = vdwg.mxu0
    %v4253 = vperm.slane %v117, 3
    %v4255 = vadd.f32 %v4251, %v4253
    %vm4256 = vcmask 57344
    %v4257 = vsel %vm4256, %v4255, -inf
    %4258 = vmax.xlane.f32.xlu0 %v4257
    %v4259 = vpop.xlane.xlu0 %4258
    %v4260 = vsub.f32 %v4255, %v4259
    %v4261 = vmul.f32 %v4260, 1.442695
    %v4262 = vpow.pop %v4261
    %v4263 = vsel %vm4256, %v4262, 0.0
    %4264 = vadd.xlane.f32.xlu0 %v4263
    %v4265 = vpop.xlane.xlu0 %4264
    %v4266 = vrcp.pop %v4265
    %v4267 = vmul.f32 %v4265, %v4266
    %v4268 = vsub.f32 1.0, %v4267
    %v4269 = vmul.f32 %v4266, %v4268
    %v4270 = vadd.f32 %v4266, %v4269
    %vm4271 = vweird.f32 %v4265
    %vm4272 = vweird.f32 %v4266
    %vm4273 = vmor %vm4271, %vm4272
    %v4274 = vsel %vm4273, %v4266, %v4270
    %v4275 = vand.u32 2147483647, %v4265
    %vm4276 = vcmp.eq.f32.partialorder %v4275, 8.507059e+37
    %v4277 = vand.u32 %v4265, 2147483648
    %v4278 = vor.u32 1.1754944e-38, %v4277
    %v4279 = vsel %vm4276, %v4278, %v4274
    %v4280 = vmul.f32 %v4262, %v4279
    %v4281 = vsub.f32 1.0, %v4280
    %4283 = vset.pattern.permute.xlu0 0
    %4284 = vperm.xlu0 %4283, %v4281
    %v4285 = vpop.permute.xlu0 %4284
    %vm4287 = vcmp.ge.s32.totalorder %v128, 0
    %v4288 = vsel %vm4287, %v4285, 1.0
    %4289 = vset.pattern.permute.xlu0 1
    %4290 = vperm.xlu0 %4289, %v4281
    %v4291 = vpop.permute.xlu0 %4290
    %vm4293 = vcmp.ge.s32.totalorder %v128, 1
    %v4294 = vsel %vm4293, %v4291, 1.0
    %v4295 = vmul.f32 %v4288, %v4294
    %4296 = vset.pattern.permute.xlu0 2
    %4297 = vperm.xlu0 %4296, %v4281
    %v4298 = vpop.permute.xlu0 %4297
    %vm4300 = vcmp.ge.s32.totalorder %v128, 2
    %v4301 = vsel %vm4300, %v4298, 1.0
    %v4302 = vmul.f32 %v4295, %v4301
    %4303 = vset.pattern.permute.xlu0 3
    %4304 = vperm.xlu0 %4303, %v4281
    %v4305 = vpop.permute.xlu0 %4304
    %vm4307 = vcmp.ge.s32.totalorder %v128, 3
    %v4308 = vsel %vm4307, %v4305, 1.0
    %v4309 = vmul.f32 %v4302, %v4308
    %4310 = vset.pattern.permute.xlu0 4
    %4311 = vperm.xlu0 %4310, %v4281
    %v4312 = vpop.permute.xlu0 %4311
    %vm4314 = vcmp.ge.s32.totalorder %v128, 4
    %v4315 = vsel %vm4314, %v4312, 1.0
    %v4316 = vmul.f32 %v4309, %v4315
    %4317 = vset.pattern.permute.xlu0 5
    %4318 = vperm.xlu0 %4317, %v4281
    %v4319 = vpop.permute.xlu0 %4318
    %vm4321 = vcmp.ge.s32.totalorder %v128, 5
    %v4322 = vsel %vm4321, %v4319, 1.0
    %v4323 = vmul.f32 %v4316, %v4322
    %4324 = vset.pattern.permute.xlu0 6
    %4325 = vperm.xlu0 %4324, %v4281
    %v4326 = vpop.permute.xlu0 %4325
    %vm4328 = vcmp.ge.s32.totalorder %v128, 6
    %v4329 = vsel %vm4328, %v4326, 1.0
    %v4330 = vmul.f32 %v4323, %v4329
    %4331 = vset.pattern.permute.xlu0 7
    %4332 = vperm.xlu0 %4331, %v4281
    %v4333 = vpop.permute.xlu0 %4332
    %vm4335 = vcmp.ge.s32.totalorder %v128, 7
    %v4336 = vsel %vm4335, %v4333, 1.0
    %v4337 = vmul.f32 %v4330, %v4336
    %4339 = vrot.lane.b32.xlu0 %v4337, 8
    %v4340 = vpop.permute.xlu0 %4339
    %vm4342 = vcmask 64512
    %v4343 = vsel %vm4342, %v4280, %v4340
    %vm4344 = vcmask 130048
    %v4345 = vsel %vm4344, %v4343, 0.0
    %v4348 = vrot.slane %v4345, 7
    %v4349 = vsel %vm4071, %v4231, %v4348
    %v4351 = vlaneseq
    %vm4352 = vcmp.ge.s32.totalorder %v4351, 0
    %vm4353 = vcmp.lt.s32.totalorder %v4351, 256
    %vm4354 = vmand %vm4352, %vm4353
    %4355 = vst.msk [vmem:[%s6] sm:$0x3] %vm4354, %v4349
    // Predicated region
    $region50: #{gnn_forward.1} parent=1 // pred_check
      _
    $region51: #{gnn_forward.1} parent=1 // pred_check_branch
      %4357 = sbr.rel (0) target = $region53
    $region52: #{gnn_forward.1} parent=1 // pred_region
      _
    $region53: #{gnn_forward.1} parent=1 // pred_fallthru
      _
    // Predicated region
    $region54: #{gnn_forward.1} parent=1 // pred_check
      _
    $region55: #{gnn_forward.1} parent=1 // pred_check_branch
      %4359 = sbr.rel (0) target = $region57
    $region56: #{gnn_forward.1} parent=1 // pred_region
      _
    $region57: #{gnn_forward.1} parent=1 // pred_fallthru
      _
    %4360 = vsyncpa [#allocation3], 1
    %4361 = vsyncpa [#allocation5], 1
    %4362 = vsyncpa [#allocation8], 1
    %4363 = vsyncpa [#allocation11], 1

</llo_original>
